<compile_context>
chip_gen: v6e
topology: v6e:2x2x1
jax: 0.10.0
libtpu: 0.0.40
codegen_flags: <defaults>
</compile_context>

<pallas_src>
import functools

import jax
import jax.numpy as jnp
from jax import lax
from jax.experimental import pallas as pl
from jax.experimental.pallas import tpu as pltpu

KSIZE = 7
PAD = 3            # padding = 3 for kernel_size = 7
PAD_TOP = 8        # sublane-aligned top padding of the H-padded conv scratch
_RED_CHUNK = 8     # channel rows per reduce step (one sublane block)
_MOD_CHUNK = 8     # channel rows per modulate step
_UNROLL_MAX = 8    # unroll short chunk loops; use fori_loop beyond this


def _spatial_attention_kernel(w_ref, x_ref, o_ref, pad_ref, flat_ref, *, H, W):
    # w_ref:    SMEM (2*KSIZE*KSIZE,) f32  -- conv1 weight, flattened OIHW (O=1)
    # x_ref:    VMEM (1, C, H*W)           -- one batch element, lane-dense
    # o_ref:    VMEM (1, C, H*W)
    # pad_ref:  VMEM (2, HP, W) f32        -- avg/max maps, zero-padded along H
    # flat_ref: VMEM (3, H*W) f32          -- rows: avg, max, attn (flat layout)
    C = x_ref.shape[1]
    HW = x_ref.shape[2]

    # ---- 1) Channel reduce (lane-dense, chunked accumulators). --------------
    R = _RED_CHUNK
    nfull = C // R
    if nfull > 0:
        first = x_ref[0, 0:R, :]
        acc_s = first.astype(jnp.float32)          # sum accumulates in f32
        acc_m = first                              # max stays in the input dtype

        if nfull - 1 <= _UNROLL_MAX:
            for b in range(1, nfull):
                blk = x_ref[0, b * R:(b + 1) * R, :]
                acc_s = acc_s + blk.astype(jnp.float32)
                acc_m = jnp.maximum(acc_m, blk)
        else:
            def red_body(b, carry):
                s, m = carry
                off = pl.multiple_of(b * R, R)
                blk = x_ref[0, pl.ds(off, R), :]
                return s + blk.astype(jnp.float32), jnp.maximum(m, blk)
            acc_s, acc_m = lax.fori_loop(1, nfull, red_body, (acc_s, acc_m))

        sum_row = jnp.sum(acc_s, axis=0, keepdims=True)                 # (1, HW)
        max_row = jnp.max(acc_m, axis=0, keepdims=True).astype(jnp.float32)
        rem_start = nfull * R
    else:
        first = x_ref[0, 0:1, :].astype(jnp.float32)
        sum_row = first
        max_row = first
        rem_start = 1
    for c in range(rem_start, C):                   # < R leftover channels
        row = x_ref[0, c:c + 1, :].astype(jnp.float32)
        sum_row = sum_row + row
        max_row = jnp.maximum(max_row, row)
    avg_row = sum_row * (1.0 / C)

    flat_ref[0:1, :] = avg_row                      # aligned full-width stores
    flat_ref[1:2, :] = max_row

    # ---- 2) Stage the two maps into the H-padded (H, W) conv scratch. -------
    # Zero only the 2*PAD border rows the taps read (interior is rewritten
    # every step; the scratch persists across grid iterations and with
    # "parallel" semantics step 0 may not run on every core, so re-zero each
    # step -- 2*2*PAD*W elements, negligible).
    zb = jnp.zeros((2, PAD, W), jnp.float32)
    pad_ref[:, PAD_TOP - PAD:PAD_TOP, :] = zb
    pad_ref[:, PAD_TOP + H:PAD_TOP + H + PAD, :] = zb
    for h in range(H):                              # O(H*W) relayout, flat -> 2D
        pad_ref[0, PAD_TOP + h:PAD_TOP + h + 1, :] = flat_ref[0:1, h * W:(h + 1) * W]
        pad_ref[1, PAD_TOP + h:PAD_TOP + h + 1, :] = flat_ref[1:2, h * W:(h + 1) * W]

    # ---- 3) 7x7 conv (2 -> 1 channel, no bias), low vreg pressure. ----------
    # For each kw: build the per-kw partial (14 FMAs over c, kh with sublane-
    # offset tap reads), then immediately fold it into the accumulator with a
    # lane roll (XLU slot) + edge mask -> only acc/part/slab (H, W) temps live.
    lane = lax.broadcasted_iota(jnp.int32, (H, W), 1)
    acc = jnp.zeros((H, W), jnp.float32)
    for kw in range(KSIZE):
        part = jnp.zeros((H, W), jnp.float32)
        for c in range(2):
            base = c * KSIZE * KSIZE + kw
            for kh in range(KSIZE):
                r0 = PAD_TOP - PAD + kh             # tap rows start at 5 + kh
                slab = pad_ref[c, r0:r0 + H, :]     # (H, W)
                part = part + w_ref[base + kh * KSIZE] * slab
        d = kw - PAD                                # in [-3, 3]
        if d == 0:
            acc = acc + part
        else:
            shifted = pltpu.roll(part, (-d) % W, axis=1)   # shifted[w] = part[w+d]
            valid = jnp.logical_and(lane + d >= 0, lane + d < W)
            acc = acc + jnp.where(valid, shifted, 0.0)

    attn = jax.nn.sigmoid(acc)                      # (H, W) f32
    for h in range(H):                              # back to the flat layout
        flat_ref[2:3, h * W:(h + 1) * W] = attn[h:h + 1, :]

    # ---- 4) Modulate: out = x * sigmoid(conv), chunked, in the input dtype. -
    a_cast = flat_ref[2:3, :].astype(o_ref.dtype)   # cast attn once
    CB = _MOD_CHUNK
    nblk = C // CB
    if nblk <= _UNROLL_MAX:
        for b in range(nblk):
            xb = x_ref[0, b * CB:(b + 1) * CB, :]
            o_ref[0, b * CB:(b + 1) * CB, :] = (xb * a_cast).astype(o_ref.dtype)
    else:
        def mod_body(b, carry):
            off = pl.multiple_of(b * CB, CB)
            xb = x_ref[0, pl.ds(off, CB), :]
            o_ref[0, pl.ds(off, CB), :] = (xb * a_cast).astype(o_ref.dtype)
            return carry
        lax.fori_loop(0, nblk, mod_body, 0)
    for c in range(nblk * CB, C):                   # < CB leftover channels
        xr = x_ref[0, c:c + 1, :]
        o_ref[0, c:c + 1, :] = (xr * a_cast).astype(o_ref.dtype)


def spatial_attention(x, weight):
    """x: (N, C, H, W); weight: (1, 2, KSIZE, KSIZE) float32 (OIHW)."""
    N, C, H, W = x.shape
    HW = H * W
    w_flat = weight.astype(jnp.float32).reshape(-1)          # (2*KSIZE*KSIZE,)
    x_flat = x.reshape(N, C, HW)                             # free bitcast in XLA

    # H-padded conv scratch: aligned top pad, >= PAD bottom pad, rows rounded
    # to a sublane multiple.
    HP = (PAD_TOP + H + PAD + 7) // 8 * 8

    # Explicit VMEM budget: v5e's 16 MiB default scoped limit rejects/spills
    # production channel counts otherwise; cap at v7x's 64 MiB physical per TC.
    itemsize = jnp.dtype(x.dtype).itemsize
    block_bytes = C * HW * itemsize
    scratch_bytes = (2 * HP * W + 3 * HW) * 4
    est = 2 * 2 * block_bytes + scratch_bytes + (8 << 20)    # dbl-buffered in+out
    vmem_limit = int(min(max(est, 32 << 20), 64 << 20))

    kernel = functools.partial(_spatial_attention_kernel, H=H, W=W)

    # TODO(synk): when 4*C*H*W*itemsize approaches the VMEM budget (v7x:
    # 64 MiB/TC), add an H-tile grid axis with a +-PAD-row halo (overlapping
    # blocks) and make it the parallel axis when N == 1 so both v7x TensorCores
    # stay busy; reduce/modulate tile trivially in H.
    # TODO(synk): optionally compute the channel sum on the (idle) MXU as
    # ones(1, C) @ x_flat, and use pipeline_mode=pl.Buffered(3) on the x
    # in_spec on v7x where the kernel is HBM-bound.
    out_flat = pl.pallas_call(
        kernel,
        out_shape=jax.ShapeDtypeStruct((N, C, HW), x.dtype),
        grid_spec=pltpu.PrefetchScalarGridSpec(
            num_scalar_prefetch=0,
            grid=(N,),
            in_specs=[
                pl.BlockSpec(memory_space=pltpu.MemorySpace.SMEM),   # weight
                pl.BlockSpec((1, C, HW), lambda n: (n, 0, 0)),       # x (flat)
            ],
            out_specs=pl.BlockSpec((1, C, HW), lambda n: (n, 0, 0)),
            scratch_shapes=[
                pltpu.VMEM((2, HP, W), jnp.float32),   # H-padded avg/max maps
                pltpu.VMEM((3, HW), jnp.float32),      # flat avg / max / attn
            ],
        ),
        compiler_params=pltpu.CompilerParams(
            dimension_semantics=("parallel",),         # batch axis has no carry
            vmem_limit_bytes=vmem_limit,
        ),
    )(w_flat, x_flat)
    return out_flat.reshape(N, C, H, W)


def spatial_attention_ref(x, weight):
    """Pure-JAX reference mirroring the PyTorch forward exactly."""
    avg_out = jnp.mean(x, axis=1, keepdims=True)
    max_out = jnp.max(x, axis=1, keepdims=True)
    cat = jnp.concatenate([avg_out, max_out], axis=1)
    out = lax.conv_general_dilated(
        cat, weight,
        window_strides=(1, 1),
        padding=((PAD, PAD), (PAD, PAD)),
        dimension_numbers=("NCHW", "OIHW", "NCHW"),
    )
    return x * jax.nn.sigmoid(out)


if __name__ == "__main__":
    key = jax.random.PRNGKey(0)
    kx, kw = jax.random.split(key)

    # Small shapes consistent with the module: NCHW input, Conv2d(2, 1, 7, pad=3).
    N, C, H, W = 2, 4, 16, 16
    x = jax.random.normal(kx, (N, C, H, W), dtype=jnp.float32)
    # Deterministic synthetic weight (kaiming-ish scale), shape (out=1, in=2, 7, 7).
    weight = jax.random.normal(kw, (1, 2, KSIZE, KSIZE), dtype=jnp.float32) * 0.1

    out = spatial_attention(x, weight)
    out = jax.block_until_ready(out)

    ref = spatial_attention_ref(x, weight)
    assert out.shape == x.shape and out.dtype == x.dtype
    assert jnp.allclose(out, ref, atol=1e-5, rtol=1e-5), (
        f"max abs err = {jnp.max(jnp.abs(out - ref))}"
    )
    print("KERNEL_OK")
</pallas_src>

<mosaic_0001>
module attributes {stable_mosaic.version = 11 : i64} {
  func.func @_spatial_attention_kernel(%arg0: i32, %arg1: memref<98xf32, #tpu.memory_space<smem>>, %arg2: memref<1x4x256xf32, #tpu.memory_space<vmem>>, %arg3: memref<1x4x256xf32, #tpu.memory_space<vmem>>, %arg4: memref<2x32x16xf32, #tpu.memory_space<vmem>>, %arg5: memref<3x256xf32, #tpu.memory_space<vmem>>) attributes {dimension_semantics = [#tpu.dimension_semantics<parallel>], iteration_bounds = array<i64: 2>, scalar_prefetch = 0 : i64, scratch_operands = 2 : i64, tpu.core_type = #tpu.core_type<tc>, window_params = [{transform_indices = @transform_0, window_bounds = array<i64: 98>}, {transform_indices = @transform_1, window_bounds = array<i64: 1, 4, 256>}, {transform_indices = @transform_2, window_bounds = array<i64: 1, 4, 256>}]} {
    %c0 = arith.constant 0 : index
    %c0_0 = arith.constant 0 : index
    %c0_1 = arith.constant 0 : index
    %0 = vector.load %arg2[%c0, %c0_0, %c0_1] : memref<1x4x256xf32, #tpu.memory_space<vmem>>, vector<1x1x256xf32>
    %1 = vector.shape_cast %0 : vector<1x1x256xf32> to vector<1x256xf32>
    %c0_2 = arith.constant 0 : index
    %c1 = arith.constant 1 : index
    %c0_3 = arith.constant 0 : index
    %2 = vector.load %arg2[%c0_2, %c1, %c0_3] : memref<1x4x256xf32, #tpu.memory_space<vmem>>, vector<1x1x256xf32>
    %3 = vector.shape_cast %2 : vector<1x1x256xf32> to vector<1x256xf32>
    %4 = arith.addf %1, %3 : vector<1x256xf32>
    %5 = arith.maximumf %1, %3 : vector<1x256xf32>
    %c0_4 = arith.constant 0 : index
    %c2 = arith.constant 2 : index
    %c0_5 = arith.constant 0 : index
    %6 = vector.load %arg2[%c0_4, %c2, %c0_5] : memref<1x4x256xf32, #tpu.memory_space<vmem>>, vector<1x1x256xf32>
    %7 = vector.shape_cast %6 : vector<1x1x256xf32> to vector<1x256xf32>
    %8 = arith.addf %4, %7 : vector<1x256xf32>
    %9 = arith.maximumf %5, %7 : vector<1x256xf32>
    %c0_6 = arith.constant 0 : index
    %c3 = arith.constant 3 : index
    %c0_7 = arith.constant 0 : index
    %10 = vector.load %arg2[%c0_6, %c3, %c0_7] : memref<1x4x256xf32, #tpu.memory_space<vmem>>, vector<1x1x256xf32>
    %11 = vector.shape_cast %10 : vector<1x1x256xf32> to vector<1x256xf32>
    %12 = arith.addf %8, %11 : vector<1x256xf32>
    %13 = arith.maximumf %9, %11 : vector<1x256xf32>
    %cst = arith.constant 2.500000e-01 : f32
    %14 = vector.broadcast %cst : f32 to vector<1x256xf32>
    %15 = arith.mulf %12, %14 : vector<1x256xf32>
    %c0_8 = arith.constant 0 : index
    %c0_9 = arith.constant 0 : index
    %16 = vector.load %arg5[%c0_8, %c0_9] : memref<3x256xf32, #tpu.memory_space<vmem>>, vector<1x256xf32>
    tpu.vector_store %arg5[%c0_8, %c0_9], %15 {strides = array<i32>} : memref<3x256xf32, #tpu.memory_space<vmem>>, vector<1x256xf32>,
    %c1_10 = arith.constant 1 : index
    %c0_11 = arith.constant 0 : index
    %17 = vector.load %arg5[%c1_10, %c0_11] : memref<3x256xf32, #tpu.memory_space<vmem>>, vector<1x256xf32>
    tpu.vector_store %arg5[%c1_10, %c0_11], %13 {strides = array<i32>} : memref<3x256xf32, #tpu.memory_space<vmem>>, vector<1x256xf32>,
    %cst_12 = arith.constant 0.000000e+00 : f32
    %18 = vector.broadcast %cst_12 : f32 to vector<2x3x16xf32>
    %c0_13 = arith.constant 0 : index
    %c5 = arith.constant 5 : index
    %c0_14 = arith.constant 0 : index
    %19 = vector.load %arg4[%c0_13, %c5, %c0_14] : memref<2x32x16xf32, #tpu.memory_space<vmem>>, vector<2x3x16xf32>
    tpu.vector_store %arg4[%c0_13, %c5, %c0_14], %18 {strides = array<i32>} : memref<2x32x16xf32, #tpu.memory_space<vmem>>, vector<2x3x16xf32>,
    %c0_15 = arith.constant 0 : index
    %c24 = arith.constant 24 : index
    %c0_16 = arith.constant 0 : index
    %20 = vector.load %arg4[%c0_15, %c24, %c0_16] : memref<2x32x16xf32, #tpu.memory_space<vmem>>, vector<2x3x16xf32>
    tpu.vector_store %arg4[%c0_15, %c24, %c0_16], %18 {strides = array<i32>} : memref<2x32x16xf32, #tpu.memory_space<vmem>>, vector<2x3x16xf32>,
    %c0_17 = arith.constant 0 : index
    %c0_18 = arith.constant 0 : index
    %21 = vector.load %arg5[%c0_17, %c0_18] : memref<3x256xf32, #tpu.memory_space<vmem>>, vector<1x16xf32>
    %c0_19 = arith.constant 0 : index
    %c8 = arith.constant 8 : index
    %c0_20 = arith.constant 0 : index
    %22 = vector.load %arg4[%c0_19, %c8, %c0_20] : memref<2x32x16xf32, #tpu.memory_space<vmem>>, vector<1x1x16xf32>
    %23 = vector.shape_cast %22 : vector<1x1x16xf32> to vector<1x16xf32>
    %24 = vector.shape_cast %21 : vector<1x16xf32> to vector<1x1x16xf32>
    tpu.vector_store %arg4[%c0_19, %c8, %c0_20], %24 {strides = array<i32>} : memref<2x32x16xf32, #tpu.memory_space<vmem>>, vector<1x1x16xf32>,
    %c1_21 = arith.constant 1 : index
    %c0_22 = arith.constant 0 : index
    %25 = vector.load %arg5[%c1_21, %c0_22] : memref<3x256xf32, #tpu.memory_space<vmem>>, vector<1x16xf32>
    %c1_23 = arith.constant 1 : index
    %c8_24 = arith.constant 8 : index
    %c0_25 = arith.constant 0 : index
    %26 = vector.load %arg4[%c1_23, %c8_24, %c0_25] : memref<2x32x16xf32, #tpu.memory_space<vmem>>, vector<1x1x16xf32>
    %27 = vector.shape_cast %26 : vector<1x1x16xf32> to vector<1x16xf32>
    %28 = vector.shape_cast %25 : vector<1x16xf32> to vector<1x1x16xf32>
    tpu.vector_store %arg4[%c1_23, %c8_24, %c0_25], %28 {strides = array<i32>} : memref<2x32x16xf32, #tpu.memory_space<vmem>>, vector<1x1x16xf32>,
    %c0_26 = arith.constant 0 : index
    %c16 = arith.constant 16 : index
    %29 = vector.load %arg5[%c0_26, %c16] : memref<3x256xf32, #tpu.memory_space<vmem>>, vector<1x16xf32>
    %c0_27 = arith.constant 0 : index
    %c9 = arith.constant 9 : index
    %c0_28 = arith.constant 0 : index
    %30 = vector.load %arg4[%c0_27, %c9, %c0_28] : memref<2x32x16xf32, #tpu.memory_space<vmem>>, vector<1x1x16xf32>
    %31 = vector.shape_cast %30 : vector<1x1x16xf32> to vector<1x16xf32>
    %32 = vector.shape_cast %29 : vector<1x16xf32> to vector<1x1x16xf32>
    tpu.vector_store %arg4[%c0_27, %c9, %c0_28], %32 {strides = array<i32>} : memref<2x32x16xf32, #tpu.memory_space<vmem>>, vector<1x1x16xf32>,
    %c1_29 = arith.constant 1 : index
    %c16_30 = arith.constant 16 : index
    %33 = vector.load %arg5[%c1_29, %c16_30] : memref<3x256xf32, #tpu.memory_space<vmem>>, vector<1x16xf32>
    %c1_31 = arith.constant 1 : index
    %c9_32 = arith.constant 9 : index
    %c0_33 = arith.constant 0 : index
    %34 = vector.load %arg4[%c1_31, %c9_32, %c0_33] : memref<2x32x16xf32, #tpu.memory_space<vmem>>, vector<1x1x16xf32>
    %35 = vector.shape_cast %34 : vector<1x1x16xf32> to vector<1x16xf32>
    %36 = vector.shape_cast %33 : vector<1x16xf32> to vector<1x1x16xf32>
    tpu.vector_store %arg4[%c1_31, %c9_32, %c0_33], %36 {strides = array<i32>} : memref<2x32x16xf32, #tpu.memory_space<vmem>>, vector<1x1x16xf32>,
    %c0_34 = arith.constant 0 : index
    %c32 = arith.constant 32 : index
    %37 = vector.load %arg5[%c0_34, %c32] : memref<3x256xf32, #tpu.memory_space<vmem>>, vector<1x16xf32>
    %c0_35 = arith.constant 0 : index
    %c10 = arith.constant 10 : index
    %c0_36 = arith.constant 0 : index
    %38 = vector.load %arg4[%c0_35, %c10, %c0_36] : memref<2x32x16xf32, #tpu.memory_space<vmem>>, vector<1x1x16xf32>
    %39 = vector.shape_cast %38 : vector<1x1x16xf32> to vector<1x16xf32>
    %40 = vector.shape_cast %37 : vector<1x16xf32> to vector<1x1x16xf32>
    tpu.vector_store %arg4[%c0_35, %c10, %c0_36], %40 {strides = array<i32>} : memref<2x32x16xf32, #tpu.memory_space<vmem>>, vector<1x1x16xf32>,
    %c1_37 = arith.constant 1 : index
    %c32_38 = arith.constant 32 : index
    %41 = vector.load %arg5[%c1_37, %c32_38] : memref<3x256xf32, #tpu.memory_space<vmem>>, vector<1x16xf32>
    %c1_39 = arith.constant 1 : index
    %c10_40 = arith.constant 10 : index
    %c0_41 = arith.constant 0 : index
    %42 = vector.load %arg4[%c1_39, %c10_40, %c0_41] : memref<2x32x16xf32, #tpu.memory_space<vmem>>, vector<1x1x16xf32>
    %43 = vector.shape_cast %42 : vector<1x1x16xf32> to vector<1x16xf32>
    %44 = vector.shape_cast %41 : vector<1x16xf32> to vector<1x1x16xf32>
    tpu.vector_store %arg4[%c1_39, %c10_40, %c0_41], %44 {strides = array<i32>} : memref<2x32x16xf32, #tpu.memory_space<vmem>>, vector<1x1x16xf32>,
    %c0_42 = arith.constant 0 : index
    %c48 = arith.constant 48 : index
    %45 = vector.load %arg5[%c0_42, %c48] : memref<3x256xf32, #tpu.memory_space<vmem>>, vector<1x16xf32>
    %c0_43 = arith.constant 0 : index
    %c11 = arith.constant 11 : index
    %c0_44 = arith.constant 0 : index
    %46 = vector.load %arg4[%c0_43, %c11, %c0_44] : memref<2x32x16xf32, #tpu.memory_space<vmem>>, vector<1x1x16xf32>
    %47 = vector.shape_cast %46 : vector<1x1x16xf32> to vector<1x16xf32>
    %48 = vector.shape_cast %45 : vector<1x16xf32> to vector<1x1x16xf32>
    tpu.vector_store %arg4[%c0_43, %c11, %c0_44], %48 {strides = array<i32>} : memref<2x32x16xf32, #tpu.memory_space<vmem>>, vector<1x1x16xf32>,
    %c1_45 = arith.constant 1 : index
    %c48_46 = arith.constant 48 : index
    %49 = vector.load %arg5[%c1_45, %c48_46] : memref<3x256xf32, #tpu.memory_space<vmem>>, vector<1x16xf32>
    %c1_47 = arith.constant 1 : index
    %c11_48 = arith.constant 11 : index
    %c0_49 = arith.constant 0 : index
    %50 = vector.load %arg4[%c1_47, %c11_48, %c0_49] : memref<2x32x16xf32, #tpu.memory_space<vmem>>, vector<1x1x16xf32>
    %51 = vector.shape_cast %50 : vector<1x1x16xf32> to vector<1x16xf32>
    %52 = vector.shape_cast %49 : vector<1x16xf32> to vector<1x1x16xf32>
    tpu.vector_store %arg4[%c1_47, %c11_48, %c0_49], %52 {strides = array<i32>} : memref<2x32x16xf32, #tpu.memory_space<vmem>>, vector<1x1x16xf32>,
    %c0_50 = arith.constant 0 : index
    %c64 = arith.constant 64 : index
    %53 = vector.load %arg5[%c0_50, %c64] : memref<3x256xf32, #tpu.memory_space<vmem>>, vector<1x16xf32>
    %c0_51 = arith.constant 0 : index
    %c12 = arith.constant 12 : index
    %c0_52 = arith.constant 0 : index
    %54 = vector.load %arg4[%c0_51, %c12, %c0_52] : memref<2x32x16xf32, #tpu.memory_space<vmem>>, vector<1x1x16xf32>
    %55 = vector.shape_cast %54 : vector<1x1x16xf32> to vector<1x16xf32>
    %56 = vector.shape_cast %53 : vector<1x16xf32> to vector<1x1x16xf32>
    tpu.vector_store %arg4[%c0_51, %c12, %c0_52], %56 {strides = array<i32>} : memref<2x32x16xf32, #tpu.memory_space<vmem>>, vector<1x1x16xf32>,
    %c1_53 = arith.constant 1 : index
    %c64_54 = arith.constant 64 : index
    %57 = vector.load %arg5[%c1_53, %c64_54] : memref<3x256xf32, #tpu.memory_space<vmem>>, vector<1x16xf32>
    %c1_55 = arith.constant 1 : index
    %c12_56 = arith.constant 12 : index
    %c0_57 = arith.constant 0 : index
    %58 = vector.load %arg4[%c1_55, %c12_56, %c0_57] : memref<2x32x16xf32, #tpu.memory_space<vmem>>, vector<1x1x16xf32>
    %59 = vector.shape_cast %58 : vector<1x1x16xf32> to vector<1x16xf32>
    %60 = vector.shape_cast %57 : vector<1x16xf32> to vector<1x1x16xf32>
    tpu.vector_store %arg4[%c1_55, %c12_56, %c0_57], %60 {strides = array<i32>} : memref<2x32x16xf32, #tpu.memory_space<vmem>>, vector<1x1x16xf32>,
    %c0_58 = arith.constant 0 : index
    %c80 = arith.constant 80 : index
    %61 = vector.load %arg5[%c0_58, %c80] : memref<3x256xf32, #tpu.memory_space<vmem>>, vector<1x16xf32>
    %c0_59 = arith.constant 0 : index
    %c13 = arith.constant 13 : index
    %c0_60 = arith.constant 0 : index
    %62 = vector.load %arg4[%c0_59, %c13, %c0_60] : memref<2x32x16xf32, #tpu.memory_space<vmem>>, vector<1x1x16xf32>
    %63 = vector.shape_cast %62 : vector<1x1x16xf32> to vector<1x16xf32>
    %64 = vector.shape_cast %61 : vector<1x16xf32> to vector<1x1x16xf32>
    tpu.vector_store %arg4[%c0_59, %c13, %c0_60], %64 {strides = array<i32>} : memref<2x32x16xf32, #tpu.memory_space<vmem>>, vector<1x1x16xf32>,
    %c1_61 = arith.constant 1 : index
    %c80_62 = arith.constant 80 : index
    %65 = vector.load %arg5[%c1_61, %c80_62] : memref<3x256xf32, #tpu.memory_space<vmem>>, vector<1x16xf32>
    %c1_63 = arith.constant 1 : index
    %c13_64 = arith.constant 13 : index
    %c0_65 = arith.constant 0 : index
    %66 = vector.load %arg4[%c1_63, %c13_64, %c0_65] : memref<2x32x16xf32, #tpu.memory_space<vmem>>, vector<1x1x16xf32>
    %67 = vector.shape_cast %66 : vector<1x1x16xf32> to vector<1x16xf32>
    %68 = vector.shape_cast %65 : vector<1x16xf32> to vector<1x1x16xf32>
    tpu.vector_store %arg4[%c1_63, %c13_64, %c0_65], %68 {strides = array<i32>} : memref<2x32x16xf32, #tpu.memory_space<vmem>>, vector<1x1x16xf32>,
    %c0_66 = arith.constant 0 : index
    %c96 = arith.constant 96 : index
    %69 = vector.load %arg5[%c0_66, %c96] : memref<3x256xf32, #tpu.memory_space<vmem>>, vector<1x16xf32>
    %c0_67 = arith.constant 0 : index
    %c14 = arith.constant 14 : index
    %c0_68 = arith.constant 0 : index
    %70 = vector.load %arg4[%c0_67, %c14, %c0_68] : memref<2x32x16xf32, #tpu.memory_space<vmem>>, vector<1x1x16xf32>
    %71 = vector.shape_cast %70 : vector<1x1x16xf32> to vector<1x16xf32>
    %72 = vector.shape_cast %69 : vector<1x16xf32> to vector<1x1x16xf32>
    tpu.vector_store %arg4[%c0_67, %c14, %c0_68], %72 {strides = array<i32>} : memref<2x32x16xf32, #tpu.memory_space<vmem>>, vector<1x1x16xf32>,
    %c1_69 = arith.constant 1 : index
    %c96_70 = arith.constant 96 : index
    %73 = vector.load %arg5[%c1_69, %c96_70] : memref<3x256xf32, #tpu.memory_space<vmem>>, vector<1x16xf32>
    %c1_71 = arith.constant 1 : index
    %c14_72 = arith.constant 14 : index
    %c0_73 = arith.constant 0 : index
    %74 = vector.load %arg4[%c1_71, %c14_72, %c0_73] : memref<2x32x16xf32, #tpu.memory_space<vmem>>, vector<1x1x16xf32>
    %75 = vector.shape_cast %74 : vector<1x1x16xf32> to vector<1x16xf32>
    %76 = vector.shape_cast %73 : vector<1x16xf32> to vector<1x1x16xf32>
    tpu.vector_store %arg4[%c1_71, %c14_72, %c0_73], %76 {strides = array<i32>} : memref<2x32x16xf32, #tpu.memory_space<vmem>>, vector<1x1x16xf32>,
    %c0_74 = arith.constant 0 : index
    %c112 = arith.constant 112 : index
    %77 = vector.load %arg5[%c0_74, %c112] : memref<3x256xf32, #tpu.memory_space<vmem>>, vector<1x16xf32>
    %c0_75 = arith.constant 0 : index
    %c15 = arith.constant 15 : index
    %c0_76 = arith.constant 0 : index
    %78 = vector.load %arg4[%c0_75, %c15, %c0_76] : memref<2x32x16xf32, #tpu.memory_space<vmem>>, vector<1x1x16xf32>
    %79 = vector.shape_cast %78 : vector<1x1x16xf32> to vector<1x16xf32>
    %80 = vector.shape_cast %77 : vector<1x16xf32> to vector<1x1x16xf32>
    tpu.vector_store %arg4[%c0_75, %c15, %c0_76], %80 {strides = array<i32>} : memref<2x32x16xf32, #tpu.memory_space<vmem>>, vector<1x1x16xf32>,
    %c1_77 = arith.constant 1 : index
    %c112_78 = arith.constant 112 : index
    %81 = vector.load %arg5[%c1_77, %c112_78] : memref<3x256xf32, #tpu.memory_space<vmem>>, vector<1x16xf32>
    %c1_79 = arith.constant 1 : index
    %c15_80 = arith.constant 15 : index
    %c0_81 = arith.constant 0 : index
    %82 = vector.load %arg4[%c1_79, %c15_80, %c0_81] : memref<2x32x16xf32, #tpu.memory_space<vmem>>, vector<1x1x16xf32>
    %83 = vector.shape_cast %82 : vector<1x1x16xf32> to vector<1x16xf32>
    %84 = vector.shape_cast %81 : vector<1x16xf32> to vector<1x1x16xf32>
    tpu.vector_store %arg4[%c1_79, %c15_80, %c0_81], %84 {strides = array<i32>} : memref<2x32x16xf32, #tpu.memory_space<vmem>>, vector<1x1x16xf32>,
    %c0_82 = arith.constant 0 : index
    %c128 = arith.constant 128 : index
    %85 = vector.load %arg5[%c0_82, %c128] : memref<3x256xf32, #tpu.memory_space<vmem>>, vector<1x16xf32>
    %c0_83 = arith.constant 0 : index
    %c16_84 = arith.constant 16 : index
    %c0_85 = arith.constant 0 : index
    %86 = vector.load %arg4[%c0_83, %c16_84, %c0_85] : memref<2x32x16xf32, #tpu.memory_space<vmem>>, vector<1x1x16xf32>
    %87 = vector.shape_cast %86 : vector<1x1x16xf32> to vector<1x16xf32>
    %88 = vector.shape_cast %85 : vector<1x16xf32> to vector<1x1x16xf32>
    tpu.vector_store %arg4[%c0_83, %c16_84, %c0_85], %88 {strides = array<i32>} : memref<2x32x16xf32, #tpu.memory_space<vmem>>, vector<1x1x16xf32>,
    %c1_86 = arith.constant 1 : index
    %c128_87 = arith.constant 128 : index
    %89 = vector.load %arg5[%c1_86, %c128_87] : memref<3x256xf32, #tpu.memory_space<vmem>>, vector<1x16xf32>
    %c1_88 = arith.constant 1 : index
    %c16_89 = arith.constant 16 : index
    %c0_90 = arith.constant 0 : index
    %90 = vector.load %arg4[%c1_88, %c16_89, %c0_90] : memref<2x32x16xf32, #tpu.memory_space<vmem>>, vector<1x1x16xf32>
    %91 = vector.shape_cast %90 : vector<1x1x16xf32> to vector<1x16xf32>
    %92 = vector.shape_cast %89 : vector<1x16xf32> to vector<1x1x16xf32>
    tpu.vector_store %arg4[%c1_88, %c16_89, %c0_90], %92 {strides = array<i32>} : memref<2x32x16xf32, #tpu.memory_space<vmem>>, vector<1x1x16xf32>,
    %c0_91 = arith.constant 0 : index
    %c144 = arith.constant 144 : index
    %93 = vector.load %arg5[%c0_91, %c144] : memref<3x256xf32, #tpu.memory_space<vmem>>, vector<1x16xf32>
    %c0_92 = arith.constant 0 : index
    %c17 = arith.constant 17 : index
    %c0_93 = arith.constant 0 : index
    %94 = vector.load %arg4[%c0_92, %c17, %c0_93] : memref<2x32x16xf32, #tpu.memory_space<vmem>>, vector<1x1x16xf32>
    %95 = vector.shape_cast %94 : vector<1x1x16xf32> to vector<1x16xf32>
    %96 = vector.shape_cast %93 : vector<1x16xf32> to vector<1x1x16xf32>
    tpu.vector_store %arg4[%c0_92, %c17, %c0_93], %96 {strides = array<i32>} : memref<2x32x16xf32, #tpu.memory_space<vmem>>, vector<1x1x16xf32>,
    %c1_94 = arith.constant 1 : index
    %c144_95 = arith.constant 144 : index
    %97 = vector.load %arg5[%c1_94, %c144_95] : memref<3x256xf32, #tpu.memory_space<vmem>>, vector<1x16xf32>
    %c1_96 = arith.constant 1 : index
    %c17_97 = arith.constant 17 : index
    %c0_98 = arith.constant 0 : index
    %98 = vector.load %arg4[%c1_96, %c17_97, %c0_98] : memref<2x32x16xf32, #tpu.memory_space<vmem>>, vector<1x1x16xf32>
    %99 = vector.shape_cast %98 : vector<1x1x16xf32> to vector<1x16xf32>
    %100 = vector.shape_cast %97 : vector<1x16xf32> to vector<1x1x16xf32>
    tpu.vector_store %arg4[%c1_96, %c17_97, %c0_98], %100 {strides = array<i32>} : memref<2x32x16xf32, #tpu.memory_space<vmem>>, vector<1x1x16xf32>,
    %c0_99 = arith.constant 0 : index
    %c160 = arith.constant 160 : index
    %101 = vector.load %arg5[%c0_99, %c160] : memref<3x256xf32, #tpu.memory_space<vmem>>, vector<1x16xf32>
    %c0_100 = arith.constant 0 : index
    %c18 = arith.constant 18 : index
    %c0_101 = arith.constant 0 : index
    %102 = vector.load %arg4[%c0_100, %c18, %c0_101] : memref<2x32x16xf32, #tpu.memory_space<vmem>>, vector<1x1x16xf32>
    %103 = vector.shape_cast %102 : vector<1x1x16xf32> to vector<1x16xf32>
    %104 = vector.shape_cast %101 : vector<1x16xf32> to vector<1x1x16xf32>
    tpu.vector_store %arg4[%c0_100, %c18, %c0_101], %104 {strides = array<i32>} : memref<2x32x16xf32, #tpu.memory_space<vmem>>, vector<1x1x16xf32>,
    %c1_102 = arith.constant 1 : index
    %c160_103 = arith.constant 160 : index
    %105 = vector.load %arg5[%c1_102, %c160_103] : memref<3x256xf32, #tpu.memory_space<vmem>>, vector<1x16xf32>
    %c1_104 = arith.constant 1 : index
    %c18_105 = arith.constant 18 : index
    %c0_106 = arith.constant 0 : index
    %106 = vector.load %arg4[%c1_104, %c18_105, %c0_106] : memref<2x32x16xf32, #tpu.memory_space<vmem>>, vector<1x1x16xf32>
    %107 = vector.shape_cast %106 : vector<1x1x16xf32> to vector<1x16xf32>
    %108 = vector.shape_cast %105 : vector<1x16xf32> to vector<1x1x16xf32>
    tpu.vector_store %arg4[%c1_104, %c18_105, %c0_106], %108 {strides = array<i32>} : memref<2x32x16xf32, #tpu.memory_space<vmem>>, vector<1x1x16xf32>,
    %c0_107 = arith.constant 0 : index
    %c176 = arith.constant 176 : index
    %109 = vector.load %arg5[%c0_107, %c176] : memref<3x256xf32, #tpu.memory_space<vmem>>, vector<1x16xf32>
    %c0_108 = arith.constant 0 : index
    %c19 = arith.constant 19 : index
    %c0_109 = arith.constant 0 : index
    %110 = vector.load %arg4[%c0_108, %c19, %c0_109] : memref<2x32x16xf32, #tpu.memory_space<vmem>>, vector<1x1x16xf32>
    %111 = vector.shape_cast %110 : vector<1x1x16xf32> to vector<1x16xf32>
    %112 = vector.shape_cast %109 : vector<1x16xf32> to vector<1x1x16xf32>
    tpu.vector_store %arg4[%c0_108, %c19, %c0_109], %112 {strides = array<i32>} : memref<2x32x16xf32, #tpu.memory_space<vmem>>, vector<1x1x16xf32>,
    %c1_110 = arith.constant 1 : index
    %c176_111 = arith.constant 176 : index
    %113 = vector.load %arg5[%c1_110, %c176_111] : memref<3x256xf32, #tpu.memory_space<vmem>>, vector<1x16xf32>
    %c1_112 = arith.constant 1 : index
    %c19_113 = arith.constant 19 : index
    %c0_114 = arith.constant 0 : index
    %114 = vector.load %arg4[%c1_112, %c19_113, %c0_114] : memref<2x32x16xf32, #tpu.memory_space<vmem>>, vector<1x1x16xf32>
    %115 = vector.shape_cast %114 : vector<1x1x16xf32> to vector<1x16xf32>
    %116 = vector.shape_cast %113 : vector<1x16xf32> to vector<1x1x16xf32>
    tpu.vector_store %arg4[%c1_112, %c19_113, %c0_114], %116 {strides = array<i32>} : memref<2x32x16xf32, #tpu.memory_space<vmem>>, vector<1x1x16xf32>,
    %c0_115 = arith.constant 0 : index
    %c192 = arith.constant 192 : index
    %117 = vector.load %arg5[%c0_115, %c192] : memref<3x256xf32, #tpu.memory_space<vmem>>, vector<1x16xf32>
    %c0_116 = arith.constant 0 : index
    %c20 = arith.constant 20 : index
    %c0_117 = arith.constant 0 : index
    %118 = vector.load %arg4[%c0_116, %c20, %c0_117] : memref<2x32x16xf32, #tpu.memory_space<vmem>>, vector<1x1x16xf32>
    %119 = vector.shape_cast %118 : vector<1x1x16xf32> to vector<1x16xf32>
    %120 = vector.shape_cast %117 : vector<1x16xf32> to vector<1x1x16xf32>
    tpu.vector_store %arg4[%c0_116, %c20, %c0_117], %120 {strides = array<i32>} : memref<2x32x16xf32, #tpu.memory_space<vmem>>, vector<1x1x16xf32>,
    %c1_118 = arith.constant 1 : index
    %c192_119 = arith.constant 192 : index
    %121 = vector.load %arg5[%c1_118, %c192_119] : memref<3x256xf32, #tpu.memory_space<vmem>>, vector<1x16xf32>
    %c1_120 = arith.constant 1 : index
    %c20_121 = arith.constant 20 : index
    %c0_122 = arith.constant 0 : index
    %122 = vector.load %arg4[%c1_120, %c20_121, %c0_122] : memref<2x32x16xf32, #tpu.memory_space<vmem>>, vector<1x1x16xf32>
    %123 = vector.shape_cast %122 : vector<1x1x16xf32> to vector<1x16xf32>
    %124 = vector.shape_cast %121 : vector<1x16xf32> to vector<1x1x16xf32>
    tpu.vector_store %arg4[%c1_120, %c20_121, %c0_122], %124 {strides = array<i32>} : memref<2x32x16xf32, #tpu.memory_space<vmem>>, vector<1x1x16xf32>,
    %c0_123 = arith.constant 0 : index
    %c208 = arith.constant 208 : index
    %125 = vector.load %arg5[%c0_123, %c208] : memref<3x256xf32, #tpu.memory_space<vmem>>, vector<1x16xf32>
    %c0_124 = arith.constant 0 : index
    %c21 = arith.constant 21 : index
    %c0_125 = arith.constant 0 : index
    %126 = vector.load %arg4[%c0_124, %c21, %c0_125] : memref<2x32x16xf32, #tpu.memory_space<vmem>>, vector<1x1x16xf32>
    %127 = vector.shape_cast %126 : vector<1x1x16xf32> to vector<1x16xf32>
    %128 = vector.shape_cast %125 : vector<1x16xf32> to vector<1x1x16xf32>
    tpu.vector_store %arg4[%c0_124, %c21, %c0_125], %128 {strides = array<i32>} : memref<2x32x16xf32, #tpu.memory_space<vmem>>, vector<1x1x16xf32>,
    %c1_126 = arith.constant 1 : index
    %c208_127 = arith.constant 208 : index
    %129 = vector.load %arg5[%c1_126, %c208_127] : memref<3x256xf32, #tpu.memory_space<vmem>>, vector<1x16xf32>
    %c1_128 = arith.constant 1 : index
    %c21_129 = arith.constant 21 : index
    %c0_130 = arith.constant 0 : index
    %130 = vector.load %arg4[%c1_128, %c21_129, %c0_130] : memref<2x32x16xf32, #tpu.memory_space<vmem>>, vector<1x1x16xf32>
    %131 = vector.shape_cast %130 : vector<1x1x16xf32> to vector<1x16xf32>
    %132 = vector.shape_cast %129 : vector<1x16xf32> to vector<1x1x16xf32>
    tpu.vector_store %arg4[%c1_128, %c21_129, %c0_130], %132 {strides = array<i32>} : memref<2x32x16xf32, #tpu.memory_space<vmem>>, vector<1x1x16xf32>,
    %c0_131 = arith.constant 0 : index
    %c224 = arith.constant 224 : index
    %133 = vector.load %arg5[%c0_131, %c224] : memref<3x256xf32, #tpu.memory_space<vmem>>, vector<1x16xf32>
    %c0_132 = arith.constant 0 : index
    %c22 = arith.constant 22 : index
    %c0_133 = arith.constant 0 : index
    %134 = vector.load %arg4[%c0_132, %c22, %c0_133] : memref<2x32x16xf32, #tpu.memory_space<vmem>>, vector<1x1x16xf32>
    %135 = vector.shape_cast %134 : vector<1x1x16xf32> to vector<1x16xf32>
    %136 = vector.shape_cast %133 : vector<1x16xf32> to vector<1x1x16xf32>
    tpu.vector_store %arg4[%c0_132, %c22, %c0_133], %136 {strides = array<i32>} : memref<2x32x16xf32, #tpu.memory_space<vmem>>, vector<1x1x16xf32>,
    %c1_134 = arith.constant 1 : index
    %c224_135 = arith.constant 224 : index
    %137 = vector.load %arg5[%c1_134, %c224_135] : memref<3x256xf32, #tpu.memory_space<vmem>>, vector<1x16xf32>
    %c1_136 = arith.constant 1 : index
    %c22_137 = arith.constant 22 : index
    %c0_138 = arith.constant 0 : index
    %138 = vector.load %arg4[%c1_136, %c22_137, %c0_138] : memref<2x32x16xf32, #tpu.memory_space<vmem>>, vector<1x1x16xf32>
    %139 = vector.shape_cast %138 : vector<1x1x16xf32> to vector<1x16xf32>
    %140 = vector.shape_cast %137 : vector<1x16xf32> to vector<1x1x16xf32>
    tpu.vector_store %arg4[%c1_136, %c22_137, %c0_138], %140 {strides = array<i32>} : memref<2x32x16xf32, #tpu.memory_space<vmem>>, vector<1x1x16xf32>,
    %c0_139 = arith.constant 0 : index
    %c240 = arith.constant 240 : index
    %141 = vector.load %arg5[%c0_139, %c240] : memref<3x256xf32, #tpu.memory_space<vmem>>, vector<1x16xf32>
    %c0_140 = arith.constant 0 : index
    %c23 = arith.constant 23 : index
    %c0_141 = arith.constant 0 : index
    %142 = vector.load %arg4[%c0_140, %c23, %c0_141] : memref<2x32x16xf32, #tpu.memory_space<vmem>>, vector<1x1x16xf32>
    %143 = vector.shape_cast %142 : vector<1x1x16xf32> to vector<1x16xf32>
    %144 = vector.shape_cast %141 : vector<1x16xf32> to vector<1x1x16xf32>
    tpu.vector_store %arg4[%c0_140, %c23, %c0_141], %144 {strides = array<i32>} : memref<2x32x16xf32, #tpu.memory_space<vmem>>, vector<1x1x16xf32>,
    %c1_142 = arith.constant 1 : index
    %c240_143 = arith.constant 240 : index
    %145 = vector.load %arg5[%c1_142, %c240_143] : memref<3x256xf32, #tpu.memory_space<vmem>>, vector<1x16xf32>
    %c1_144 = arith.constant 1 : index
    %c23_145 = arith.constant 23 : index
    %c0_146 = arith.constant 0 : index
    %146 = vector.load %arg4[%c1_144, %c23_145, %c0_146] : memref<2x32x16xf32, #tpu.memory_space<vmem>>, vector<1x1x16xf32>
    %147 = vector.shape_cast %146 : vector<1x1x16xf32> to vector<1x16xf32>
    %148 = vector.shape_cast %145 : vector<1x16xf32> to vector<1x1x16xf32>
    tpu.vector_store %arg4[%c1_144, %c23_145, %c0_146], %148 {strides = array<i32>} : memref<2x32x16xf32, #tpu.memory_space<vmem>>, vector<1x1x16xf32>,
    %149 = tpu.iota {dimensions = array<i32: 1>} : vector<16x16xi32>
    %cst_147 = arith.constant 0.000000e+00 : f32
    %150 = vector.broadcast %cst_147 : f32 to vector<16x16xf32>
    %cst_148 = arith.constant 0.000000e+00 : f32
    %151 = vector.broadcast %cst_148 : f32 to vector<16x16xf32>
    %c0_149 = arith.constant 0 : index
    %c5_150 = arith.constant 5 : index
    %c0_151 = arith.constant 0 : index
    %152 = vector.load %arg4[%c0_149, %c5_150, %c0_151] : memref<2x32x16xf32, #tpu.memory_space<vmem>>, vector<1x16x16xf32>
    %153 = vector.shape_cast %152 : vector<1x16x16xf32> to vector<16x16xf32>
    %c0_152 = arith.constant 0 : index
    %154 = memref.load %arg1[%c0_152] : memref<98xf32, #tpu.memory_space<smem>>
    %155 = vector.broadcast %154 : f32 to vector<16x16xf32>
    %156 = arith.mulf %155, %153 : vector<16x16xf32>
    %157 = arith.addf %151, %156 : vector<16x16xf32>
    %c0_153 = arith.constant 0 : index
    %c6 = arith.constant 6 : index
    %c0_154 = arith.constant 0 : index
    %158 = vector.load %arg4[%c0_153, %c6, %c0_154] : memref<2x32x16xf32, #tpu.memory_space<vmem>>, vector<1x16x16xf32>
    %159 = vector.shape_cast %158 : vector<1x16x16xf32> to vector<16x16xf32>
    %c7 = arith.constant 7 : index
    %160 = memref.load %arg1[%c7] : memref<98xf32, #tpu.memory_space<smem>>
    %161 = vector.broadcast %160 : f32 to vector<16x16xf32>
    %162 = arith.mulf %161, %159 : vector<16x16xf32>
    %163 = arith.addf %157, %162 : vector<16x16xf32>
    %c0_155 = arith.constant 0 : index
    %c7_156 = arith.constant 7 : index
    %c0_157 = arith.constant 0 : index
    %164 = vector.load %arg4[%c0_155, %c7_156, %c0_157] : memref<2x32x16xf32, #tpu.memory_space<vmem>>, vector<1x16x16xf32>
    %165 = vector.shape_cast %164 : vector<1x16x16xf32> to vector<16x16xf32>
    %c14_158 = arith.constant 14 : index
    %166 = memref.load %arg1[%c14_158] : memref<98xf32, #tpu.memory_space<smem>>
    %167 = vector.broadcast %166 : f32 to vector<16x16xf32>
    %168 = arith.mulf %167, %165 : vector<16x16xf32>
    %169 = arith.addf %163, %168 : vector<16x16xf32>
    %c0_159 = arith.constant 0 : index
    %c8_160 = arith.constant 8 : index
    %c0_161 = arith.constant 0 : index
    %170 = vector.load %arg4[%c0_159, %c8_160, %c0_161] : memref<2x32x16xf32, #tpu.memory_space<vmem>>, vector<1x16x16xf32>
    %171 = vector.shape_cast %170 : vector<1x16x16xf32> to vector<16x16xf32>
    %c21_162 = arith.constant 21 : index
    %172 = memref.load %arg1[%c21_162] : memref<98xf32, #tpu.memory_space<smem>>
    %173 = vector.broadcast %172 : f32 to vector<16x16xf32>
    %174 = arith.mulf %173, %171 : vector<16x16xf32>
    %175 = arith.addf %169, %174 : vector<16x16xf32>
    %c0_163 = arith.constant 0 : index
    %c9_164 = arith.constant 9 : index
    %c0_165 = arith.constant 0 : index
    %176 = vector.load %arg4[%c0_163, %c9_164, %c0_165] : memref<2x32x16xf32, #tpu.memory_space<vmem>>, vector<1x16x16xf32>
    %177 = vector.shape_cast %176 : vector<1x16x16xf32> to vector<16x16xf32>
    %c28 = arith.constant 28 : index
    %178 = memref.load %arg1[%c28] : memref<98xf32, #tpu.memory_space<smem>>
    %179 = vector.broadcast %178 : f32 to vector<16x16xf32>
    %180 = arith.mulf %179, %177 : vector<16x16xf32>
    %181 = arith.addf %175, %180 : vector<16x16xf32>
    %c0_166 = arith.constant 0 : index
    %c10_167 = arith.constant 10 : index
    %c0_168 = arith.constant 0 : index
    %182 = vector.load %arg4[%c0_166, %c10_167, %c0_168] : memref<2x32x16xf32, #tpu.memory_space<vmem>>, vector<1x16x16xf32>
    %183 = vector.shape_cast %182 : vector<1x16x16xf32> to vector<16x16xf32>
    %c35 = arith.constant 35 : index
    %184 = memref.load %arg1[%c35] : memref<98xf32, #tpu.memory_space<smem>>
    %185 = vector.broadcast %184 : f32 to vector<16x16xf32>
    %186 = arith.mulf %185, %183 : vector<16x16xf32>
    %187 = arith.addf %181, %186 : vector<16x16xf32>
    %c0_169 = arith.constant 0 : index
    %c11_170 = arith.constant 11 : index
    %c0_171 = arith.constant 0 : index
    %188 = vector.load %arg4[%c0_169, %c11_170, %c0_171] : memref<2x32x16xf32, #tpu.memory_space<vmem>>, vector<1x16x16xf32>
    %189 = vector.shape_cast %188 : vector<1x16x16xf32> to vector<16x16xf32>
    %c42 = arith.constant 42 : index
    %190 = memref.load %arg1[%c42] : memref<98xf32, #tpu.memory_space<smem>>
    %191 = vector.broadcast %190 : f32 to vector<16x16xf32>
    %192 = arith.mulf %191, %189 : vector<16x16xf32>
    %193 = arith.addf %187, %192 : vector<16x16xf32>
    %c1_172 = arith.constant 1 : index
    %c5_173 = arith.constant 5 : index
    %c0_174 = arith.constant 0 : index
    %194 = vector.load %arg4[%c1_172, %c5_173, %c0_174] : memref<2x32x16xf32, #tpu.memory_space<vmem>>, vector<1x16x16xf32>
    %195 = vector.shape_cast %194 : vector<1x16x16xf32> to vector<16x16xf32>
    %c49 = arith.constant 49 : index
    %196 = memref.load %arg1[%c49] : memref<98xf32, #tpu.memory_space<smem>>
    %197 = vector.broadcast %196 : f32 to vector<16x16xf32>
    %198 = arith.mulf %197, %195 : vector<16x16xf32>
    %199 = arith.addf %193, %198 : vector<16x16xf32>
    %c1_175 = arith.constant 1 : index
    %c6_176 = arith.constant 6 : index
    %c0_177 = arith.constant 0 : index
    %200 = vector.load %arg4[%c1_175, %c6_176, %c0_177] : memref<2x32x16xf32, #tpu.memory_space<vmem>>, vector<1x16x16xf32>
    %201 = vector.shape_cast %200 : vector<1x16x16xf32> to vector<16x16xf32>
    %c56 = arith.constant 56 : index
    %202 = memref.load %arg1[%c56] : memref<98xf32, #tpu.memory_space<smem>>
    %203 = vector.broadcast %202 : f32 to vector<16x16xf32>
    %204 = arith.mulf %203, %201 : vector<16x16xf32>
    %205 = arith.addf %199, %204 : vector<16x16xf32>
    %c1_178 = arith.constant 1 : index
    %c7_179 = arith.constant 7 : index
    %c0_180 = arith.constant 0 : index
    %206 = vector.load %arg4[%c1_178, %c7_179, %c0_180] : memref<2x32x16xf32, #tpu.memory_space<vmem>>, vector<1x16x16xf32>
    %207 = vector.shape_cast %206 : vector<1x16x16xf32> to vector<16x16xf32>
    %c63 = arith.constant 63 : index
    %208 = memref.load %arg1[%c63] : memref<98xf32, #tpu.memory_space<smem>>
    %209 = vector.broadcast %208 : f32 to vector<16x16xf32>
    %210 = arith.mulf %209, %207 : vector<16x16xf32>
    %211 = arith.addf %205, %210 : vector<16x16xf32>
    %c1_181 = arith.constant 1 : index
    %c8_182 = arith.constant 8 : index
    %c0_183 = arith.constant 0 : index
    %212 = vector.load %arg4[%c1_181, %c8_182, %c0_183] : memref<2x32x16xf32, #tpu.memory_space<vmem>>, vector<1x16x16xf32>
    %213 = vector.shape_cast %212 : vector<1x16x16xf32> to vector<16x16xf32>
    %c70 = arith.constant 70 : index
    %214 = memref.load %arg1[%c70] : memref<98xf32, #tpu.memory_space<smem>>
    %215 = vector.broadcast %214 : f32 to vector<16x16xf32>
    %216 = arith.mulf %215, %213 : vector<16x16xf32>
    %217 = arith.addf %211, %216 : vector<16x16xf32>
    %c1_184 = arith.constant 1 : index
    %c9_185 = arith.constant 9 : index
    %c0_186 = arith.constant 0 : index
    %218 = vector.load %arg4[%c1_184, %c9_185, %c0_186] : memref<2x32x16xf32, #tpu.memory_space<vmem>>, vector<1x16x16xf32>
    %219 = vector.shape_cast %218 : vector<1x16x16xf32> to vector<16x16xf32>
    %c77 = arith.constant 77 : index
    %220 = memref.load %arg1[%c77] : memref<98xf32, #tpu.memory_space<smem>>
    %221 = vector.broadcast %220 : f32 to vector<16x16xf32>
    %222 = arith.mulf %221, %219 : vector<16x16xf32>
    %223 = arith.addf %217, %222 : vector<16x16xf32>
    %c1_187 = arith.constant 1 : index
    %c10_188 = arith.constant 10 : index
    %c0_189 = arith.constant 0 : index
    %224 = vector.load %arg4[%c1_187, %c10_188, %c0_189] : memref<2x32x16xf32, #tpu.memory_space<vmem>>, vector<1x16x16xf32>
    %225 = vector.shape_cast %224 : vector<1x16x16xf32> to vector<16x16xf32>
    %c84 = arith.constant 84 : index
    %226 = memref.load %arg1[%c84] : memref<98xf32, #tpu.memory_space<smem>>
    %227 = vector.broadcast %226 : f32 to vector<16x16xf32>
    %228 = arith.mulf %227, %225 : vector<16x16xf32>
    %229 = arith.addf %223, %228 : vector<16x16xf32>
    %c1_190 = arith.constant 1 : index
    %c11_191 = arith.constant 11 : index
    %c0_192 = arith.constant 0 : index
    %230 = vector.load %arg4[%c1_190, %c11_191, %c0_192] : memref<2x32x16xf32, #tpu.memory_space<vmem>>, vector<1x16x16xf32>
    %231 = vector.shape_cast %230 : vector<1x16x16xf32> to vector<16x16xf32>
    %c91 = arith.constant 91 : index
    %232 = memref.load %arg1[%c91] : memref<98xf32, #tpu.memory_space<smem>>
    %233 = vector.broadcast %232 : f32 to vector<16x16xf32>
    %234 = arith.mulf %233, %231 : vector<16x16xf32>
    %235 = arith.addf %229, %234 : vector<16x16xf32>
    %c3_i32 = arith.constant 3 : i32
    %236 = tpu.dynamic_rotate %235 by %c3_i32 dim 1 : vector<16x16xf32>, i32 -> vector<16x16xf32>
    %c-3_i32 = arith.constant -3 : i32
    %237 = vector.broadcast %c-3_i32 : i32 to vector<16x16xi32>
    %238 = arith.addi %149, %237 : vector<16x16xi32>
    %c0_i32 = arith.constant 0 : i32
    %239 = vector.broadcast %c0_i32 : i32 to vector<16x16xi32>
    %240 = arith.cmpi sge, %238, %239 : vector<16x16xi32>
    %c-3_i32_193 = arith.constant -3 : i32
    %241 = vector.broadcast %c-3_i32_193 : i32 to vector<16x16xi32>
    %242 = arith.addi %149, %241 : vector<16x16xi32>
    %c16_i32 = arith.constant 16 : i32
    %243 = vector.broadcast %c16_i32 : i32 to vector<16x16xi32>
    %244 = arith.cmpi slt, %242, %243 : vector<16x16xi32>
    %245 = arith.andi %240, %244 : vector<16x16xi1>
    %cst_194 = arith.constant 0.000000e+00 : f32
    %246 = vector.broadcast %cst_194 : f32 to vector<16x16xf32>
    %247 = arith.select %245, %236, %246 : vector<16x16xi1>, vector<16x16xf32>
    %248 = arith.addf %150, %247 : vector<16x16xf32>
    %cst_195 = arith.constant 0.000000e+00 : f32
    %249 = vector.broadcast %cst_195 : f32 to vector<16x16xf32>
    %c0_196 = arith.constant 0 : index
    %c5_197 = arith.constant 5 : index
    %c0_198 = arith.constant 0 : index
    %250 = vector.load %arg4[%c0_196, %c5_197, %c0_198] : memref<2x32x16xf32, #tpu.memory_space<vmem>>, vector<1x16x16xf32>
    %251 = vector.shape_cast %250 : vector<1x16x16xf32> to vector<16x16xf32>
    %c1_199 = arith.constant 1 : index
    %252 = memref.load %arg1[%c1_199] : memref<98xf32, #tpu.memory_space<smem>>
    %253 = vector.broadcast %252 : f32 to vector<16x16xf32>
    %254 = arith.mulf %253, %251 : vector<16x16xf32>
    %255 = arith.addf %249, %254 : vector<16x16xf32>
    %c0_200 = arith.constant 0 : index
    %c6_201 = arith.constant 6 : index
    %c0_202 = arith.constant 0 : index
    %256 = vector.load %arg4[%c0_200, %c6_201, %c0_202] : memref<2x32x16xf32, #tpu.memory_space<vmem>>, vector<1x16x16xf32>
    %257 = vector.shape_cast %256 : vector<1x16x16xf32> to vector<16x16xf32>
    %c8_203 = arith.constant 8 : index
    %258 = memref.load %arg1[%c8_203] : memref<98xf32, #tpu.memory_space<smem>>
    %259 = vector.broadcast %258 : f32 to vector<16x16xf32>
    %260 = arith.mulf %259, %257 : vector<16x16xf32>
    %261 = arith.addf %255, %260 : vector<16x16xf32>
    %c0_204 = arith.constant 0 : index
    %c7_205 = arith.constant 7 : index
    %c0_206 = arith.constant 0 : index
    %262 = vector.load %arg4[%c0_204, %c7_205, %c0_206] : memref<2x32x16xf32, #tpu.memory_space<vmem>>, vector<1x16x16xf32>
    %263 = vector.shape_cast %262 : vector<1x16x16xf32> to vector<16x16xf32>
    %c15_207 = arith.constant 15 : index
    %264 = memref.load %arg1[%c15_207] : memref<98xf32, #tpu.memory_space<smem>>
    %265 = vector.broadcast %264 : f32 to vector<16x16xf32>
    %266 = arith.mulf %265, %263 : vector<16x16xf32>
    %267 = arith.addf %261, %266 : vector<16x16xf32>
    %c0_208 = arith.constant 0 : index
    %c8_209 = arith.constant 8 : index
    %c0_210 = arith.constant 0 : index
    %268 = vector.load %arg4[%c0_208, %c8_209, %c0_210] : memref<2x32x16xf32, #tpu.memory_space<vmem>>, vector<1x16x16xf32>
    %269 = vector.shape_cast %268 : vector<1x16x16xf32> to vector<16x16xf32>
    %c22_211 = arith.constant 22 : index
    %270 = memref.load %arg1[%c22_211] : memref<98xf32, #tpu.memory_space<smem>>
    %271 = vector.broadcast %270 : f32 to vector<16x16xf32>
    %272 = arith.mulf %271, %269 : vector<16x16xf32>
    %273 = arith.addf %267, %272 : vector<16x16xf32>
    %c0_212 = arith.constant 0 : index
    %c9_213 = arith.constant 9 : index
    %c0_214 = arith.constant 0 : index
    %274 = vector.load %arg4[%c0_212, %c9_213, %c0_214] : memref<2x32x16xf32, #tpu.memory_space<vmem>>, vector<1x16x16xf32>
    %275 = vector.shape_cast %274 : vector<1x16x16xf32> to vector<16x16xf32>
    %c29 = arith.constant 29 : index
    %276 = memref.load %arg1[%c29] : memref<98xf32, #tpu.memory_space<smem>>
    %277 = vector.broadcast %276 : f32 to vector<16x16xf32>
    %278 = arith.mulf %277, %275 : vector<16x16xf32>
    %279 = arith.addf %273, %278 : vector<16x16xf32>
    %c0_215 = arith.constant 0 : index
    %c10_216 = arith.constant 10 : index
    %c0_217 = arith.constant 0 : index
    %280 = vector.load %arg4[%c0_215, %c10_216, %c0_217] : memref<2x32x16xf32, #tpu.memory_space<vmem>>, vector<1x16x16xf32>
    %281 = vector.shape_cast %280 : vector<1x16x16xf32> to vector<16x16xf32>
    %c36 = arith.constant 36 : index
    %282 = memref.load %arg1[%c36] : memref<98xf32, #tpu.memory_space<smem>>
    %283 = vector.broadcast %282 : f32 to vector<16x16xf32>
    %284 = arith.mulf %283, %281 : vector<16x16xf32>
    %285 = arith.addf %279, %284 : vector<16x16xf32>
    %c0_218 = arith.constant 0 : index
    %c11_219 = arith.constant 11 : index
    %c0_220 = arith.constant 0 : index
    %286 = vector.load %arg4[%c0_218, %c11_219, %c0_220] : memref<2x32x16xf32, #tpu.memory_space<vmem>>, vector<1x16x16xf32>
    %287 = vector.shape_cast %286 : vector<1x16x16xf32> to vector<16x16xf32>
    %c43 = arith.constant 43 : index
    %288 = memref.load %arg1[%c43] : memref<98xf32, #tpu.memory_space<smem>>
    %289 = vector.broadcast %288 : f32 to vector<16x16xf32>
    %290 = arith.mulf %289, %287 : vector<16x16xf32>
    %291 = arith.addf %285, %290 : vector<16x16xf32>
    %c1_221 = arith.constant 1 : index
    %c5_222 = arith.constant 5 : index
    %c0_223 = arith.constant 0 : index
    %292 = vector.load %arg4[%c1_221, %c5_222, %c0_223] : memref<2x32x16xf32, #tpu.memory_space<vmem>>, vector<1x16x16xf32>
    %293 = vector.shape_cast %292 : vector<1x16x16xf32> to vector<16x16xf32>
    %c50 = arith.constant 50 : index
    %294 = memref.load %arg1[%c50] : memref<98xf32, #tpu.memory_space<smem>>
    %295 = vector.broadcast %294 : f32 to vector<16x16xf32>
    %296 = arith.mulf %295, %293 : vector<16x16xf32>
    %297 = arith.addf %291, %296 : vector<16x16xf32>
    %c1_224 = arith.constant 1 : index
    %c6_225 = arith.constant 6 : index
    %c0_226 = arith.constant 0 : index
    %298 = vector.load %arg4[%c1_224, %c6_225, %c0_226] : memref<2x32x16xf32, #tpu.memory_space<vmem>>, vector<1x16x16xf32>
    %299 = vector.shape_cast %298 : vector<1x16x16xf32> to vector<16x16xf32>
    %c57 = arith.constant 57 : index
    %300 = memref.load %arg1[%c57] : memref<98xf32, #tpu.memory_space<smem>>
    %301 = vector.broadcast %300 : f32 to vector<16x16xf32>
    %302 = arith.mulf %301, %299 : vector<16x16xf32>
    %303 = arith.addf %297, %302 : vector<16x16xf32>
    %c1_227 = arith.constant 1 : index
    %c7_228 = arith.constant 7 : index
    %c0_229 = arith.constant 0 : index
    %304 = vector.load %arg4[%c1_227, %c7_228, %c0_229] : memref<2x32x16xf32, #tpu.memory_space<vmem>>, vector<1x16x16xf32>
    %305 = vector.shape_cast %304 : vector<1x16x16xf32> to vector<16x16xf32>
    %c64_230 = arith.constant 64 : index
    %306 = memref.load %arg1[%c64_230] : memref<98xf32, #tpu.memory_space<smem>>
    %307 = vector.broadcast %306 : f32 to vector<16x16xf32>
    %308 = arith.mulf %307, %305 : vector<16x16xf32>
    %309 = arith.addf %303, %308 : vector<16x16xf32>
    %c1_231 = arith.constant 1 : index
    %c8_232 = arith.constant 8 : index
    %c0_233 = arith.constant 0 : index
    %310 = vector.load %arg4[%c1_231, %c8_232, %c0_233] : memref<2x32x16xf32, #tpu.memory_space<vmem>>, vector<1x16x16xf32>
    %311 = vector.shape_cast %310 : vector<1x16x16xf32> to vector<16x16xf32>
    %c71 = arith.constant 71 : index
    %312 = memref.load %arg1[%c71] : memref<98xf32, #tpu.memory_space<smem>>
    %313 = vector.broadcast %312 : f32 to vector<16x16xf32>
    %314 = arith.mulf %313, %311 : vector<16x16xf32>
    %315 = arith.addf %309, %314 : vector<16x16xf32>
    %c1_234 = arith.constant 1 : index
    %c9_235 = arith.constant 9 : index
    %c0_236 = arith.constant 0 : index
    %316 = vector.load %arg4[%c1_234, %c9_235, %c0_236] : memref<2x32x16xf32, #tpu.memory_space<vmem>>, vector<1x16x16xf32>
    %317 = vector.shape_cast %316 : vector<1x16x16xf32> to vector<16x16xf32>
    %c78 = arith.constant 78 : index
    %318 = memref.load %arg1[%c78] : memref<98xf32, #tpu.memory_space<smem>>
    %319 = vector.broadcast %318 : f32 to vector<16x16xf32>
    %320 = arith.mulf %319, %317 : vector<16x16xf32>
    %321 = arith.addf %315, %320 : vector<16x16xf32>
    %c1_237 = arith.constant 1 : index
    %c10_238 = arith.constant 10 : index
    %c0_239 = arith.constant 0 : index
    %322 = vector.load %arg4[%c1_237, %c10_238, %c0_239] : memref<2x32x16xf32, #tpu.memory_space<vmem>>, vector<1x16x16xf32>
    %323 = vector.shape_cast %322 : vector<1x16x16xf32> to vector<16x16xf32>
    %c85 = arith.constant 85 : index
    %324 = memref.load %arg1[%c85] : memref<98xf32, #tpu.memory_space<smem>>
    %325 = vector.broadcast %324 : f32 to vector<16x16xf32>
    %326 = arith.mulf %325, %323 : vector<16x16xf32>
    %327 = arith.addf %321, %326 : vector<16x16xf32>
    %c1_240 = arith.constant 1 : index
    %c11_241 = arith.constant 11 : index
    %c0_242 = arith.constant 0 : index
    %328 = vector.load %arg4[%c1_240, %c11_241, %c0_242] : memref<2x32x16xf32, #tpu.memory_space<vmem>>, vector<1x16x16xf32>
    %329 = vector.shape_cast %328 : vector<1x16x16xf32> to vector<16x16xf32>
    %c92 = arith.constant 92 : index
    %330 = memref.load %arg1[%c92] : memref<98xf32, #tpu.memory_space<smem>>
    %331 = vector.broadcast %330 : f32 to vector<16x16xf32>
    %332 = arith.mulf %331, %329 : vector<16x16xf32>
    %333 = arith.addf %327, %332 : vector<16x16xf32>
    %c2_i32 = arith.constant 2 : i32
    %334 = tpu.dynamic_rotate %333 by %c2_i32 dim 1 : vector<16x16xf32>, i32 -> vector<16x16xf32>
    %c-2_i32 = arith.constant -2 : i32
    %335 = vector.broadcast %c-2_i32 : i32 to vector<16x16xi32>
    %336 = arith.addi %149, %335 : vector<16x16xi32>
    %c0_i32_243 = arith.constant 0 : i32
    %337 = vector.broadcast %c0_i32_243 : i32 to vector<16x16xi32>
    %338 = arith.cmpi sge, %336, %337 : vector<16x16xi32>
    %c-2_i32_244 = arith.constant -2 : i32
    %339 = vector.broadcast %c-2_i32_244 : i32 to vector<16x16xi32>
    %340 = arith.addi %149, %339 : vector<16x16xi32>
    %c16_i32_245 = arith.constant 16 : i32
    %341 = vector.broadcast %c16_i32_245 : i32 to vector<16x16xi32>
    %342 = arith.cmpi slt, %340, %341 : vector<16x16xi32>
    %343 = arith.andi %338, %342 : vector<16x16xi1>
    %cst_246 = arith.constant 0.000000e+00 : f32
    %344 = vector.broadcast %cst_246 : f32 to vector<16x16xf32>
    %345 = arith.select %343, %334, %344 : vector<16x16xi1>, vector<16x16xf32>
    %346 = arith.addf %248, %345 : vector<16x16xf32>
    %cst_247 = arith.constant 0.000000e+00 : f32
    %347 = vector.broadcast %cst_247 : f32 to vector<16x16xf32>
    %c0_248 = arith.constant 0 : index
    %c5_249 = arith.constant 5 : index
    %c0_250 = arith.constant 0 : index
    %348 = vector.load %arg4[%c0_248, %c5_249, %c0_250] : memref<2x32x16xf32, #tpu.memory_space<vmem>>, vector<1x16x16xf32>
    %349 = vector.shape_cast %348 : vector<1x16x16xf32> to vector<16x16xf32>
    %c2_251 = arith.constant 2 : index
    %350 = memref.load %arg1[%c2_251] : memref<98xf32, #tpu.memory_space<smem>>
    %351 = vector.broadcast %350 : f32 to vector<16x16xf32>
    %352 = arith.mulf %351, %349 : vector<16x16xf32>
    %353 = arith.addf %347, %352 : vector<16x16xf32>
    %c0_252 = arith.constant 0 : index
    %c6_253 = arith.constant 6 : index
    %c0_254 = arith.constant 0 : index
    %354 = vector.load %arg4[%c0_252, %c6_253, %c0_254] : memref<2x32x16xf32, #tpu.memory_space<vmem>>, vector<1x16x16xf32>
    %355 = vector.shape_cast %354 : vector<1x16x16xf32> to vector<16x16xf32>
    %c9_255 = arith.constant 9 : index
    %356 = memref.load %arg1[%c9_255] : memref<98xf32, #tpu.memory_space<smem>>
    %357 = vector.broadcast %356 : f32 to vector<16x16xf32>
    %358 = arith.mulf %357, %355 : vector<16x16xf32>
    %359 = arith.addf %353, %358 : vector<16x16xf32>
    %c0_256 = arith.constant 0 : index
    %c7_257 = arith.constant 7 : index
    %c0_258 = arith.constant 0 : index
    %360 = vector.load %arg4[%c0_256, %c7_257, %c0_258] : memref<2x32x16xf32, #tpu.memory_space<vmem>>, vector<1x16x16xf32>
    %361 = vector.shape_cast %360 : vector<1x16x16xf32> to vector<16x16xf32>
    %c16_259 = arith.constant 16 : index
    %362 = memref.load %arg1[%c16_259] : memref<98xf32, #tpu.memory_space<smem>>
    %363 = vector.broadcast %362 : f32 to vector<16x16xf32>
    %364 = arith.mulf %363, %361 : vector<16x16xf32>
    %365 = arith.addf %359, %364 : vector<16x16xf32>
    %c0_260 = arith.constant 0 : index
    %c8_261 = arith.constant 8 : index
    %c0_262 = arith.constant 0 : index
    %366 = vector.load %arg4[%c0_260, %c8_261, %c0_262] : memref<2x32x16xf32, #tpu.memory_space<vmem>>, vector<1x16x16xf32>
    %367 = vector.shape_cast %366 : vector<1x16x16xf32> to vector<16x16xf32>
    %c23_263 = arith.constant 23 : index
    %368 = memref.load %arg1[%c23_263] : memref<98xf32, #tpu.memory_space<smem>>
    %369 = vector.broadcast %368 : f32 to vector<16x16xf32>
    %370 = arith.mulf %369, %367 : vector<16x16xf32>
    %371 = arith.addf %365, %370 : vector<16x16xf32>
    %c0_264 = arith.constant 0 : index
    %c9_265 = arith.constant 9 : index
    %c0_266 = arith.constant 0 : index
    %372 = vector.load %arg4[%c0_264, %c9_265, %c0_266] : memref<2x32x16xf32, #tpu.memory_space<vmem>>, vector<1x16x16xf32>
    %373 = vector.shape_cast %372 : vector<1x16x16xf32> to vector<16x16xf32>
    %c30 = arith.constant 30 : index
    %374 = memref.load %arg1[%c30] : memref<98xf32, #tpu.memory_space<smem>>
    %375 = vector.broadcast %374 : f32 to vector<16x16xf32>
    %376 = arith.mulf %375, %373 : vector<16x16xf32>
    %377 = arith.addf %371, %376 : vector<16x16xf32>
    %c0_267 = arith.constant 0 : index
    %c10_268 = arith.constant 10 : index
    %c0_269 = arith.constant 0 : index
    %378 = vector.load %arg4[%c0_267, %c10_268, %c0_269] : memref<2x32x16xf32, #tpu.memory_space<vmem>>, vector<1x16x16xf32>
    %379 = vector.shape_cast %378 : vector<1x16x16xf32> to vector<16x16xf32>
    %c37 = arith.constant 37 : index
    %380 = memref.load %arg1[%c37] : memref<98xf32, #tpu.memory_space<smem>>
    %381 = vector.broadcast %380 : f32 to vector<16x16xf32>
    %382 = arith.mulf %381, %379 : vector<16x16xf32>
    %383 = arith.addf %377, %382 : vector<16x16xf32>
    %c0_270 = arith.constant 0 : index
    %c11_271 = arith.constant 11 : index
    %c0_272 = arith.constant 0 : index
    %384 = vector.load %arg4[%c0_270, %c11_271, %c0_272] : memref<2x32x16xf32, #tpu.memory_space<vmem>>, vector<1x16x16xf32>
    %385 = vector.shape_cast %384 : vector<1x16x16xf32> to vector<16x16xf32>
    %c44 = arith.constant 44 : index
    %386 = memref.load %arg1[%c44] : memref<98xf32, #tpu.memory_space<smem>>
    %387 = vector.broadcast %386 : f32 to vector<16x16xf32>
    %388 = arith.mulf %387, %385 : vector<16x16xf32>
    %389 = arith.addf %383, %388 : vector<16x16xf32>
    %c1_273 = arith.constant 1 : index
    %c5_274 = arith.constant 5 : index
    %c0_275 = arith.constant 0 : index
    %390 = vector.load %arg4[%c1_273, %c5_274, %c0_275] : memref<2x32x16xf32, #tpu.memory_space<vmem>>, vector<1x16x16xf32>
    %391 = vector.shape_cast %390 : vector<1x16x16xf32> to vector<16x16xf32>
    %c51 = arith.constant 51 : index
    %392 = memref.load %arg1[%c51] : memref<98xf32, #tpu.memory_space<smem>>
    %393 = vector.broadcast %392 : f32 to vector<16x16xf32>
    %394 = arith.mulf %393, %391 : vector<16x16xf32>
    %395 = arith.addf %389, %394 : vector<16x16xf32>
    %c1_276 = arith.constant 1 : index
    %c6_277 = arith.constant 6 : index
    %c0_278 = arith.constant 0 : index
    %396 = vector.load %arg4[%c1_276, %c6_277, %c0_278] : memref<2x32x16xf32, #tpu.memory_space<vmem>>, vector<1x16x16xf32>
    %397 = vector.shape_cast %396 : vector<1x16x16xf32> to vector<16x16xf32>
    %c58 = arith.constant 58 : index
    %398 = memref.load %arg1[%c58] : memref<98xf32, #tpu.memory_space<smem>>
    %399 = vector.broadcast %398 : f32 to vector<16x16xf32>
    %400 = arith.mulf %399, %397 : vector<16x16xf32>
    %401 = arith.addf %395, %400 : vector<16x16xf32>
    %c1_279 = arith.constant 1 : index
    %c7_280 = arith.constant 7 : index
    %c0_281 = arith.constant 0 : index
    %402 = vector.load %arg4[%c1_279, %c7_280, %c0_281] : memref<2x32x16xf32, #tpu.memory_space<vmem>>, vector<1x16x16xf32>
    %403 = vector.shape_cast %402 : vector<1x16x16xf32> to vector<16x16xf32>
    %c65 = arith.constant 65 : index
    %404 = memref.load %arg1[%c65] : memref<98xf32, #tpu.memory_space<smem>>
    %405 = vector.broadcast %404 : f32 to vector<16x16xf32>
    %406 = arith.mulf %405, %403 : vector<16x16xf32>
    %407 = arith.addf %401, %406 : vector<16x16xf32>
    %c1_282 = arith.constant 1 : index
    %c8_283 = arith.constant 8 : index
    %c0_284 = arith.constant 0 : index
    %408 = vector.load %arg4[%c1_282, %c8_283, %c0_284] : memref<2x32x16xf32, #tpu.memory_space<vmem>>, vector<1x16x16xf32>
    %409 = vector.shape_cast %408 : vector<1x16x16xf32> to vector<16x16xf32>
    %c72 = arith.constant 72 : index
    %410 = memref.load %arg1[%c72] : memref<98xf32, #tpu.memory_space<smem>>
    %411 = vector.broadcast %410 : f32 to vector<16x16xf32>
    %412 = arith.mulf %411, %409 : vector<16x16xf32>
    %413 = arith.addf %407, %412 : vector<16x16xf32>
    %c1_285 = arith.constant 1 : index
    %c9_286 = arith.constant 9 : index
    %c0_287 = arith.constant 0 : index
    %414 = vector.load %arg4[%c1_285, %c9_286, %c0_287] : memref<2x32x16xf32, #tpu.memory_space<vmem>>, vector<1x16x16xf32>
    %415 = vector.shape_cast %414 : vector<1x16x16xf32> to vector<16x16xf32>
    %c79 = arith.constant 79 : index
    %416 = memref.load %arg1[%c79] : memref<98xf32, #tpu.memory_space<smem>>
    %417 = vector.broadcast %416 : f32 to vector<16x16xf32>
    %418 = arith.mulf %417, %415 : vector<16x16xf32>
    %419 = arith.addf %413, %418 : vector<16x16xf32>
    %c1_288 = arith.constant 1 : index
    %c10_289 = arith.constant 10 : index
    %c0_290 = arith.constant 0 : index
    %420 = vector.load %arg4[%c1_288, %c10_289, %c0_290] : memref<2x32x16xf32, #tpu.memory_space<vmem>>, vector<1x16x16xf32>
    %421 = vector.shape_cast %420 : vector<1x16x16xf32> to vector<16x16xf32>
    %c86 = arith.constant 86 : index
    %422 = memref.load %arg1[%c86] : memref<98xf32, #tpu.memory_space<smem>>
    %423 = vector.broadcast %422 : f32 to vector<16x16xf32>
    %424 = arith.mulf %423, %421 : vector<16x16xf32>
    %425 = arith.addf %419, %424 : vector<16x16xf32>
    %c1_291 = arith.constant 1 : index
    %c11_292 = arith.constant 11 : index
    %c0_293 = arith.constant 0 : index
    %426 = vector.load %arg4[%c1_291, %c11_292, %c0_293] : memref<2x32x16xf32, #tpu.memory_space<vmem>>, vector<1x16x16xf32>
    %427 = vector.shape_cast %426 : vector<1x16x16xf32> to vector<16x16xf32>
    %c93 = arith.constant 93 : index
    %428 = memref.load %arg1[%c93] : memref<98xf32, #tpu.memory_space<smem>>
    %429 = vector.broadcast %428 : f32 to vector<16x16xf32>
    %430 = arith.mulf %429, %427 : vector<16x16xf32>
    %431 = arith.addf %425, %430 : vector<16x16xf32>
    %c1_i32 = arith.constant 1 : i32
    %432 = tpu.dynamic_rotate %431 by %c1_i32 dim 1 : vector<16x16xf32>, i32 -> vector<16x16xf32>
    %c-1_i32 = arith.constant -1 : i32
    %433 = vector.broadcast %c-1_i32 : i32 to vector<16x16xi32>
    %434 = arith.addi %149, %433 : vector<16x16xi32>
    %c0_i32_294 = arith.constant 0 : i32
    %435 = vector.broadcast %c0_i32_294 : i32 to vector<16x16xi32>
    %436 = arith.cmpi sge, %434, %435 : vector<16x16xi32>
    %c-1_i32_295 = arith.constant -1 : i32
    %437 = vector.broadcast %c-1_i32_295 : i32 to vector<16x16xi32>
    %438 = arith.addi %149, %437 : vector<16x16xi32>
    %c16_i32_296 = arith.constant 16 : i32
    %439 = vector.broadcast %c16_i32_296 : i32 to vector<16x16xi32>
    %440 = arith.cmpi slt, %438, %439 : vector<16x16xi32>
    %441 = arith.andi %436, %440 : vector<16x16xi1>
    %cst_297 = arith.constant 0.000000e+00 : f32
    %442 = vector.broadcast %cst_297 : f32 to vector<16x16xf32>
    %443 = arith.select %441, %432, %442 : vector<16x16xi1>, vector<16x16xf32>
    %444 = arith.addf %346, %443 : vector<16x16xf32>
    %cst_298 = arith.constant 0.000000e+00 : f32
    %445 = vector.broadcast %cst_298 : f32 to vector<16x16xf32>
    %c0_299 = arith.constant 0 : index
    %c5_300 = arith.constant 5 : index
    %c0_301 = arith.constant 0 : index
    %446 = vector.load %arg4[%c0_299, %c5_300, %c0_301] : memref<2x32x16xf32, #tpu.memory_space<vmem>>, vector<1x16x16xf32>
    %447 = vector.shape_cast %446 : vector<1x16x16xf32> to vector<16x16xf32>
    %c3_302 = arith.constant 3 : index
    %448 = memref.load %arg1[%c3_302] : memref<98xf32, #tpu.memory_space<smem>>
    %449 = vector.broadcast %448 : f32 to vector<16x16xf32>
    %450 = arith.mulf %449, %447 : vector<16x16xf32>
    %451 = arith.addf %445, %450 : vector<16x16xf32>
    %c0_303 = arith.constant 0 : index
    %c6_304 = arith.constant 6 : index
    %c0_305 = arith.constant 0 : index
    %452 = vector.load %arg4[%c0_303, %c6_304, %c0_305] : memref<2x32x16xf32, #tpu.memory_space<vmem>>, vector<1x16x16xf32>
    %453 = vector.shape_cast %452 : vector<1x16x16xf32> to vector<16x16xf32>
    %c10_306 = arith.constant 10 : index
    %454 = memref.load %arg1[%c10_306] : memref<98xf32, #tpu.memory_space<smem>>
    %455 = vector.broadcast %454 : f32 to vector<16x16xf32>
    %456 = arith.mulf %455, %453 : vector<16x16xf32>
    %457 = arith.addf %451, %456 : vector<16x16xf32>
    %c0_307 = arith.constant 0 : index
    %c7_308 = arith.constant 7 : index
    %c0_309 = arith.constant 0 : index
    %458 = vector.load %arg4[%c0_307, %c7_308, %c0_309] : memref<2x32x16xf32, #tpu.memory_space<vmem>>, vector<1x16x16xf32>
    %459 = vector.shape_cast %458 : vector<1x16x16xf32> to vector<16x16xf32>
    %c17_310 = arith.constant 17 : index
    %460 = memref.load %arg1[%c17_310] : memref<98xf32, #tpu.memory_space<smem>>
    %461 = vector.broadcast %460 : f32 to vector<16x16xf32>
    %462 = arith.mulf %461, %459 : vector<16x16xf32>
    %463 = arith.addf %457, %462 : vector<16x16xf32>
    %c0_311 = arith.constant 0 : index
    %c8_312 = arith.constant 8 : index
    %c0_313 = arith.constant 0 : index
    %464 = vector.load %arg4[%c0_311, %c8_312, %c0_313] : memref<2x32x16xf32, #tpu.memory_space<vmem>>, vector<1x16x16xf32>
    %465 = vector.shape_cast %464 : vector<1x16x16xf32> to vector<16x16xf32>
    %c24_314 = arith.constant 24 : index
    %466 = memref.load %arg1[%c24_314] : memref<98xf32, #tpu.memory_space<smem>>
    %467 = vector.broadcast %466 : f32 to vector<16x16xf32>
    %468 = arith.mulf %467, %465 : vector<16x16xf32>
    %469 = arith.addf %463, %468 : vector<16x16xf32>
    %c0_315 = arith.constant 0 : index
    %c9_316 = arith.constant 9 : index
    %c0_317 = arith.constant 0 : index
    %470 = vector.load %arg4[%c0_315, %c9_316, %c0_317] : memref<2x32x16xf32, #tpu.memory_space<vmem>>, vector<1x16x16xf32>
    %471 = vector.shape_cast %470 : vector<1x16x16xf32> to vector<16x16xf32>
    %c31 = arith.constant 31 : index
    %472 = memref.load %arg1[%c31] : memref<98xf32, #tpu.memory_space<smem>>
    %473 = vector.broadcast %472 : f32 to vector<16x16xf32>
    %474 = arith.mulf %473, %471 : vector<16x16xf32>
    %475 = arith.addf %469, %474 : vector<16x16xf32>
    %c0_318 = arith.constant 0 : index
    %c10_319 = arith.constant 10 : index
    %c0_320 = arith.constant 0 : index
    %476 = vector.load %arg4[%c0_318, %c10_319, %c0_320] : memref<2x32x16xf32, #tpu.memory_space<vmem>>, vector<1x16x16xf32>
    %477 = vector.shape_cast %476 : vector<1x16x16xf32> to vector<16x16xf32>
    %c38 = arith.constant 38 : index
    %478 = memref.load %arg1[%c38] : memref<98xf32, #tpu.memory_space<smem>>
    %479 = vector.broadcast %478 : f32 to vector<16x16xf32>
    %480 = arith.mulf %479, %477 : vector<16x16xf32>
    %481 = arith.addf %475, %480 : vector<16x16xf32>
    %c0_321 = arith.constant 0 : index
    %c11_322 = arith.constant 11 : index
    %c0_323 = arith.constant 0 : index
    %482 = vector.load %arg4[%c0_321, %c11_322, %c0_323] : memref<2x32x16xf32, #tpu.memory_space<vmem>>, vector<1x16x16xf32>
    %483 = vector.shape_cast %482 : vector<1x16x16xf32> to vector<16x16xf32>
    %c45 = arith.constant 45 : index
    %484 = memref.load %arg1[%c45] : memref<98xf32, #tpu.memory_space<smem>>
    %485 = vector.broadcast %484 : f32 to vector<16x16xf32>
    %486 = arith.mulf %485, %483 : vector<16x16xf32>
    %487 = arith.addf %481, %486 : vector<16x16xf32>
    %c1_324 = arith.constant 1 : index
    %c5_325 = arith.constant 5 : index
    %c0_326 = arith.constant 0 : index
    %488 = vector.load %arg4[%c1_324, %c5_325, %c0_326] : memref<2x32x16xf32, #tpu.memory_space<vmem>>, vector<1x16x16xf32>
    %489 = vector.shape_cast %488 : vector<1x16x16xf32> to vector<16x16xf32>
    %c52 = arith.constant 52 : index
    %490 = memref.load %arg1[%c52] : memref<98xf32, #tpu.memory_space<smem>>
    %491 = vector.broadcast %490 : f32 to vector<16x16xf32>
    %492 = arith.mulf %491, %489 : vector<16x16xf32>
    %493 = arith.addf %487, %492 : vector<16x16xf32>
    %c1_327 = arith.constant 1 : index
    %c6_328 = arith.constant 6 : index
    %c0_329 = arith.constant 0 : index
    %494 = vector.load %arg4[%c1_327, %c6_328, %c0_329] : memref<2x32x16xf32, #tpu.memory_space<vmem>>, vector<1x16x16xf32>
    %495 = vector.shape_cast %494 : vector<1x16x16xf32> to vector<16x16xf32>
    %c59 = arith.constant 59 : index
    %496 = memref.load %arg1[%c59] : memref<98xf32, #tpu.memory_space<smem>>
    %497 = vector.broadcast %496 : f32 to vector<16x16xf32>
    %498 = arith.mulf %497, %495 : vector<16x16xf32>
    %499 = arith.addf %493, %498 : vector<16x16xf32>
    %c1_330 = arith.constant 1 : index
    %c7_331 = arith.constant 7 : index
    %c0_332 = arith.constant 0 : index
    %500 = vector.load %arg4[%c1_330, %c7_331, %c0_332] : memref<2x32x16xf32, #tpu.memory_space<vmem>>, vector<1x16x16xf32>
    %501 = vector.shape_cast %500 : vector<1x16x16xf32> to vector<16x16xf32>
    %c66 = arith.constant 66 : index
    %502 = memref.load %arg1[%c66] : memref<98xf32, #tpu.memory_space<smem>>
    %503 = vector.broadcast %502 : f32 to vector<16x16xf32>
    %504 = arith.mulf %503, %501 : vector<16x16xf32>
    %505 = arith.addf %499, %504 : vector<16x16xf32>
    %c1_333 = arith.constant 1 : index
    %c8_334 = arith.constant 8 : index
    %c0_335 = arith.constant 0 : index
    %506 = vector.load %arg4[%c1_333, %c8_334, %c0_335] : memref<2x32x16xf32, #tpu.memory_space<vmem>>, vector<1x16x16xf32>
    %507 = vector.shape_cast %506 : vector<1x16x16xf32> to vector<16x16xf32>
    %c73 = arith.constant 73 : index
    %508 = memref.load %arg1[%c73] : memref<98xf32, #tpu.memory_space<smem>>
    %509 = vector.broadcast %508 : f32 to vector<16x16xf32>
    %510 = arith.mulf %509, %507 : vector<16x16xf32>
    %511 = arith.addf %505, %510 : vector<16x16xf32>
    %c1_336 = arith.constant 1 : index
    %c9_337 = arith.constant 9 : index
    %c0_338 = arith.constant 0 : index
    %512 = vector.load %arg4[%c1_336, %c9_337, %c0_338] : memref<2x32x16xf32, #tpu.memory_space<vmem>>, vector<1x16x16xf32>
    %513 = vector.shape_cast %512 : vector<1x16x16xf32> to vector<16x16xf32>
    %c80_339 = arith.constant 80 : index
    %514 = memref.load %arg1[%c80_339] : memref<98xf32, #tpu.memory_space<smem>>
    %515 = vector.broadcast %514 : f32 to vector<16x16xf32>
    %516 = arith.mulf %515, %513 : vector<16x16xf32>
    %517 = arith.addf %511, %516 : vector<16x16xf32>
    %c1_340 = arith.constant 1 : index
    %c10_341 = arith.constant 10 : index
    %c0_342 = arith.constant 0 : index
    %518 = vector.load %arg4[%c1_340, %c10_341, %c0_342] : memref<2x32x16xf32, #tpu.memory_space<vmem>>, vector<1x16x16xf32>
    %519 = vector.shape_cast %518 : vector<1x16x16xf32> to vector<16x16xf32>
    %c87 = arith.constant 87 : index
    %520 = memref.load %arg1[%c87] : memref<98xf32, #tpu.memory_space<smem>>
    %521 = vector.broadcast %520 : f32 to vector<16x16xf32>
    %522 = arith.mulf %521, %519 : vector<16x16xf32>
    %523 = arith.addf %517, %522 : vector<16x16xf32>
    %c1_343 = arith.constant 1 : index
    %c11_344 = arith.constant 11 : index
    %c0_345 = arith.constant 0 : index
    %524 = vector.load %arg4[%c1_343, %c11_344, %c0_345] : memref<2x32x16xf32, #tpu.memory_space<vmem>>, vector<1x16x16xf32>
    %525 = vector.shape_cast %524 : vector<1x16x16xf32> to vector<16x16xf32>
    %c94 = arith.constant 94 : index
    %526 = memref.load %arg1[%c94] : memref<98xf32, #tpu.memory_space<smem>>
    %527 = vector.broadcast %526 : f32 to vector<16x16xf32>
    %528 = arith.mulf %527, %525 : vector<16x16xf32>
    %529 = arith.addf %523, %528 : vector<16x16xf32>
    %530 = arith.addf %444, %529 : vector<16x16xf32>
    %cst_346 = arith.constant 0.000000e+00 : f32
    %531 = vector.broadcast %cst_346 : f32 to vector<16x16xf32>
    %c0_347 = arith.constant 0 : index
    %c5_348 = arith.constant 5 : index
    %c0_349 = arith.constant 0 : index
    %532 = vector.load %arg4[%c0_347, %c5_348, %c0_349] : memref<2x32x16xf32, #tpu.memory_space<vmem>>, vector<1x16x16xf32>
    %533 = vector.shape_cast %532 : vector<1x16x16xf32> to vector<16x16xf32>
    %c4 = arith.constant 4 : index
    %534 = memref.load %arg1[%c4] : memref<98xf32, #tpu.memory_space<smem>>
    %535 = vector.broadcast %534 : f32 to vector<16x16xf32>
    %536 = arith.mulf %535, %533 : vector<16x16xf32>
    %537 = arith.addf %531, %536 : vector<16x16xf32>
    %c0_350 = arith.constant 0 : index
    %c6_351 = arith.constant 6 : index
    %c0_352 = arith.constant 0 : index
    %538 = vector.load %arg4[%c0_350, %c6_351, %c0_352] : memref<2x32x16xf32, #tpu.memory_space<vmem>>, vector<1x16x16xf32>
    %539 = vector.shape_cast %538 : vector<1x16x16xf32> to vector<16x16xf32>
    %c11_353 = arith.constant 11 : index
    %540 = memref.load %arg1[%c11_353] : memref<98xf32, #tpu.memory_space<smem>>
    %541 = vector.broadcast %540 : f32 to vector<16x16xf32>
    %542 = arith.mulf %541, %539 : vector<16x16xf32>
    %543 = arith.addf %537, %542 : vector<16x16xf32>
    %c0_354 = arith.constant 0 : index
    %c7_355 = arith.constant 7 : index
    %c0_356 = arith.constant 0 : index
    %544 = vector.load %arg4[%c0_354, %c7_355, %c0_356] : memref<2x32x16xf32, #tpu.memory_space<vmem>>, vector<1x16x16xf32>
    %545 = vector.shape_cast %544 : vector<1x16x16xf32> to vector<16x16xf32>
    %c18_357 = arith.constant 18 : index
    %546 = memref.load %arg1[%c18_357] : memref<98xf32, #tpu.memory_space<smem>>
    %547 = vector.broadcast %546 : f32 to vector<16x16xf32>
    %548 = arith.mulf %547, %545 : vector<16x16xf32>
    %549 = arith.addf %543, %548 : vector<16x16xf32>
    %c0_358 = arith.constant 0 : index
    %c8_359 = arith.constant 8 : index
    %c0_360 = arith.constant 0 : index
    %550 = vector.load %arg4[%c0_358, %c8_359, %c0_360] : memref<2x32x16xf32, #tpu.memory_space<vmem>>, vector<1x16x16xf32>
    %551 = vector.shape_cast %550 : vector<1x16x16xf32> to vector<16x16xf32>
    %c25 = arith.constant 25 : index
    %552 = memref.load %arg1[%c25] : memref<98xf32, #tpu.memory_space<smem>>
    %553 = vector.broadcast %552 : f32 to vector<16x16xf32>
    %554 = arith.mulf %553, %551 : vector<16x16xf32>
    %555 = arith.addf %549, %554 : vector<16x16xf32>
    %c0_361 = arith.constant 0 : index
    %c9_362 = arith.constant 9 : index
    %c0_363 = arith.constant 0 : index
    %556 = vector.load %arg4[%c0_361, %c9_362, %c0_363] : memref<2x32x16xf32, #tpu.memory_space<vmem>>, vector<1x16x16xf32>
    %557 = vector.shape_cast %556 : vector<1x16x16xf32> to vector<16x16xf32>
    %c32_364 = arith.constant 32 : index
    %558 = memref.load %arg1[%c32_364] : memref<98xf32, #tpu.memory_space<smem>>
    %559 = vector.broadcast %558 : f32 to vector<16x16xf32>
    %560 = arith.mulf %559, %557 : vector<16x16xf32>
    %561 = arith.addf %555, %560 : vector<16x16xf32>
    %c0_365 = arith.constant 0 : index
    %c10_366 = arith.constant 10 : index
    %c0_367 = arith.constant 0 : index
    %562 = vector.load %arg4[%c0_365, %c10_366, %c0_367] : memref<2x32x16xf32, #tpu.memory_space<vmem>>, vector<1x16x16xf32>
    %563 = vector.shape_cast %562 : vector<1x16x16xf32> to vector<16x16xf32>
    %c39 = arith.constant 39 : index
    %564 = memref.load %arg1[%c39] : memref<98xf32, #tpu.memory_space<smem>>
    %565 = vector.broadcast %564 : f32 to vector<16x16xf32>
    %566 = arith.mulf %565, %563 : vector<16x16xf32>
    %567 = arith.addf %561, %566 : vector<16x16xf32>
    %c0_368 = arith.constant 0 : index
    %c11_369 = arith.constant 11 : index
    %c0_370 = arith.constant 0 : index
    %568 = vector.load %arg4[%c0_368, %c11_369, %c0_370] : memref<2x32x16xf32, #tpu.memory_space<vmem>>, vector<1x16x16xf32>
    %569 = vector.shape_cast %568 : vector<1x16x16xf32> to vector<16x16xf32>
    %c46 = arith.constant 46 : index
    %570 = memref.load %arg1[%c46] : memref<98xf32, #tpu.memory_space<smem>>
    %571 = vector.broadcast %570 : f32 to vector<16x16xf32>
    %572 = arith.mulf %571, %569 : vector<16x16xf32>
    %573 = arith.addf %567, %572 : vector<16x16xf32>
    %c1_371 = arith.constant 1 : index
    %c5_372 = arith.constant 5 : index
    %c0_373 = arith.constant 0 : index
    %574 = vector.load %arg4[%c1_371, %c5_372, %c0_373] : memref<2x32x16xf32, #tpu.memory_space<vmem>>, vector<1x16x16xf32>
    %575 = vector.shape_cast %574 : vector<1x16x16xf32> to vector<16x16xf32>
    %c53 = arith.constant 53 : index
    %576 = memref.load %arg1[%c53] : memref<98xf32, #tpu.memory_space<smem>>
    %577 = vector.broadcast %576 : f32 to vector<16x16xf32>
    %578 = arith.mulf %577, %575 : vector<16x16xf32>
    %579 = arith.addf %573, %578 : vector<16x16xf32>
    %c1_374 = arith.constant 1 : index
    %c6_375 = arith.constant 6 : index
    %c0_376 = arith.constant 0 : index
    %580 = vector.load %arg4[%c1_374, %c6_375, %c0_376] : memref<2x32x16xf32, #tpu.memory_space<vmem>>, vector<1x16x16xf32>
    %581 = vector.shape_cast %580 : vector<1x16x16xf32> to vector<16x16xf32>
    %c60 = arith.constant 60 : index
    %582 = memref.load %arg1[%c60] : memref<98xf32, #tpu.memory_space<smem>>
    %583 = vector.broadcast %582 : f32 to vector<16x16xf32>
    %584 = arith.mulf %583, %581 : vector<16x16xf32>
    %585 = arith.addf %579, %584 : vector<16x16xf32>
    %c1_377 = arith.constant 1 : index
    %c7_378 = arith.constant 7 : index
    %c0_379 = arith.constant 0 : index
    %586 = vector.load %arg4[%c1_377, %c7_378, %c0_379] : memref<2x32x16xf32, #tpu.memory_space<vmem>>, vector<1x16x16xf32>
    %587 = vector.shape_cast %586 : vector<1x16x16xf32> to vector<16x16xf32>
    %c67 = arith.constant 67 : index
    %588 = memref.load %arg1[%c67] : memref<98xf32, #tpu.memory_space<smem>>
    %589 = vector.broadcast %588 : f32 to vector<16x16xf32>
    %590 = arith.mulf %589, %587 : vector<16x16xf32>
    %591 = arith.addf %585, %590 : vector<16x16xf32>
    %c1_380 = arith.constant 1 : index
    %c8_381 = arith.constant 8 : index
    %c0_382 = arith.constant 0 : index
    %592 = vector.load %arg4[%c1_380, %c8_381, %c0_382] : memref<2x32x16xf32, #tpu.memory_space<vmem>>, vector<1x16x16xf32>
    %593 = vector.shape_cast %592 : vector<1x16x16xf32> to vector<16x16xf32>
    %c74 = arith.constant 74 : index
    %594 = memref.load %arg1[%c74] : memref<98xf32, #tpu.memory_space<smem>>
    %595 = vector.broadcast %594 : f32 to vector<16x16xf32>
    %596 = arith.mulf %595, %593 : vector<16x16xf32>
    %597 = arith.addf %591, %596 : vector<16x16xf32>
    %c1_383 = arith.constant 1 : index
    %c9_384 = arith.constant 9 : index
    %c0_385 = arith.constant 0 : index
    %598 = vector.load %arg4[%c1_383, %c9_384, %c0_385] : memref<2x32x16xf32, #tpu.memory_space<vmem>>, vector<1x16x16xf32>
    %599 = vector.shape_cast %598 : vector<1x16x16xf32> to vector<16x16xf32>
    %c81 = arith.constant 81 : index
    %600 = memref.load %arg1[%c81] : memref<98xf32, #tpu.memory_space<smem>>
    %601 = vector.broadcast %600 : f32 to vector<16x16xf32>
    %602 = arith.mulf %601, %599 : vector<16x16xf32>
    %603 = arith.addf %597, %602 : vector<16x16xf32>
    %c1_386 = arith.constant 1 : index
    %c10_387 = arith.constant 10 : index
    %c0_388 = arith.constant 0 : index
    %604 = vector.load %arg4[%c1_386, %c10_387, %c0_388] : memref<2x32x16xf32, #tpu.memory_space<vmem>>, vector<1x16x16xf32>
    %605 = vector.shape_cast %604 : vector<1x16x16xf32> to vector<16x16xf32>
    %c88 = arith.constant 88 : index
    %606 = memref.load %arg1[%c88] : memref<98xf32, #tpu.memory_space<smem>>
    %607 = vector.broadcast %606 : f32 to vector<16x16xf32>
    %608 = arith.mulf %607, %605 : vector<16x16xf32>
    %609 = arith.addf %603, %608 : vector<16x16xf32>
    %c1_389 = arith.constant 1 : index
    %c11_390 = arith.constant 11 : index
    %c0_391 = arith.constant 0 : index
    %610 = vector.load %arg4[%c1_389, %c11_390, %c0_391] : memref<2x32x16xf32, #tpu.memory_space<vmem>>, vector<1x16x16xf32>
    %611 = vector.shape_cast %610 : vector<1x16x16xf32> to vector<16x16xf32>
    %c95 = arith.constant 95 : index
    %612 = memref.load %arg1[%c95] : memref<98xf32, #tpu.memory_space<smem>>
    %613 = vector.broadcast %612 : f32 to vector<16x16xf32>
    %614 = arith.mulf %613, %611 : vector<16x16xf32>
    %615 = arith.addf %609, %614 : vector<16x16xf32>
    %c15_i32 = arith.constant 15 : i32
    %616 = tpu.dynamic_rotate %615 by %c15_i32 dim 1 : vector<16x16xf32>, i32 -> vector<16x16xf32>
    %c1_i32_392 = arith.constant 1 : i32
    %617 = vector.broadcast %c1_i32_392 : i32 to vector<16x16xi32>
    %618 = arith.addi %149, %617 : vector<16x16xi32>
    %c0_i32_393 = arith.constant 0 : i32
    %619 = vector.broadcast %c0_i32_393 : i32 to vector<16x16xi32>
    %620 = arith.cmpi sge, %618, %619 : vector<16x16xi32>
    %c1_i32_394 = arith.constant 1 : i32
    %621 = vector.broadcast %c1_i32_394 : i32 to vector<16x16xi32>
    %622 = arith.addi %149, %621 : vector<16x16xi32>
    %c16_i32_395 = arith.constant 16 : i32
    %623 = vector.broadcast %c16_i32_395 : i32 to vector<16x16xi32>
    %624 = arith.cmpi slt, %622, %623 : vector<16x16xi32>
    %625 = arith.andi %620, %624 : vector<16x16xi1>
    %cst_396 = arith.constant 0.000000e+00 : f32
    %626 = vector.broadcast %cst_396 : f32 to vector<16x16xf32>
    %627 = arith.select %625, %616, %626 : vector<16x16xi1>, vector<16x16xf32>
    %628 = arith.addf %530, %627 : vector<16x16xf32>
    %cst_397 = arith.constant 0.000000e+00 : f32
    %629 = vector.broadcast %cst_397 : f32 to vector<16x16xf32>
    %c0_398 = arith.constant 0 : index
    %c5_399 = arith.constant 5 : index
    %c0_400 = arith.constant 0 : index
    %630 = vector.load %arg4[%c0_398, %c5_399, %c0_400] : memref<2x32x16xf32, #tpu.memory_space<vmem>>, vector<1x16x16xf32>
    %631 = vector.shape_cast %630 : vector<1x16x16xf32> to vector<16x16xf32>
    %c5_401 = arith.constant 5 : index
    %632 = memref.load %arg1[%c5_401] : memref<98xf32, #tpu.memory_space<smem>>
    %633 = vector.broadcast %632 : f32 to vector<16x16xf32>
    %634 = arith.mulf %633, %631 : vector<16x16xf32>
    %635 = arith.addf %629, %634 : vector<16x16xf32>
    %c0_402 = arith.constant 0 : index
    %c6_403 = arith.constant 6 : index
    %c0_404 = arith.constant 0 : index
    %636 = vector.load %arg4[%c0_402, %c6_403, %c0_404] : memref<2x32x16xf32, #tpu.memory_space<vmem>>, vector<1x16x16xf32>
    %637 = vector.shape_cast %636 : vector<1x16x16xf32> to vector<16x16xf32>
    %c12_405 = arith.constant 12 : index
    %638 = memref.load %arg1[%c12_405] : memref<98xf32, #tpu.memory_space<smem>>
    %639 = vector.broadcast %638 : f32 to vector<16x16xf32>
    %640 = arith.mulf %639, %637 : vector<16x16xf32>
    %641 = arith.addf %635, %640 : vector<16x16xf32>
    %c0_406 = arith.constant 0 : index
    %c7_407 = arith.constant 7 : index
    %c0_408 = arith.constant 0 : index
    %642 = vector.load %arg4[%c0_406, %c7_407, %c0_408] : memref<2x32x16xf32, #tpu.memory_space<vmem>>, vector<1x16x16xf32>
    %643 = vector.shape_cast %642 : vector<1x16x16xf32> to vector<16x16xf32>
    %c19_409 = arith.constant 19 : index
    %644 = memref.load %arg1[%c19_409] : memref<98xf32, #tpu.memory_space<smem>>
    %645 = vector.broadcast %644 : f32 to vector<16x16xf32>
    %646 = arith.mulf %645, %643 : vector<16x16xf32>
    %647 = arith.addf %641, %646 : vector<16x16xf32>
    %c0_410 = arith.constant 0 : index
    %c8_411 = arith.constant 8 : index
    %c0_412 = arith.constant 0 : index
    %648 = vector.load %arg4[%c0_410, %c8_411, %c0_412] : memref<2x32x16xf32, #tpu.memory_space<vmem>>, vector<1x16x16xf32>
    %649 = vector.shape_cast %648 : vector<1x16x16xf32> to vector<16x16xf32>
    %c26 = arith.constant 26 : index
    %650 = memref.load %arg1[%c26] : memref<98xf32, #tpu.memory_space<smem>>
    %651 = vector.broadcast %650 : f32 to vector<16x16xf32>
    %652 = arith.mulf %651, %649 : vector<16x16xf32>
    %653 = arith.addf %647, %652 : vector<16x16xf32>
    %c0_413 = arith.constant 0 : index
    %c9_414 = arith.constant 9 : index
    %c0_415 = arith.constant 0 : index
    %654 = vector.load %arg4[%c0_413, %c9_414, %c0_415] : memref<2x32x16xf32, #tpu.memory_space<vmem>>, vector<1x16x16xf32>
    %655 = vector.shape_cast %654 : vector<1x16x16xf32> to vector<16x16xf32>
    %c33 = arith.constant 33 : index
    %656 = memref.load %arg1[%c33] : memref<98xf32, #tpu.memory_space<smem>>
    %657 = vector.broadcast %656 : f32 to vector<16x16xf32>
    %658 = arith.mulf %657, %655 : vector<16x16xf32>
    %659 = arith.addf %653, %658 : vector<16x16xf32>
    %c0_416 = arith.constant 0 : index
    %c10_417 = arith.constant 10 : index
    %c0_418 = arith.constant 0 : index
    %660 = vector.load %arg4[%c0_416, %c10_417, %c0_418] : memref<2x32x16xf32, #tpu.memory_space<vmem>>, vector<1x16x16xf32>
    %661 = vector.shape_cast %660 : vector<1x16x16xf32> to vector<16x16xf32>
    %c40 = arith.constant 40 : index
    %662 = memref.load %arg1[%c40] : memref<98xf32, #tpu.memory_space<smem>>
    %663 = vector.broadcast %662 : f32 to vector<16x16xf32>
    %664 = arith.mulf %663, %661 : vector<16x16xf32>
    %665 = arith.addf %659, %664 : vector<16x16xf32>
    %c0_419 = arith.constant 0 : index
    %c11_420 = arith.constant 11 : index
    %c0_421 = arith.constant 0 : index
    %666 = vector.load %arg4[%c0_419, %c11_420, %c0_421] : memref<2x32x16xf32, #tpu.memory_space<vmem>>, vector<1x16x16xf32>
    %667 = vector.shape_cast %666 : vector<1x16x16xf32> to vector<16x16xf32>
    %c47 = arith.constant 47 : index
    %668 = memref.load %arg1[%c47] : memref<98xf32, #tpu.memory_space<smem>>
    %669 = vector.broadcast %668 : f32 to vector<16x16xf32>
    %670 = arith.mulf %669, %667 : vector<16x16xf32>
    %671 = arith.addf %665, %670 : vector<16x16xf32>
    %c1_422 = arith.constant 1 : index
    %c5_423 = arith.constant 5 : index
    %c0_424 = arith.constant 0 : index
    %672 = vector.load %arg4[%c1_422, %c5_423, %c0_424] : memref<2x32x16xf32, #tpu.memory_space<vmem>>, vector<1x16x16xf32>
    %673 = vector.shape_cast %672 : vector<1x16x16xf32> to vector<16x16xf32>
    %c54 = arith.constant 54 : index
    %674 = memref.load %arg1[%c54] : memref<98xf32, #tpu.memory_space<smem>>
    %675 = vector.broadcast %674 : f32 to vector<16x16xf32>
    %676 = arith.mulf %675, %673 : vector<16x16xf32>
    %677 = arith.addf %671, %676 : vector<16x16xf32>
    %c1_425 = arith.constant 1 : index
    %c6_426 = arith.constant 6 : index
    %c0_427 = arith.constant 0 : index
    %678 = vector.load %arg4[%c1_425, %c6_426, %c0_427] : memref<2x32x16xf32, #tpu.memory_space<vmem>>, vector<1x16x16xf32>
    %679 = vector.shape_cast %678 : vector<1x16x16xf32> to vector<16x16xf32>
    %c61 = arith.constant 61 : index
    %680 = memref.load %arg1[%c61] : memref<98xf32, #tpu.memory_space<smem>>
    %681 = vector.broadcast %680 : f32 to vector<16x16xf32>
    %682 = arith.mulf %681, %679 : vector<16x16xf32>
    %683 = arith.addf %677, %682 : vector<16x16xf32>
    %c1_428 = arith.constant 1 : index
    %c7_429 = arith.constant 7 : index
    %c0_430 = arith.constant 0 : index
    %684 = vector.load %arg4[%c1_428, %c7_429, %c0_430] : memref<2x32x16xf32, #tpu.memory_space<vmem>>, vector<1x16x16xf32>
    %685 = vector.shape_cast %684 : vector<1x16x16xf32> to vector<16x16xf32>
    %c68 = arith.constant 68 : index
    %686 = memref.load %arg1[%c68] : memref<98xf32, #tpu.memory_space<smem>>
    %687 = vector.broadcast %686 : f32 to vector<16x16xf32>
    %688 = arith.mulf %687, %685 : vector<16x16xf32>
    %689 = arith.addf %683, %688 : vector<16x16xf32>
    %c1_431 = arith.constant 1 : index
    %c8_432 = arith.constant 8 : index
    %c0_433 = arith.constant 0 : index
    %690 = vector.load %arg4[%c1_431, %c8_432, %c0_433] : memref<2x32x16xf32, #tpu.memory_space<vmem>>, vector<1x16x16xf32>
    %691 = vector.shape_cast %690 : vector<1x16x16xf32> to vector<16x16xf32>
    %c75 = arith.constant 75 : index
    %692 = memref.load %arg1[%c75] : memref<98xf32, #tpu.memory_space<smem>>
    %693 = vector.broadcast %692 : f32 to vector<16x16xf32>
    %694 = arith.mulf %693, %691 : vector<16x16xf32>
    %695 = arith.addf %689, %694 : vector<16x16xf32>
    %c1_434 = arith.constant 1 : index
    %c9_435 = arith.constant 9 : index
    %c0_436 = arith.constant 0 : index
    %696 = vector.load %arg4[%c1_434, %c9_435, %c0_436] : memref<2x32x16xf32, #tpu.memory_space<vmem>>, vector<1x16x16xf32>
    %697 = vector.shape_cast %696 : vector<1x16x16xf32> to vector<16x16xf32>
    %c82 = arith.constant 82 : index
    %698 = memref.load %arg1[%c82] : memref<98xf32, #tpu.memory_space<smem>>
    %699 = vector.broadcast %698 : f32 to vector<16x16xf32>
    %700 = arith.mulf %699, %697 : vector<16x16xf32>
    %701 = arith.addf %695, %700 : vector<16x16xf32>
    %c1_437 = arith.constant 1 : index
    %c10_438 = arith.constant 10 : index
    %c0_439 = arith.constant 0 : index
    %702 = vector.load %arg4[%c1_437, %c10_438, %c0_439] : memref<2x32x16xf32, #tpu.memory_space<vmem>>, vector<1x16x16xf32>
    %703 = vector.shape_cast %702 : vector<1x16x16xf32> to vector<16x16xf32>
    %c89 = arith.constant 89 : index
    %704 = memref.load %arg1[%c89] : memref<98xf32, #tpu.memory_space<smem>>
    %705 = vector.broadcast %704 : f32 to vector<16x16xf32>
    %706 = arith.mulf %705, %703 : vector<16x16xf32>
    %707 = arith.addf %701, %706 : vector<16x16xf32>
    %c1_440 = arith.constant 1 : index
    %c11_441 = arith.constant 11 : index
    %c0_442 = arith.constant 0 : index
    %708 = vector.load %arg4[%c1_440, %c11_441, %c0_442] : memref<2x32x16xf32, #tpu.memory_space<vmem>>, vector<1x16x16xf32>
    %709 = vector.shape_cast %708 : vector<1x16x16xf32> to vector<16x16xf32>
    %c96_443 = arith.constant 96 : index
    %710 = memref.load %arg1[%c96_443] : memref<98xf32, #tpu.memory_space<smem>>
    %711 = vector.broadcast %710 : f32 to vector<16x16xf32>
    %712 = arith.mulf %711, %709 : vector<16x16xf32>
    %713 = arith.addf %707, %712 : vector<16x16xf32>
    %c14_i32 = arith.constant 14 : i32
    %714 = tpu.dynamic_rotate %713 by %c14_i32 dim 1 : vector<16x16xf32>, i32 -> vector<16x16xf32>
    %c2_i32_444 = arith.constant 2 : i32
    %715 = vector.broadcast %c2_i32_444 : i32 to vector<16x16xi32>
    %716 = arith.addi %149, %715 : vector<16x16xi32>
    %c0_i32_445 = arith.constant 0 : i32
    %717 = vector.broadcast %c0_i32_445 : i32 to vector<16x16xi32>
    %718 = arith.cmpi sge, %716, %717 : vector<16x16xi32>
    %c2_i32_446 = arith.constant 2 : i32
    %719 = vector.broadcast %c2_i32_446 : i32 to vector<16x16xi32>
    %720 = arith.addi %149, %719 : vector<16x16xi32>
    %c16_i32_447 = arith.constant 16 : i32
    %721 = vector.broadcast %c16_i32_447 : i32 to vector<16x16xi32>
    %722 = arith.cmpi slt, %720, %721 : vector<16x16xi32>
    %723 = arith.andi %718, %722 : vector<16x16xi1>
    %cst_448 = arith.constant 0.000000e+00 : f32
    %724 = vector.broadcast %cst_448 : f32 to vector<16x16xf32>
    %725 = arith.select %723, %714, %724 : vector<16x16xi1>, vector<16x16xf32>
    %726 = arith.addf %628, %725 : vector<16x16xf32>
    %cst_449 = arith.constant 0.000000e+00 : f32
    %727 = vector.broadcast %cst_449 : f32 to vector<16x16xf32>
    %c0_450 = arith.constant 0 : index
    %c5_451 = arith.constant 5 : index
    %c0_452 = arith.constant 0 : index
    %728 = vector.load %arg4[%c0_450, %c5_451, %c0_452] : memref<2x32x16xf32, #tpu.memory_space<vmem>>, vector<1x16x16xf32>
    %729 = vector.shape_cast %728 : vector<1x16x16xf32> to vector<16x16xf32>
    %c6_453 = arith.constant 6 : index
    %730 = memref.load %arg1[%c6_453] : memref<98xf32, #tpu.memory_space<smem>>
    %731 = vector.broadcast %730 : f32 to vector<16x16xf32>
    %732 = arith.mulf %731, %729 : vector<16x16xf32>
    %733 = arith.addf %727, %732 : vector<16x16xf32>
    %c0_454 = arith.constant 0 : index
    %c6_455 = arith.constant 6 : index
    %c0_456 = arith.constant 0 : index
    %734 = vector.load %arg4[%c0_454, %c6_455, %c0_456] : memref<2x32x16xf32, #tpu.memory_space<vmem>>, vector<1x16x16xf32>
    %735 = vector.shape_cast %734 : vector<1x16x16xf32> to vector<16x16xf32>
    %c13_457 = arith.constant 13 : index
    %736 = memref.load %arg1[%c13_457] : memref<98xf32, #tpu.memory_space<smem>>
    %737 = vector.broadcast %736 : f32 to vector<16x16xf32>
    %738 = arith.mulf %737, %735 : vector<16x16xf32>
    %739 = arith.addf %733, %738 : vector<16x16xf32>
    %c0_458 = arith.constant 0 : index
    %c7_459 = arith.constant 7 : index
    %c0_460 = arith.constant 0 : index
    %740 = vector.load %arg4[%c0_458, %c7_459, %c0_460] : memref<2x32x16xf32, #tpu.memory_space<vmem>>, vector<1x16x16xf32>
    %741 = vector.shape_cast %740 : vector<1x16x16xf32> to vector<16x16xf32>
    %c20_461 = arith.constant 20 : index
    %742 = memref.load %arg1[%c20_461] : memref<98xf32, #tpu.memory_space<smem>>
    %743 = vector.broadcast %742 : f32 to vector<16x16xf32>
    %744 = arith.mulf %743, %741 : vector<16x16xf32>
    %745 = arith.addf %739, %744 : vector<16x16xf32>
    %c0_462 = arith.constant 0 : index
    %c8_463 = arith.constant 8 : index
    %c0_464 = arith.constant 0 : index
    %746 = vector.load %arg4[%c0_462, %c8_463, %c0_464] : memref<2x32x16xf32, #tpu.memory_space<vmem>>, vector<1x16x16xf32>
    %747 = vector.shape_cast %746 : vector<1x16x16xf32> to vector<16x16xf32>
    %c27 = arith.constant 27 : index
    %748 = memref.load %arg1[%c27] : memref<98xf32, #tpu.memory_space<smem>>
    %749 = vector.broadcast %748 : f32 to vector<16x16xf32>
    %750 = arith.mulf %749, %747 : vector<16x16xf32>
    %751 = arith.addf %745, %750 : vector<16x16xf32>
    %c0_465 = arith.constant 0 : index
    %c9_466 = arith.constant 9 : index
    %c0_467 = arith.constant 0 : index
    %752 = vector.load %arg4[%c0_465, %c9_466, %c0_467] : memref<2x32x16xf32, #tpu.memory_space<vmem>>, vector<1x16x16xf32>
    %753 = vector.shape_cast %752 : vector<1x16x16xf32> to vector<16x16xf32>
    %c34 = arith.constant 34 : index
    %754 = memref.load %arg1[%c34] : memref<98xf32, #tpu.memory_space<smem>>
    %755 = vector.broadcast %754 : f32 to vector<16x16xf32>
    %756 = arith.mulf %755, %753 : vector<16x16xf32>
    %757 = arith.addf %751, %756 : vector<16x16xf32>
    %c0_468 = arith.constant 0 : index
    %c10_469 = arith.constant 10 : index
    %c0_470 = arith.constant 0 : index
    %758 = vector.load %arg4[%c0_468, %c10_469, %c0_470] : memref<2x32x16xf32, #tpu.memory_space<vmem>>, vector<1x16x16xf32>
    %759 = vector.shape_cast %758 : vector<1x16x16xf32> to vector<16x16xf32>
    %c41 = arith.constant 41 : index
    %760 = memref.load %arg1[%c41] : memref<98xf32, #tpu.memory_space<smem>>
    %761 = vector.broadcast %760 : f32 to vector<16x16xf32>
    %762 = arith.mulf %761, %759 : vector<16x16xf32>
    %763 = arith.addf %757, %762 : vector<16x16xf32>
    %c0_471 = arith.constant 0 : index
    %c11_472 = arith.constant 11 : index
    %c0_473 = arith.constant 0 : index
    %764 = vector.load %arg4[%c0_471, %c11_472, %c0_473] : memref<2x32x16xf32, #tpu.memory_space<vmem>>, vector<1x16x16xf32>
    %765 = vector.shape_cast %764 : vector<1x16x16xf32> to vector<16x16xf32>
    %c48_474 = arith.constant 48 : index
    %766 = memref.load %arg1[%c48_474] : memref<98xf32, #tpu.memory_space<smem>>
    %767 = vector.broadcast %766 : f32 to vector<16x16xf32>
    %768 = arith.mulf %767, %765 : vector<16x16xf32>
    %769 = arith.addf %763, %768 : vector<16x16xf32>
    %c1_475 = arith.constant 1 : index
    %c5_476 = arith.constant 5 : index
    %c0_477 = arith.constant 0 : index
    %770 = vector.load %arg4[%c1_475, %c5_476, %c0_477] : memref<2x32x16xf32, #tpu.memory_space<vmem>>, vector<1x16x16xf32>
    %771 = vector.shape_cast %770 : vector<1x16x16xf32> to vector<16x16xf32>
    %c55 = arith.constant 55 : index
    %772 = memref.load %arg1[%c55] : memref<98xf32, #tpu.memory_space<smem>>
    %773 = vector.broadcast %772 : f32 to vector<16x16xf32>
    %774 = arith.mulf %773, %771 : vector<16x16xf32>
    %775 = arith.addf %769, %774 : vector<16x16xf32>
    %c1_478 = arith.constant 1 : index
    %c6_479 = arith.constant 6 : index
    %c0_480 = arith.constant 0 : index
    %776 = vector.load %arg4[%c1_478, %c6_479, %c0_480] : memref<2x32x16xf32, #tpu.memory_space<vmem>>, vector<1x16x16xf32>
    %777 = vector.shape_cast %776 : vector<1x16x16xf32> to vector<16x16xf32>
    %c62 = arith.constant 62 : index
    %778 = memref.load %arg1[%c62] : memref<98xf32, #tpu.memory_space<smem>>
    %779 = vector.broadcast %778 : f32 to vector<16x16xf32>
    %780 = arith.mulf %779, %777 : vector<16x16xf32>
    %781 = arith.addf %775, %780 : vector<16x16xf32>
    %c1_481 = arith.constant 1 : index
    %c7_482 = arith.constant 7 : index
    %c0_483 = arith.constant 0 : index
    %782 = vector.load %arg4[%c1_481, %c7_482, %c0_483] : memref<2x32x16xf32, #tpu.memory_space<vmem>>, vector<1x16x16xf32>
    %783 = vector.shape_cast %782 : vector<1x16x16xf32> to vector<16x16xf32>
    %c69 = arith.constant 69 : index
    %784 = memref.load %arg1[%c69] : memref<98xf32, #tpu.memory_space<smem>>
    %785 = vector.broadcast %784 : f32 to vector<16x16xf32>
    %786 = arith.mulf %785, %783 : vector<16x16xf32>
    %787 = arith.addf %781, %786 : vector<16x16xf32>
    %c1_484 = arith.constant 1 : index
    %c8_485 = arith.constant 8 : index
    %c0_486 = arith.constant 0 : index
    %788 = vector.load %arg4[%c1_484, %c8_485, %c0_486] : memref<2x32x16xf32, #tpu.memory_space<vmem>>, vector<1x16x16xf32>
    %789 = vector.shape_cast %788 : vector<1x16x16xf32> to vector<16x16xf32>
    %c76 = arith.constant 76 : index
    %790 = memref.load %arg1[%c76] : memref<98xf32, #tpu.memory_space<smem>>
    %791 = vector.broadcast %790 : f32 to vector<16x16xf32>
    %792 = arith.mulf %791, %789 : vector<16x16xf32>
    %793 = arith.addf %787, %792 : vector<16x16xf32>
    %c1_487 = arith.constant 1 : index
    %c9_488 = arith.constant 9 : index
    %c0_489 = arith.constant 0 : index
    %794 = vector.load %arg4[%c1_487, %c9_488, %c0_489] : memref<2x32x16xf32, #tpu.memory_space<vmem>>, vector<1x16x16xf32>
    %795 = vector.shape_cast %794 : vector<1x16x16xf32> to vector<16x16xf32>
    %c83 = arith.constant 83 : index
    %796 = memref.load %arg1[%c83] : memref<98xf32, #tpu.memory_space<smem>>
    %797 = vector.broadcast %796 : f32 to vector<16x16xf32>
    %798 = arith.mulf %797, %795 : vector<16x16xf32>
    %799 = arith.addf %793, %798 : vector<16x16xf32>
    %c1_490 = arith.constant 1 : index
    %c10_491 = arith.constant 10 : index
    %c0_492 = arith.constant 0 : index
    %800 = vector.load %arg4[%c1_490, %c10_491, %c0_492] : memref<2x32x16xf32, #tpu.memory_space<vmem>>, vector<1x16x16xf32>
    %801 = vector.shape_cast %800 : vector<1x16x16xf32> to vector<16x16xf32>
    %c90 = arith.constant 90 : index
    %802 = memref.load %arg1[%c90] : memref<98xf32, #tpu.memory_space<smem>>
    %803 = vector.broadcast %802 : f32 to vector<16x16xf32>
    %804 = arith.mulf %803, %801 : vector<16x16xf32>
    %805 = arith.addf %799, %804 : vector<16x16xf32>
    %c1_493 = arith.constant 1 : index
    %c11_494 = arith.constant 11 : index
    %c0_495 = arith.constant 0 : index
    %806 = vector.load %arg4[%c1_493, %c11_494, %c0_495] : memref<2x32x16xf32, #tpu.memory_space<vmem>>, vector<1x16x16xf32>
    %807 = vector.shape_cast %806 : vector<1x16x16xf32> to vector<16x16xf32>
    %c97 = arith.constant 97 : index
    %808 = memref.load %arg1[%c97] : memref<98xf32, #tpu.memory_space<smem>>
    %809 = vector.broadcast %808 : f32 to vector<16x16xf32>
    %810 = arith.mulf %809, %807 : vector<16x16xf32>
    %811 = arith.addf %805, %810 : vector<16x16xf32>
    %c13_i32 = arith.constant 13 : i32
    %812 = tpu.dynamic_rotate %811 by %c13_i32 dim 1 : vector<16x16xf32>, i32 -> vector<16x16xf32>
    %c3_i32_496 = arith.constant 3 : i32
    %813 = vector.broadcast %c3_i32_496 : i32 to vector<16x16xi32>
    %814 = arith.addi %149, %813 : vector<16x16xi32>
    %c0_i32_497 = arith.constant 0 : i32
    %815 = vector.broadcast %c0_i32_497 : i32 to vector<16x16xi32>
    %816 = arith.cmpi sge, %814, %815 : vector<16x16xi32>
    %c3_i32_498 = arith.constant 3 : i32
    %817 = vector.broadcast %c3_i32_498 : i32 to vector<16x16xi32>
    %818 = arith.addi %149, %817 : vector<16x16xi32>
    %c16_i32_499 = arith.constant 16 : i32
    %819 = vector.broadcast %c16_i32_499 : i32 to vector<16x16xi32>
    %820 = arith.cmpi slt, %818, %819 : vector<16x16xi32>
    %821 = arith.andi %816, %820 : vector<16x16xi1>
    %cst_500 = arith.constant 0.000000e+00 : f32
    %822 = vector.broadcast %cst_500 : f32 to vector<16x16xf32>
    %823 = arith.select %821, %812, %822 : vector<16x16xi1>, vector<16x16xf32>
    %824 = arith.addf %726, %823 : vector<16x16xf32>
    %825 = arith.negf %824 : vector<16x16xf32>
    %826 = math.exp %825 : vector<16x16xf32>
    %cst_501 = arith.constant 1.000000e+00 : f32
    %827 = vector.broadcast %cst_501 : f32 to vector<16x16xf32>
    %828 = arith.addf %827, %826 : vector<16x16xf32>
    %829 = arith.divf %827, %828 : vector<16x16xf32>
    %830 = vector.extract_strided_slice %829 {offsets = [0, 0], sizes = [1, 16], strides = [1, 1]} : vector<16x16xf32> to vector<1x16xf32>
    %c2_502 = arith.constant 2 : index
    %c0_503 = arith.constant 0 : index
    %831 = vector.load %arg5[%c2_502, %c0_503] : memref<3x256xf32, #tpu.memory_space<vmem>>, vector<1x16xf32>
    tpu.vector_store %arg5[%c2_502, %c0_503], %830 {strides = array<i32>} : memref<3x256xf32, #tpu.memory_space<vmem>>, vector<1x16xf32>,
    %832 = vector.extract_strided_slice %829 {offsets = [1, 0], sizes = [1, 16], strides = [1, 1]} : vector<16x16xf32> to vector<1x16xf32>
    %c2_504 = arith.constant 2 : index
    %c16_505 = arith.constant 16 : index
    %833 = vector.load %arg5[%c2_504, %c16_505] : memref<3x256xf32, #tpu.memory_space<vmem>>, vector<1x16xf32>
    tpu.vector_store %arg5[%c2_504, %c16_505], %832 {strides = array<i32>} : memref<3x256xf32, #tpu.memory_space<vmem>>, vector<1x16xf32>,
    %834 = vector.extract_strided_slice %829 {offsets = [2, 0], sizes = [1, 16], strides = [1, 1]} : vector<16x16xf32> to vector<1x16xf32>
    %c2_506 = arith.constant 2 : index
    %c32_507 = arith.constant 32 : index
    %835 = vector.load %arg5[%c2_506, %c32_507] : memref<3x256xf32, #tpu.memory_space<vmem>>, vector<1x16xf32>
    tpu.vector_store %arg5[%c2_506, %c32_507], %834 {strides = array<i32>} : memref<3x256xf32, #tpu.memory_space<vmem>>, vector<1x16xf32>,
    %836 = vector.extract_strided_slice %829 {offsets = [3, 0], sizes = [1, 16], strides = [1, 1]} : vector<16x16xf32> to vector<1x16xf32>
    %c2_508 = arith.constant 2 : index
    %c48_509 = arith.constant 48 : index
    %837 = vector.load %arg5[%c2_508, %c48_509] : memref<3x256xf32, #tpu.memory_space<vmem>>, vector<1x16xf32>
    tpu.vector_store %arg5[%c2_508, %c48_509], %836 {strides = array<i32>} : memref<3x256xf32, #tpu.memory_space<vmem>>, vector<1x16xf32>,
    %838 = vector.extract_strided_slice %829 {offsets = [4, 0], sizes = [1, 16], strides = [1, 1]} : vector<16x16xf32> to vector<1x16xf32>
    %c2_510 = arith.constant 2 : index
    %c64_511 = arith.constant 64 : index
    %839 = vector.load %arg5[%c2_510, %c64_511] : memref<3x256xf32, #tpu.memory_space<vmem>>, vector<1x16xf32>
    tpu.vector_store %arg5[%c2_510, %c64_511], %838 {strides = array<i32>} : memref<3x256xf32, #tpu.memory_space<vmem>>, vector<1x16xf32>,
    %840 = vector.extract_strided_slice %829 {offsets = [5, 0], sizes = [1, 16], strides = [1, 1]} : vector<16x16xf32> to vector<1x16xf32>
    %c2_512 = arith.constant 2 : index
    %c80_513 = arith.constant 80 : index
    %841 = vector.load %arg5[%c2_512, %c80_513] : memref<3x256xf32, #tpu.memory_space<vmem>>, vector<1x16xf32>
    tpu.vector_store %arg5[%c2_512, %c80_513], %840 {strides = array<i32>} : memref<3x256xf32, #tpu.memory_space<vmem>>, vector<1x16xf32>,
    %842 = vector.extract_strided_slice %829 {offsets = [6, 0], sizes = [1, 16], strides = [1, 1]} : vector<16x16xf32> to vector<1x16xf32>
    %c2_514 = arith.constant 2 : index
    %c96_515 = arith.constant 96 : index
    %843 = vector.load %arg5[%c2_514, %c96_515] : memref<3x256xf32, #tpu.memory_space<vmem>>, vector<1x16xf32>
    tpu.vector_store %arg5[%c2_514, %c96_515], %842 {strides = array<i32>} : memref<3x256xf32, #tpu.memory_space<vmem>>, vector<1x16xf32>,
    %844 = vector.extract_strided_slice %829 {offsets = [7, 0], sizes = [1, 16], strides = [1, 1]} : vector<16x16xf32> to vector<1x16xf32>
    %c2_516 = arith.constant 2 : index
    %c112_517 = arith.constant 112 : index
    %845 = vector.load %arg5[%c2_516, %c112_517] : memref<3x256xf32, #tpu.memory_space<vmem>>, vector<1x16xf32>
    tpu.vector_store %arg5[%c2_516, %c112_517], %844 {strides = array<i32>} : memref<3x256xf32, #tpu.memory_space<vmem>>, vector<1x16xf32>,
    %846 = vector.extract_strided_slice %829 {offsets = [8, 0], sizes = [1, 16], strides = [1, 1]} : vector<16x16xf32> to vector<1x16xf32>
    %c2_518 = arith.constant 2 : index
    %c128_519 = arith.constant 128 : index
    %847 = vector.load %arg5[%c2_518, %c128_519] : memref<3x256xf32, #tpu.memory_space<vmem>>, vector<1x16xf32>
    tpu.vector_store %arg5[%c2_518, %c128_519], %846 {strides = array<i32>} : memref<3x256xf32, #tpu.memory_space<vmem>>, vector<1x16xf32>,
    %848 = vector.extract_strided_slice %829 {offsets = [9, 0], sizes = [1, 16], strides = [1, 1]} : vector<16x16xf32> to vector<1x16xf32>
    %c2_520 = arith.constant 2 : index
    %c144_521 = arith.constant 144 : index
    %849 = vector.load %arg5[%c2_520, %c144_521] : memref<3x256xf32, #tpu.memory_space<vmem>>, vector<1x16xf32>
    tpu.vector_store %arg5[%c2_520, %c144_521], %848 {strides = array<i32>} : memref<3x256xf32, #tpu.memory_space<vmem>>, vector<1x16xf32>,
    %850 = vector.extract_strided_slice %829 {offsets = [10, 0], sizes = [1, 16], strides = [1, 1]} : vector<16x16xf32> to vector<1x16xf32>
    %c2_522 = arith.constant 2 : index
    %c160_523 = arith.constant 160 : index
    %851 = vector.load %arg5[%c2_522, %c160_523] : memref<3x256xf32, #tpu.memory_space<vmem>>, vector<1x16xf32>
    tpu.vector_store %arg5[%c2_522, %c160_523], %850 {strides = array<i32>} : memref<3x256xf32, #tpu.memory_space<vmem>>, vector<1x16xf32>,
    %852 = vector.extract_strided_slice %829 {offsets = [11, 0], sizes = [1, 16], strides = [1, 1]} : vector<16x16xf32> to vector<1x16xf32>
    %c2_524 = arith.constant 2 : index
    %c176_525 = arith.constant 176 : index
    %853 = vector.load %arg5[%c2_524, %c176_525] : memref<3x256xf32, #tpu.memory_space<vmem>>, vector<1x16xf32>
    tpu.vector_store %arg5[%c2_524, %c176_525], %852 {strides = array<i32>} : memref<3x256xf32, #tpu.memory_space<vmem>>, vector<1x16xf32>,
    %854 = vector.extract_strided_slice %829 {offsets = [12, 0], sizes = [1, 16], strides = [1, 1]} : vector<16x16xf32> to vector<1x16xf32>
    %c2_526 = arith.constant 2 : index
    %c192_527 = arith.constant 192 : index
    %855 = vector.load %arg5[%c2_526, %c192_527] : memref<3x256xf32, #tpu.memory_space<vmem>>, vector<1x16xf32>
    tpu.vector_store %arg5[%c2_526, %c192_527], %854 {strides = array<i32>} : memref<3x256xf32, #tpu.memory_space<vmem>>, vector<1x16xf32>,
    %856 = vector.extract_strided_slice %829 {offsets = [13, 0], sizes = [1, 16], strides = [1, 1]} : vector<16x16xf32> to vector<1x16xf32>
    %c2_528 = arith.constant 2 : index
    %c208_529 = arith.constant 208 : index
    %857 = vector.load %arg5[%c2_528, %c208_529] : memref<3x256xf32, #tpu.memory_space<vmem>>, vector<1x16xf32>
    tpu.vector_store %arg5[%c2_528, %c208_529], %856 {strides = array<i32>} : memref<3x256xf32, #tpu.memory_space<vmem>>, vector<1x16xf32>,
    %858 = vector.extract_strided_slice %829 {offsets = [14, 0], sizes = [1, 16], strides = [1, 1]} : vector<16x16xf32> to vector<1x16xf32>
    %c2_530 = arith.constant 2 : index
    %c224_531 = arith.constant 224 : index
    %859 = vector.load %arg5[%c2_530, %c224_531] : memref<3x256xf32, #tpu.memory_space<vmem>>, vector<1x16xf32>
    tpu.vector_store %arg5[%c2_530, %c224_531], %858 {strides = array<i32>} : memref<3x256xf32, #tpu.memory_space<vmem>>, vector<1x16xf32>,
    %860 = vector.extract_strided_slice %829 {offsets = [15, 0], sizes = [1, 16], strides = [1, 1]} : vector<16x16xf32> to vector<1x16xf32>
    %c2_532 = arith.constant 2 : index
    %c240_533 = arith.constant 240 : index
    %861 = vector.load %arg5[%c2_532, %c240_533] : memref<3x256xf32, #tpu.memory_space<vmem>>, vector<1x16xf32>
    tpu.vector_store %arg5[%c2_532, %c240_533], %860 {strides = array<i32>} : memref<3x256xf32, #tpu.memory_space<vmem>>, vector<1x16xf32>,
    %c2_534 = arith.constant 2 : index
    %c0_535 = arith.constant 0 : index
    %862 = vector.load %arg5[%c2_534, %c0_535] : memref<3x256xf32, #tpu.memory_space<vmem>>, vector<1x256xf32>
    %c0_536 = arith.constant 0 : index
    %c0_537 = arith.constant 0 : index
    %c0_538 = arith.constant 0 : index
    %863 = vector.load %arg2[%c0_536, %c0_537, %c0_538] : memref<1x4x256xf32, #tpu.memory_space<vmem>>, vector<1x1x256xf32>
    %864 = vector.shape_cast %863 : vector<1x1x256xf32> to vector<1x256xf32>
    %865 = arith.mulf %864, %862 : vector<1x256xf32>
    %c0_539 = arith.constant 0 : index
    %c0_540 = arith.constant 0 : index
    %c0_541 = arith.constant 0 : index
    %866 = vector.load %arg3[%c0_539, %c0_540, %c0_541] : memref<1x4x256xf32, #tpu.memory_space<vmem>>, vector<1x1x256xf32>
    %867 = vector.shape_cast %866 : vector<1x1x256xf32> to vector<1x256xf32>
    %868 = vector.shape_cast %865 : vector<1x256xf32> to vector<1x1x256xf32>
    tpu.vector_store %arg3[%c0_539, %c0_540, %c0_541], %868 {strides = array<i32>} : memref<1x4x256xf32, #tpu.memory_space<vmem>>, vector<1x1x256xf32>,
    %c0_542 = arith.constant 0 : index
    %c1_543 = arith.constant 1 : index
    %c0_544 = arith.constant 0 : index
    %869 = vector.load %arg2[%c0_542, %c1_543, %c0_544] : memref<1x4x256xf32, #tpu.memory_space<vmem>>, vector<1x1x256xf32>
    %870 = vector.shape_cast %869 : vector<1x1x256xf32> to vector<1x256xf32>
    %871 = arith.mulf %870, %862 : vector<1x256xf32>
    %c0_545 = arith.constant 0 : index
    %c1_546 = arith.constant 1 : index
    %c0_547 = arith.constant 0 : index
    %872 = vector.load %arg3[%c0_545, %c1_546, %c0_547] : memref<1x4x256xf32, #tpu.memory_space<vmem>>, vector<1x1x256xf32>
    %873 = vector.shape_cast %872 : vector<1x1x256xf32> to vector<1x256xf32>
    %874 = vector.shape_cast %871 : vector<1x256xf32> to vector<1x1x256xf32>
    tpu.vector_store %arg3[%c0_545, %c1_546, %c0_547], %874 {strides = array<i32>} : memref<1x4x256xf32, #tpu.memory_space<vmem>>, vector<1x1x256xf32>,
    %c0_548 = arith.constant 0 : index
    %c2_549 = arith.constant 2 : index
    %c0_550 = arith.constant 0 : index
    %875 = vector.load %arg2[%c0_548, %c2_549, %c0_550] : memref<1x4x256xf32, #tpu.memory_space<vmem>>, vector<1x1x256xf32>
    %876 = vector.shape_cast %875 : vector<1x1x256xf32> to vector<1x256xf32>
    %877 = arith.mulf %876, %862 : vector<1x256xf32>
    %c0_551 = arith.constant 0 : index
    %c2_552 = arith.constant 2 : index
    %c0_553 = arith.constant 0 : index
    %878 = vector.load %arg3[%c0_551, %c2_552, %c0_553] : memref<1x4x256xf32, #tpu.memory_space<vmem>>, vector<1x1x256xf32>
    %879 = vector.shape_cast %878 : vector<1x1x256xf32> to vector<1x256xf32>
    %880 = vector.shape_cast %877 : vector<1x256xf32> to vector<1x1x256xf32>
    tpu.vector_store %arg3[%c0_551, %c2_552, %c0_553], %880 {strides = array<i32>} : memref<1x4x256xf32, #tpu.memory_space<vmem>>, vector<1x1x256xf32>,
    %c0_554 = arith.constant 0 : index
    %c3_555 = arith.constant 3 : index
    %c0_556 = arith.constant 0 : index
    %881 = vector.load %arg2[%c0_554, %c3_555, %c0_556] : memref<1x4x256xf32, #tpu.memory_space<vmem>>, vector<1x1x256xf32>
    %882 = vector.shape_cast %881 : vector<1x1x256xf32> to vector<1x256xf32>
    %883 = arith.mulf %882, %862 : vector<1x256xf32>
    %c0_557 = arith.constant 0 : index
    %c3_558 = arith.constant 3 : index
    %c0_559 = arith.constant 0 : index
    %884 = vector.load %arg3[%c0_557, %c3_558, %c0_559] : memref<1x4x256xf32, #tpu.memory_space<vmem>>, vector<1x1x256xf32>
    %885 = vector.shape_cast %884 : vector<1x1x256xf32> to vector<1x256xf32>
    %886 = vector.shape_cast %883 : vector<1x256xf32> to vector<1x1x256xf32>
    tpu.vector_store %arg3[%c0_557, %c3_558, %c0_559], %886 {strides = array<i32>} : memref<1x4x256xf32, #tpu.memory_space<vmem>>, vector<1x1x256xf32>,
    return
  }
  func.func @transform_0(%arg0: i32) -> i32 {
    %c0_i32 = arith.constant 0 : i32
    %c0_i32_0 = arith.constant 0 : i32
    return %c0_i32 : i32
  }
  func.func @transform_1(%arg0: i32) -> (i32, i32, i32) {
    %c0_i32 = arith.constant 0 : i32
    %c0_i32_0 = arith.constant 0 : i32
    %c0_i32_1 = arith.constant 0 : i32
    return %arg0, %c0_i32, %c0_i32_0 : i32, i32, i32
  }
  func.func @transform_2(%arg0: i32) -> (i32, i32, i32) {
    %c0_i32 = arith.constant 0 : i32
    %c0_i32_0 = arith.constant 0 : i32
    %c0_i32_1 = arith.constant 0 : i32
    return %arg0, %c0_i32, %c0_i32_0 : i32, i32, i32
  }
}

</mosaic_0001>

<llo_original>
// kernel: tpu_custom_call.1
$region0: #{tpu_custom_call.1}
  #allocation0 [shape = 'u32[]', space=smem, size = 0x4, offset = 0x4, fixed_abs, tag = 'smem constant byte address 0x4 - core index']
  #allocation1 [shape = 'u32[144,128]{1,0:T(1,128)}', space=vmem, size = 0x12000, scoped, tag = 'internal scratch']
  #allocation2 [shape = 'f32[2,32,16]{2,1,0:T(8,128)}', space=vmem, size = 0x8000, scoped, tag = 'scratch operand']
  #allocation3 [shape = 'f32[3,256]{1,0:T(4,128)}', space=vmem, size = 0x1000, scoped, tag = 'scratch operand']
  %s0 = inlined_call_operand.hbm [shape: f32[98], index: 0, kind: input, shape index: {}]
  %s1 = inlined_call_operand.hbm [shape: f32[2,4,256], index: 1, kind: input, shape index: {}]
  %s2 = inlined_call_operand.hbm [shape: f32[2,4,256], index: 2, kind: output, shape index: {}]
  %s3 = sld [smem:[#allocation0]]
  $region49: #{tpu_custom_call.1} parent=0
    _
  %s5 = ssub.s32 1, %s3
  %s6 = scalar_select 0, %s5, %s3
  $region1: #{tpu_custom_call.1} parent=0
    #allocation4 [shape = 'u8[512]{0}', space=smem, size = 0x200, scoped, tag = 'input window, operand 0, single buffered']
    #allocation5 [shape = 's32[2]{0}', space=sflag, size = 0x8, scoped, tag = 'scoped memory for tpu_custom_call.1']
    #allocation6 [shape = 's32[2]{0}', space=sflag, size = 0x8, scoped, tag = 'scoped memory for tpu_custom_call.1']
    #allocation7 [shape = 's32[2]{0}', space=sflag, size = 0x8, scoped, tag = 'scoped memory for tpu_custom_call.1']
    #allocation8 [shape = 'u8[8192]{0}', space=vmem, size = 0x2000, scoped, tag = 'input window, operand 1']
    #allocation9 [shape = 'u8[8192]{0}', space=vmem, size = 0x2000, scoped, tag = 'output window, operand 0']
    %7 = vsyncpa [#allocation7], 0
    %8 = vsyncpa [#allocation5], 0
    %s9 = scalar_lea.sflag [#allocation5], 1
    %10 = vsyncpa %s9, 0
    %11 = vsyncpa [#allocation6], 0
    %s12 = scalar_lea.sflag [#allocation6], 1
    %13 = vsyncpa %s12, 0
    loop: start=0, step=1, limit=4
    $region2: #{tpu_custom_call.1} parent=1 // loop_pre_header
      _
    $region3: #{tpu_custom_call.1} parent=1 // loop_header
      %s15 = sphi 0, %s19
      %p16 = scmp.ge.s32.totalorder %s15, 4
      %s23 = sphi 0, %s23
      %s25 = sphi 0, %s23
      %s26 = sphi 0, %s25
      %s40 = sphi 0, %s26
      %s46 = sphi 0, %s48
      %s49 = sphi 0, %s46
      %s50 = sphi 0, %s49
      %s66 = sphi 0, %s50
      %s72 = sphi 0, %s74
      %s75 = sphi 0, %s72
      %s76 = sphi 0, %s75
      %s92 = sphi 0, %s76
    $region4: #{tpu_custom_call.1} parent=1 // loop_header_branch
      %18 = sbr.rel (%p16) target = $region8
    $region5: #{tpu_custom_call.1} parent=1 // loop_body
      %s20 = ssub.s32 %s15, 1
      %s21 = ssub.s32 %s15, 2
      %s22 = sadd.s32 %s15, 1
      %s24 = sadd.s32 %s23, 1
      %p27 = scmp.eq.s32.totalorder %s15, 1
      %p28 = scmp.ne.s32.totalorder %s23, %s25
      %p29 = scmp.eq.s32.totalorder %s15, 0
      %p30 = por %p28, %p29
      %p31 = scmp.ne.s32.totalorder %s23, %s25
      %p32 = scmp.eq.s32.totalorder %s20, 1
      %p33 = por %p31, %p32
      %p34 = scmp.ne.s32.totalorder %s25, %s26
      %p35 = scmp.eq.s32.totalorder %s20, 0
      %p36 = por %p34, %p35
      %p37 = scmp.ne.s32.totalorder %s25, %s26
      %p38 = scmp.eq.s32.totalorder %s21, 1
      %p39 = por %p37, %p38
      %p41 = scmp.ne.s32.totalorder %s26, %s40
      %p42 = scmp.eq.s32.totalorder %s21, 0
      %p43 = por %p41, %p42
      %s44 = ssub.s32 %s15, %s22
      %p45 = scmp.eq.s32.totalorder %s44, 0
      %s47 = sadd.s32 %s46, 1
      %s48 = scalar_select %p45, %s46, %s47
      %p51 = pneg %p45
      %p52 = scmp.eq.s32.totalorder %s15, 1
      %p53 = por %p51, %p52
      %p54 = scmp.ne.s32.totalorder %s46, %s49
      %p55 = scmp.eq.s32.totalorder %s15, 0
      %p56 = por %p54, %p55
      %p57 = scmp.ne.s32.totalorder %s46, %s49
      %p58 = scmp.eq.s32.totalorder %s20, 1
      %p59 = por %p57, %p58
      %p60 = scmp.ne.s32.totalorder %s49, %s50
      %p61 = scmp.eq.s32.totalorder %s20, 0
      %p62 = por %p60, %p61
      %p63 = scmp.ne.s32.totalorder %s49, %s50
      %p64 = scmp.eq.s32.totalorder %s21, 1
      %p65 = por %p63, %p64
      %p67 = scmp.ne.s32.totalorder %s50, %s66
      %p68 = scmp.eq.s32.totalorder %s21, 0
      %p69 = por %p67, %p68
      %s70 = ssub.s32 %s15, %s22
      %p71 = scmp.eq.s32.totalorder %s70, 0
      %s73 = sadd.s32 %s72, 1
      %s74 = scalar_select %p71, %s72, %s73
      %p77 = pneg %p71
      %p78 = scmp.eq.s32.totalorder %s15, 1
      %p79 = por %p77, %p78
      %p80 = scmp.ne.s32.totalorder %s72, %s75
      %p81 = scmp.eq.s32.totalorder %s15, 0
      %p82 = por %p80, %p81
      %p83 = scmp.ne.s32.totalorder %s72, %s75
      %p84 = scmp.eq.s32.totalorder %s20, 1
      %p85 = por %p83, %p84
      %p86 = scmp.ne.s32.totalorder %s75, %s76
      %p87 = scmp.eq.s32.totalorder %s20, 0
      %p88 = por %p86, %p87
      %p89 = scmp.ne.s32.totalorder %s75, %s76
      %p90 = scmp.eq.s32.totalorder %s21, 1
      %p91 = por %p89, %p90
      %p93 = scmp.ne.s32.totalorder %s76, %s92
      %p94 = scmp.eq.s32.totalorder %s21, 0
      %p95 = por %p93, %p94
      %p96 = scmp.le.s32.totalorder 1, %s15
      %p97 = scmp.lt.s32.totalorder %s15, 3
      %p98 = pnand %p96, %p97
      %p99 = pneg %p98
      // Predicated region
      $region9: #{tpu_custom_call.1} parent=5 // pred_check
        _
      $region10: #{tpu_custom_call.1} parent=5 // pred_check_branch
        %101 = sbr.rel (%p98) target = $region12
      $region11: #{tpu_custom_call.1} parent=5 // pred_region
        %s102 = ssub.s32 %s15, 1
        // Predicated region
        $region13: #{tpu_custom_call.1} parent=11 // pred_check
          %p103 = pneg %p36
        $region14: #{tpu_custom_call.1} parent=11 // pred_check_branch
          %105 = sbr.rel (%p103) target = $region16
        $region15: #{tpu_custom_call.1} parent=11 // pred_region
          %s107 = ssub.s32 16, 16
          %108 = vsyncadd [#allocation7], %s107
          %111 = dma.hbm_to_smem %s0, 16, [#allocation4], [#allocation7]
        $region16: #{tpu_custom_call.1} parent=11 // pred_fallthru
          _
      $region12: #{tpu_custom_call.1} parent=5 // pred_fallthru
        _
      %p112 = scmp.lt.s32.totalorder %s15, 2
      // Predicated region
      $region17: #{tpu_custom_call.1} parent=5 // pred_check
        %p113 = pneg %p112
      $region18: #{tpu_custom_call.1} parent=5 // pred_check_branch
        %115 = sbr.rel (%p113) target = $region20
      $region19: #{tpu_custom_call.1} parent=5 // pred_region
        // Predicated region
        $region21: #{tpu_custom_call.1} parent=19 // pred_check
          %p116 = pneg %p56
        $region22: #{tpu_custom_call.1} parent=19 // pred_check_branch
          %118 = sbr.rel (%p116) target = $region24
        $region23: #{tpu_custom_call.1} parent=19 // pred_region
          %s119 = sand.u32 %s46, 1
          %s120 = scalar_lea.sflag [#allocation5], %s119
          %s121 = sand.u32 %s46, 1
          %s122 = smul.addr %s121, 8
          %s123 = scalar_lea.vmem [#allocation8], %s122
          %s125 = ssub.s32 128, 128
          %126 = vsyncadd %s120, %s125
          %s127 = smul.addr %s15, 2
          %s128 = smul.addr %s127, 64
          %s129 = scalar_lea.hbm %s1, %s128
          %s131 = sshll.u32 %s123, 4
          %s132 = int_to_ptr.vmem [resolvable:$true] %s131
          %134 = dma.hbm_to_vmem [thread:$0]  %s129, 128, %s132, %s120
        $region24: #{tpu_custom_call.1} parent=19 // pred_fallthru
          _
      $region20: #{tpu_custom_call.1} parent=5 // pred_fallthru
        _
      %p135 = scmp.le.s32.totalorder 1, %s15
      %p136 = scmp.lt.s32.totalorder %s15, 3
      %p137 = pnand %p135, %p136
      %p138 = pneg %p137
      // Predicated region
      $region25: #{tpu_custom_call.1} parent=5 // pred_check
        _
      $region26: #{tpu_custom_call.1} parent=5 // pred_check_branch
        %140 = sbr.rel (%p137) target = $region28
      $region27: #{tpu_custom_call.1} parent=5 // pred_region
        %s141 = ssub.s32 %s15, 1
        // Predicated region
        $region29: #{tpu_custom_call.1} parent=27 // pred_check
          %p142 = pneg %p36
        $region30: #{tpu_custom_call.1} parent=27 // pred_check_branch
          %144 = sbr.rel (%p142) target = $region32
        $region31: #{tpu_custom_call.1} parent=27 // pred_region
          %145 = dma.done [#allocation7], 16
        $region32: #{tpu_custom_call.1} parent=27 // pred_fallthru
          _
        %s146 = sand.u32 %s49, 1
        %s147 = scalar_lea.sflag [#allocation5], %s146
        %s148 = sand.u32 %s49, 1
        %s149 = smul.addr %s148, 8
        %s150 = scalar_lea.vmem [#allocation8], %s149
        // Predicated region
        $region33: #{tpu_custom_call.1} parent=27 // pred_check
          %p151 = pneg %p62
        $region34: #{tpu_custom_call.1} parent=27 // pred_check_branch
          %153 = sbr.rel (%p151) target = $region36
        $region35: #{tpu_custom_call.1} parent=27 // pred_region
          %154 = dma.done %s147, 128
        $region36: #{tpu_custom_call.1} parent=27 // pred_fallthru
          _
        %155 = sfence
        %p156 = pneg %p36
        %p157 = pneg %p33
        %s158 = sand.u32 %s49, 1
        %s159 = scalar_lea.sflag [#allocation5], %s158
        %s160 = sand.u32 %s49, 1
        %s161 = smul.addr %s160, 8
        %s162 = scalar_lea.vmem [#allocation8], %s161
        %p163 = pneg %p62
        %p164 = pneg %p59
        %p165 = pneg %p88
        %p166 = pneg %p85
        %s167 = sand.u32 %s75, 1
        %s168 = scalar_lea.sflag [#allocation6], %s167
        %s169 = sand.u32 %s75, 1
        %s170 = smul.addr %s169, 8
        %s171 = scalar_lea.vmem [#allocation9], %s170
        %v172 = vld [vmem:[%s150] ss:$4 sm:$0x3]
        %s173 = scalar_lea.vmem %s150, 1 [#allocation8]
        %v174 = vld [vmem:[%s173] ss:$4 sm:$0x3]
        %v175 = vadd.f32 %v172, %v174
        %v176 = vmax.f32 %v172, %v174
        %s177 = scalar_lea.vmem %s150, 2 [#allocation8]
        %v178 = vld [vmem:[%s177] ss:$4 sm:$0x3]
        %v179 = vadd.f32 %v175, %v178
        %v180 = vmax.f32 %v176, %v178
        %s181 = scalar_lea.vmem %s150, 3 [#allocation8]
        %v182 = vld [vmem:[%s181] ss:$4 sm:$0x3]
        %v183 = vadd.f32 %v179, %v182
        %v184 = vmax.f32 %v180, %v182
        %v185 = vmul.f32 %v183, 0.25
        %v186 = vlaneseq
        %vm187 = vcmp.ge.s32.totalorder %v186, 0
        %vm188 = vcmp.lt.s32.totalorder %v186, 256
        %vm189 = vmand %vm187, %vm188
        %190 = vst.msk [vmem:[#allocation3] ss:$4 sm:$0x3] %vm189, %v185
        %s191 = scalar_lea.vmem [#allocation3], 1
        %192 = vst.msk [vmem:[%s191] ss:$4 sm:$0x3] %vm189, %v184
        %vm193 = vcmask 124928
        %194 = vst.msk [vmem:[#allocation2 + $0x5] sm:$0x7] %vm193, 0.0
        %195 = vst.msk [vmem:[#allocation2 + $0x25] sm:$0x7] %vm193, 0.0
        %196 = vst.msk [vmem:[#allocation2 + $0x18] sm:$0x7] %vm193, 0.0
        %197 = vst.msk [vmem:[#allocation2 + $0x38] sm:$0x7] %vm193, 0.0
        %v198 = vld [vmem:[#allocation3] sm:$0x1]
        %vm199 = vcmask 122880
        %200 = vst.msk [vmem:[#allocation2 + $0x8] sm:$0x1] %vm199, %v198
        %v201 = vld [vmem:[#allocation3 + $0x1] sm:$0x1]
        %s202 = scalar_lea.vmem [#allocation2], 32
        %203 = vst.msk [vmem:[%s202 + $0x8] sm:$0x1] %vm199, %v201
        %v204 = vld [vmem:[#allocation3] sm:$0x1]
        %v206 = vlaneseq
        %v207 = vshrl.u32 %v206, 7
        %v208 = vsub.s32 0, %v207
        %v209 = vrot.slane %v204, %v208
        %210 = vrot.lane.b32.xlu0 %v209, 112
        %v211 = vpop.permute.xlu0 %210
        %213 = vst.msk [vmem:[#allocation2 + $0x9] sm:$0x1] %vm199, %v211
        %v214 = vld [vmem:[#allocation3 + $0x1] sm:$0x1]
        %v216 = vlaneseq
        %v217 = vshrl.u32 %v216, 7
        %v218 = vsub.s32 0, %v217
        %v219 = vrot.slane %v214, %v218
        %220 = vrot.lane.b32.xlu0 %v219, 112
        %v221 = vpop.permute.xlu0 %220
        %223 = vst.msk [vmem:[%s202 + $0x9] sm:$0x1] %vm199, %v221
        %v224 = vld [vmem:[#allocation3] sm:$0x1]
        %v226 = vlaneseq
        %v227 = vshrl.u32 %v226, 7
        %v228 = vsub.s32 0, %v227
        %v229 = vrot.slane %v224, %v228
        %230 = vrot.lane.b32.xlu0 %v229, 96
        %v231 = vpop.permute.xlu0 %230
        %233 = vst.msk [vmem:[#allocation2 + $0xa] sm:$0x1] %vm199, %v231
        %v234 = vld [vmem:[#allocation3 + $0x1] sm:$0x1]
        %v236 = vlaneseq
        %v237 = vshrl.u32 %v236, 7
        %v238 = vsub.s32 0, %v237
        %v239 = vrot.slane %v234, %v238
        %240 = vrot.lane.b32.xlu0 %v239, 96
        %v241 = vpop.permute.xlu0 %240
        %243 = vst.msk [vmem:[%s202 + $0xa] sm:$0x1] %vm199, %v241
        %v244 = vld [vmem:[#allocation3] sm:$0x1]
        %v246 = vlaneseq
        %v247 = vshrl.u32 %v246, 7
        %v248 = vsub.s32 0, %v247
        %v249 = vrot.slane %v244, %v248
        %250 = vrot.lane.b32.xlu0 %v249, 80
        %v251 = vpop.permute.xlu0 %250
        %253 = vst.msk [vmem:[#allocation2 + $0xb] sm:$0x1] %vm199, %v251
        %v254 = vld [vmem:[#allocation3 + $0x1] sm:$0x1]
        %v256 = vlaneseq
        %v257 = vshrl.u32 %v256, 7
        %v258 = vsub.s32 0, %v257
        %v259 = vrot.slane %v254, %v258
        %260 = vrot.lane.b32.xlu0 %v259, 80
        %v261 = vpop.permute.xlu0 %260
        %263 = vst.msk [vmem:[%s202 + $0xb] sm:$0x1] %vm199, %v261
        %v264 = vld [vmem:[#allocation3] sm:$0x1]
        %v266 = vlaneseq
        %v267 = vshrl.u32 %v266, 7
        %v268 = vsub.s32 0, %v267
        %v269 = vrot.slane %v264, %v268
        %270 = vrot.lane.b32.xlu0 %v269, 64
        %v271 = vpop.permute.xlu0 %270
        %273 = vst.msk [vmem:[#allocation2 + $0xc] sm:$0x1] %vm199, %v271
        %v274 = vld [vmem:[#allocation3 + $0x1] sm:$0x1]
        %v276 = vlaneseq
        %v277 = vshrl.u32 %v276, 7
        %v278 = vsub.s32 0, %v277
        %v279 = vrot.slane %v274, %v278
        %280 = vrot.lane.b32.xlu0 %v279, 64
        %v281 = vpop.permute.xlu0 %280
        %283 = vst.msk [vmem:[%s202 + $0xc] sm:$0x1] %vm199, %v281
        %v284 = vld [vmem:[#allocation3] sm:$0x1]
        %v286 = vlaneseq
        %v287 = vshrl.u32 %v286, 7
        %v288 = vsub.s32 0, %v287
        %v289 = vrot.slane %v284, %v288
        %290 = vrot.lane.b32.xlu0 %v289, 48
        %v291 = vpop.permute.xlu0 %290
        %293 = vst.msk [vmem:[#allocation2 + $0xd] sm:$0x1] %vm199, %v291
        %v294 = vld [vmem:[#allocation3 + $0x1] sm:$0x1]
        %v296 = vlaneseq
        %v297 = vshrl.u32 %v296, 7
        %v298 = vsub.s32 0, %v297
        %v299 = vrot.slane %v294, %v298
        %300 = vrot.lane.b32.xlu0 %v299, 48
        %v301 = vpop.permute.xlu0 %300
        %303 = vst.msk [vmem:[%s202 + $0xd] sm:$0x1] %vm199, %v301
        %v304 = vld [vmem:[#allocation3] sm:$0x1]
        %v306 = vlaneseq
        %v307 = vshrl.u32 %v306, 7
        %v308 = vsub.s32 0, %v307
        %v309 = vrot.slane %v304, %v308
        %310 = vrot.lane.b32.xlu0 %v309, 32
        %v311 = vpop.permute.xlu0 %310
        %313 = vst.msk [vmem:[#allocation2 + $0xe] sm:$0x1] %vm199, %v311
        %v314 = vld [vmem:[#allocation3 + $0x1] sm:$0x1]
        %v316 = vlaneseq
        %v317 = vshrl.u32 %v316, 7
        %v318 = vsub.s32 0, %v317
        %v319 = vrot.slane %v314, %v318
        %320 = vrot.lane.b32.xlu0 %v319, 32
        %v321 = vpop.permute.xlu0 %320
        %323 = vst.msk [vmem:[%s202 + $0xe] sm:$0x1] %vm199, %v321
        %v324 = vld [vmem:[#allocation3] sm:$0x1]
        %v326 = vlaneseq
        %v327 = vshrl.u32 %v326, 7
        %v328 = vsub.s32 0, %v327
        %v329 = vrot.slane %v324, %v328
        %330 = vrot.lane.b32.xlu0 %v329, 16
        %v331 = vpop.permute.xlu0 %330
        %333 = vst.msk [vmem:[#allocation2 + $0xf] sm:$0x1] %vm199, %v331
        %v334 = vld [vmem:[#allocation3 + $0x1] sm:$0x1]
        %v336 = vlaneseq
        %v337 = vshrl.u32 %v336, 7
        %v338 = vsub.s32 0, %v337
        %v339 = vrot.slane %v334, %v338
        %340 = vrot.lane.b32.xlu0 %v339, 16
        %v341 = vpop.permute.xlu0 %340
        %343 = vst.msk [vmem:[%s202 + $0xf] sm:$0x1] %vm199, %v341
        %v344 = vld [vmem:[#allocation3 + $0x4] sm:$0x1]
        %345 = vst.msk [vmem:[#allocation2 + $0x10] sm:$0x1] %vm199, %v344
        %v346 = vld [vmem:[#allocation3 + $0x5] sm:$0x1]
        %347 = vst.msk [vmem:[%s202 + $0x10] sm:$0x1] %vm199, %v346
        %v348 = vld [vmem:[#allocation3 + $0x4] sm:$0x1]
        %v350 = vlaneseq
        %v351 = vshrl.u32 %v350, 7
        %v352 = vsub.s32 0, %v351
        %v353 = vrot.slane %v348, %v352
        %354 = vrot.lane.b32.xlu0 %v353, 112
        %v355 = vpop.permute.xlu0 %354
        %357 = vst.msk [vmem:[#allocation2 + $0x11] sm:$0x1] %vm199, %v355
        %v358 = vld [vmem:[#allocation3 + $0x5] sm:$0x1]
        %v360 = vlaneseq
        %v361 = vshrl.u32 %v360, 7
        %v362 = vsub.s32 0, %v361
        %v363 = vrot.slane %v358, %v362
        %364 = vrot.lane.b32.xlu0 %v363, 112
        %v365 = vpop.permute.xlu0 %364
        %367 = vst.msk [vmem:[%s202 + $0x11] sm:$0x1] %vm199, %v365
        %v368 = vld [vmem:[#allocation3 + $0x4] sm:$0x1]
        %v370 = vlaneseq
        %v371 = vshrl.u32 %v370, 7
        %v372 = vsub.s32 0, %v371
        %v373 = vrot.slane %v368, %v372
        %374 = vrot.lane.b32.xlu0 %v373, 96
        %v375 = vpop.permute.xlu0 %374
        %377 = vst.msk [vmem:[#allocation2 + $0x12] sm:$0x1] %vm199, %v375
        %v378 = vld [vmem:[#allocation3 + $0x5] sm:$0x1]
        %v380 = vlaneseq
        %v381 = vshrl.u32 %v380, 7
        %v382 = vsub.s32 0, %v381
        %v383 = vrot.slane %v378, %v382
        %384 = vrot.lane.b32.xlu0 %v383, 96
        %v385 = vpop.permute.xlu0 %384
        %387 = vst.msk [vmem:[%s202 + $0x12] sm:$0x1] %vm199, %v385
        %v388 = vld [vmem:[#allocation3 + $0x4] sm:$0x1]
        %v390 = vlaneseq
        %v391 = vshrl.u32 %v390, 7
        %v392 = vsub.s32 0, %v391
        %v393 = vrot.slane %v388, %v392
        %394 = vrot.lane.b32.xlu0 %v393, 80
        %v395 = vpop.permute.xlu0 %394
        %397 = vst.msk [vmem:[#allocation2 + $0x13] sm:$0x1] %vm199, %v395
        %v398 = vld [vmem:[#allocation3 + $0x5] sm:$0x1]
        %v400 = vlaneseq
        %v401 = vshrl.u32 %v400, 7
        %v402 = vsub.s32 0, %v401
        %v403 = vrot.slane %v398, %v402
        %404 = vrot.lane.b32.xlu0 %v403, 80
        %v405 = vpop.permute.xlu0 %404
        %407 = vst.msk [vmem:[%s202 + $0x13] sm:$0x1] %vm199, %v405
        %v408 = vld [vmem:[#allocation3 + $0x4] sm:$0x1]
        %v410 = vlaneseq
        %v411 = vshrl.u32 %v410, 7
        %v412 = vsub.s32 0, %v411
        %v413 = vrot.slane %v408, %v412
        %414 = vrot.lane.b32.xlu0 %v413, 64
        %v415 = vpop.permute.xlu0 %414
        %417 = vst.msk [vmem:[#allocation2 + $0x14] sm:$0x1] %vm199, %v415
        %v418 = vld [vmem:[#allocation3 + $0x5] sm:$0x1]
        %v420 = vlaneseq
        %v421 = vshrl.u32 %v420, 7
        %v422 = vsub.s32 0, %v421
        %v423 = vrot.slane %v418, %v422
        %424 = vrot.lane.b32.xlu0 %v423, 64
        %v425 = vpop.permute.xlu0 %424
        %427 = vst.msk [vmem:[%s202 + $0x14] sm:$0x1] %vm199, %v425
        %v428 = vld [vmem:[#allocation3 + $0x4] sm:$0x1]
        %v430 = vlaneseq
        %v431 = vshrl.u32 %v430, 7
        %v432 = vsub.s32 0, %v431
        %v433 = vrot.slane %v428, %v432
        %434 = vrot.lane.b32.xlu0 %v433, 48
        %v435 = vpop.permute.xlu0 %434
        %437 = vst.msk [vmem:[#allocation2 + $0x15] sm:$0x1] %vm199, %v435
        %v438 = vld [vmem:[#allocation3 + $0x5] sm:$0x1]
        %v440 = vlaneseq
        %v441 = vshrl.u32 %v440, 7
        %v442 = vsub.s32 0, %v441
        %v443 = vrot.slane %v438, %v442
        %444 = vrot.lane.b32.xlu0 %v443, 48
        %v445 = vpop.permute.xlu0 %444
        %447 = vst.msk [vmem:[%s202 + $0x15] sm:$0x1] %vm199, %v445
        %v448 = vld [vmem:[#allocation3 + $0x4] sm:$0x1]
        %v450 = vlaneseq
        %v451 = vshrl.u32 %v450, 7
        %v452 = vsub.s32 0, %v451
        %v453 = vrot.slane %v448, %v452
        %454 = vrot.lane.b32.xlu0 %v453, 32
        %v455 = vpop.permute.xlu0 %454
        %457 = vst.msk [vmem:[#allocation2 + $0x16] sm:$0x1] %vm199, %v455
        %v458 = vld [vmem:[#allocation3 + $0x5] sm:$0x1]
        %v460 = vlaneseq
        %v461 = vshrl.u32 %v460, 7
        %v462 = vsub.s32 0, %v461
        %v463 = vrot.slane %v458, %v462
        %464 = vrot.lane.b32.xlu0 %v463, 32
        %v465 = vpop.permute.xlu0 %464
        %467 = vst.msk [vmem:[%s202 + $0x16] sm:$0x1] %vm199, %v465
        %v468 = vld [vmem:[#allocation3 + $0x4] sm:$0x1]
        %v470 = vlaneseq
        %v471 = vshrl.u32 %v470, 7
        %v472 = vsub.s32 0, %v471
        %v473 = vrot.slane %v468, %v472
        %474 = vrot.lane.b32.xlu0 %v473, 16
        %v475 = vpop.permute.xlu0 %474
        %477 = vst.msk [vmem:[#allocation2 + $0x17] sm:$0x1] %vm199, %v475
        %v478 = vld [vmem:[#allocation3 + $0x5] sm:$0x1]
        %v480 = vlaneseq
        %v481 = vshrl.u32 %v480, 7
        %v482 = vsub.s32 0, %v481
        %v483 = vrot.slane %v478, %v482
        %484 = vrot.lane.b32.xlu0 %v483, 16
        %v485 = vpop.permute.xlu0 %484
        %487 = vst.msk [vmem:[%s202 + $0x17] sm:$0x1] %vm199, %v485
        %v488 = vlaneseq
        %v489 = vand.u32 %v488, 127
        %v490 = vld [vmem:[#allocation2 + $0x5] sm:$0xff]
        %v491 = vld [vmem:[#allocation2 + $0xd] sm:$0xff]
        %s492 = sld [smem:[#allocation4]]
        %v493 = vstv %s492
        %v494 = vmul.f32 %v493, %v490
        %v495 = vmul.f32 %v493, %v491
        %v496 = vadd.f32 %v494, 0.0
        %v497 = vadd.f32 %v495, 0.0
        %v498 = vld [vmem:[#allocation2 + $0x6] sm:$0xff]
        %v499 = vld [vmem:[#allocation2 + $0xe] sm:$0xff]
        %s500 = sld [smem:[#allocation4 + $0x7]]
        %v501 = vstv %s500
        %v502 = vmul.f32 %v501, %v498
        %v503 = vmul.f32 %v501, %v499
        %v504 = vadd.f32 %v496, %v502
        %v505 = vadd.f32 %v497, %v503
        %v506 = vld [vmem:[#allocation2 + $0x7] sm:$0xff]
        %v507 = vld [vmem:[#allocation2 + $0xf] sm:$0xff]
        %s508 = sld [smem:[#allocation4 + $0xe]]
        %v509 = vstv %s508
        %v510 = vmul.f32 %v509, %v506
        %v511 = vmul.f32 %v509, %v507
        %v512 = vadd.f32 %v504, %v510
        %v513 = vadd.f32 %v505, %v511
        %v514 = vld [vmem:[#allocation2 + $0x8] sm:$0xff]
        %v515 = vld [vmem:[#allocation2 + $0x10] sm:$0xff]
        %s516 = sld [smem:[#allocation4 + $0x15]]
        %v517 = vstv %s516
        %v518 = vmul.f32 %v517, %v514
        %v519 = vmul.f32 %v517, %v515
        %v520 = vadd.f32 %v512, %v518
        %v521 = vadd.f32 %v513, %v519
        %v522 = vld [vmem:[#allocation2 + $0x9] sm:$0xff]
        %v523 = vld [vmem:[#allocation2 + $0x11] sm:$0xff]
        %s524 = sld [smem:[#allocation4 + $0x1c]]
        %v525 = vstv %s524
        %v526 = vmul.f32 %v525, %v522
        %v527 = vmul.f32 %v525, %v523
        %v528 = vadd.f32 %v520, %v526
        %v529 = vadd.f32 %v521, %v527
        %v530 = vld [vmem:[#allocation2 + $0xa] sm:$0xff]
        %v531 = vld [vmem:[#allocation2 + $0x12] sm:$0xff]
        %s532 = sld [smem:[#allocation4 + $0x23]]
        %v533 = vstv %s532
        %v534 = vmul.f32 %v533, %v530
        %v535 = vmul.f32 %v533, %v531
        %v536 = vadd.f32 %v528, %v534
        %v537 = vadd.f32 %v529, %v535
        %v538 = vld [vmem:[#allocation2 + $0xb] sm:$0xff]
        %v539 = vld [vmem:[#allocation2 + $0x13] sm:$0xff]
        %s540 = sld [smem:[#allocation4 + $0x2a]]
        %v541 = vstv %s540
        %v542 = vmul.f32 %v541, %v538
        %v543 = vmul.f32 %v541, %v539
        %v544 = vadd.f32 %v536, %v542
        %v545 = vadd.f32 %v537, %v543
        %v546 = vld [vmem:[%s202 + $0x5] sm:$0xff]
        %v547 = vld [vmem:[%s202 + $0xd] sm:$0xff]
        %s548 = sld [smem:[#allocation4 + $0x31]]
        %v549 = vstv %s548
        %v550 = vmul.f32 %v549, %v546
        %v551 = vmul.f32 %v549, %v547
        %v552 = vadd.f32 %v544, %v550
        %v553 = vadd.f32 %v545, %v551
        %v554 = vld [vmem:[%s202 + $0x6] sm:$0xff]
        %v555 = vld [vmem:[%s202 + $0xe] sm:$0xff]
        %s556 = sld [smem:[#allocation4 + $0x38]]
        %v557 = vstv %s556
        %v558 = vmul.f32 %v557, %v554
        %v559 = vmul.f32 %v557, %v555
        %v560 = vadd.f32 %v552, %v558
        %v561 = vadd.f32 %v553, %v559
        %v562 = vld [vmem:[%s202 + $0x7] sm:$0xff]
        %v563 = vld [vmem:[%s202 + $0xf] sm:$0xff]
        %s564 = sld [smem:[#allocation4 + $0x3f]]
        %v565 = vstv %s564
        %v566 = vmul.f32 %v565, %v562
        %v567 = vmul.f32 %v565, %v563
        %v568 = vadd.f32 %v560, %v566
        %v569 = vadd.f32 %v561, %v567
        %v570 = vld [vmem:[%s202 + $0x8] sm:$0xff]
        %v571 = vld [vmem:[%s202 + $0x10] sm:$0xff]
        %s572 = sld [smem:[#allocation4 + $0x46]]
        %v573 = vstv %s572
        %v574 = vmul.f32 %v573, %v570
        %v575 = vmul.f32 %v573, %v571
        %v576 = vadd.f32 %v568, %v574
        %v577 = vadd.f32 %v569, %v575
        %v578 = vld [vmem:[%s202 + $0x9] sm:$0xff]
        %v579 = vld [vmem:[%s202 + $0x11] sm:$0xff]
        %s580 = sld [smem:[#allocation4 + $0x4d]]
        %v581 = vstv %s580
        %v582 = vmul.f32 %v581, %v578
        %v583 = vmul.f32 %v581, %v579
        %v584 = vadd.f32 %v576, %v582
        %v585 = vadd.f32 %v577, %v583
        %v586 = vld [vmem:[%s202 + $0xa] sm:$0xff]
        %v587 = vld [vmem:[%s202 + $0x12] sm:$0xff]
        %s588 = sld [smem:[#allocation4 + $0x54]]
        %v589 = vstv %s588
        %v590 = vmul.f32 %v589, %v586
        %v591 = vmul.f32 %v589, %v587
        %v592 = vadd.f32 %v584, %v590
        %v593 = vadd.f32 %v585, %v591
        %v594 = vld [vmem:[%s202 + $0xb] sm:$0xff]
        %v595 = vld [vmem:[%s202 + $0x13] sm:$0xff]
        %s596 = sld [smem:[#allocation4 + $0x5b]]
        %v597 = vstv %s596
        %v598 = vmul.f32 %v597, %v594
        %v599 = vmul.f32 %v597, %v595
        %v600 = vadd.f32 %v592, %v598
        %v601 = vadd.f32 %v593, %v599
        %vm602 = vcmask 1047680
        %603 = vrot.lane.b32.xlu0 %v600, 16
        %v604 = vpop.permute.xlu0 %603
        %v605 = vsel %vm602, %v604, %v600
        %606 = vrot.lane.b32.xlu0 %v601, 16
        %v607 = vpop.permute.xlu0 %606
        %v608 = vsel %vm602, %v607, %v601
        %609 = vrot.lane.b32.xlu0 %v605, 16
        %v610 = vpop.permute.xlu0 %609
        %611 = vrot.lane.b32.xlu0 %v608, 16
        %v612 = vpop.permute.xlu0 %611
        %v613 = vsel %vm602, %v610, %v600
        %v614 = vsel %vm602, %v612, %v601
        %v615 = vadd.s32 %v489, 4294967293
        %vm616 = vcmp.ge.s32.totalorder %v615, 0
        %vm617 = vcmp.lt.s32.totalorder %v615, 16
        %vm618 = vmand %vm616, %vm617
        %621 = vrot.lane.b32.xlu0 %v613, 115
        %v622 = vpop.permute.xlu0 %621
        %623 = vrot.lane.b32.xlu0 %v614, 115
        %v624 = vpop.permute.xlu0 %623
        %v627 = vsel %vm618, %v622, 0.0
        %v628 = vsel %vm618, %v624, 0.0
        %v629 = vadd.f32 %v627, 0.0
        %v630 = vadd.f32 %v628, 0.0
        %s631 = sld [smem:[#allocation4 + $0x1]]
        %v632 = vstv %s631
        %v633 = vmul.f32 %v632, %v490
        %v634 = vmul.f32 %v632, %v491
        %v635 = vadd.f32 %v633, 0.0
        %v636 = vadd.f32 %v634, 0.0
        %s637 = sld [smem:[#allocation4 + $0x8]]
        %v638 = vstv %s637
        %v639 = vmul.f32 %v638, %v498
        %v640 = vmul.f32 %v638, %v499
        %v641 = vadd.f32 %v635, %v639
        %v642 = vadd.f32 %v636, %v640
        %s643 = sld [smem:[#allocation4 + $0xf]]
        %v644 = vstv %s643
        %v645 = vmul.f32 %v644, %v506
        %v646 = vmul.f32 %v644, %v507
        %v647 = vadd.f32 %v641, %v645
        %v648 = vadd.f32 %v642, %v646
        %s649 = sld [smem:[#allocation4 + $0x16]]
        %v650 = vstv %s649
        %v651 = vmul.f32 %v650, %v514
        %v652 = vmul.f32 %v650, %v515
        %v653 = vadd.f32 %v647, %v651
        %v654 = vadd.f32 %v648, %v652
        %s655 = sld [smem:[#allocation4 + $0x1d]]
        %v656 = vstv %s655
        %v657 = vmul.f32 %v656, %v522
        %v658 = vmul.f32 %v656, %v523
        %v659 = vadd.f32 %v653, %v657
        %v660 = vadd.f32 %v654, %v658
        %s661 = sld [smem:[#allocation4 + $0x24]]
        %v662 = vstv %s661
        %v663 = vmul.f32 %v662, %v530
        %v664 = vmul.f32 %v662, %v531
        %v665 = vadd.f32 %v659, %v663
        %v666 = vadd.f32 %v660, %v664
        %s667 = sld [smem:[#allocation4 + $0x2b]]
        %v668 = vstv %s667
        %v669 = vmul.f32 %v668, %v538
        %v670 = vmul.f32 %v668, %v539
        %v671 = vadd.f32 %v665, %v669
        %v672 = vadd.f32 %v666, %v670
        %s673 = sld [smem:[#allocation4 + $0x32]]
        %v674 = vstv %s673
        %v675 = vmul.f32 %v674, %v546
        %v676 = vmul.f32 %v674, %v547
        %v677 = vadd.f32 %v671, %v675
        %v678 = vadd.f32 %v672, %v676
        %s679 = sld [smem:[#allocation4 + $0x39]]
        %v680 = vstv %s679
        %v681 = vmul.f32 %v680, %v554
        %v682 = vmul.f32 %v680, %v555
        %v683 = vadd.f32 %v677, %v681
        %v684 = vadd.f32 %v678, %v682
        %s685 = sld [smem:[#allocation4 + $0x40]]
        %v686 = vstv %s685
        %v687 = vmul.f32 %v686, %v562
        %v688 = vmul.f32 %v686, %v563
        %v689 = vadd.f32 %v683, %v687
        %v690 = vadd.f32 %v684, %v688
        %s691 = sld [smem:[#allocation4 + $0x47]]
        %v692 = vstv %s691
        %v693 = vmul.f32 %v692, %v570
        %v694 = vmul.f32 %v692, %v571
        %v695 = vadd.f32 %v689, %v693
        %v696 = vadd.f32 %v690, %v694
        %s697 = sld [smem:[#allocation4 + $0x4e]]
        %v698 = vstv %s697
        %v699 = vmul.f32 %v698, %v578
        %v700 = vmul.f32 %v698, %v579
        %v701 = vadd.f32 %v695, %v699
        %v702 = vadd.f32 %v696, %v700
        %s703 = sld [smem:[#allocation4 + $0x55]]
        %v704 = vstv %s703
        %v705 = vmul.f32 %v704, %v586
        %v706 = vmul.f32 %v704, %v587
        %v707 = vadd.f32 %v701, %v705
        %v708 = vadd.f32 %v702, %v706
        %s709 = sld [smem:[#allocation4 + $0x5c]]
        %v710 = vstv %s709
        %v711 = vmul.f32 %v710, %v594
        %v712 = vmul.f32 %v710, %v595
        %v713 = vadd.f32 %v707, %v711
        %v714 = vadd.f32 %v708, %v712
        %715 = vrot.lane.b32.xlu0 %v713, 16
        %v716 = vpop.permute.xlu0 %715
        %v717 = vsel %vm602, %v716, %v713
        %718 = vrot.lane.b32.xlu0 %v714, 16
        %v719 = vpop.permute.xlu0 %718
        %v720 = vsel %vm602, %v719, %v714
        %721 = vrot.lane.b32.xlu0 %v717, 16
        %v722 = vpop.permute.xlu0 %721
        %723 = vrot.lane.b32.xlu0 %v720, 16
        %v724 = vpop.permute.xlu0 %723
        %v725 = vsel %vm602, %v722, %v713
        %v726 = vsel %vm602, %v724, %v714
        %v727 = vadd.s32 %v489, 4294967294
        %vm728 = vcmp.ge.s32.totalorder %v727, 0
        %vm729 = vcmp.lt.s32.totalorder %v727, 16
        %vm730 = vmand %vm728, %vm729
        %733 = vrot.lane.b32.xlu0 %v725, 114
        %v734 = vpop.permute.xlu0 %733
        %735 = vrot.lane.b32.xlu0 %v726, 114
        %v736 = vpop.permute.xlu0 %735
        %v739 = vsel %vm730, %v734, 0.0
        %v740 = vsel %vm730, %v736, 0.0
        %v741 = vadd.f32 %v629, %v739
        %v742 = vadd.f32 %v630, %v740
        %s743 = sld [smem:[#allocation4 + $0x2]]
        %v744 = vstv %s743
        %v745 = vmul.f32 %v744, %v490
        %v746 = vmul.f32 %v744, %v491
        %v747 = vadd.f32 %v745, 0.0
        %v748 = vadd.f32 %v746, 0.0
        %s749 = sld [smem:[#allocation4 + $0x9]]
        %v750 = vstv %s749
        %v751 = vmul.f32 %v750, %v498
        %v752 = vmul.f32 %v750, %v499
        %v753 = vadd.f32 %v747, %v751
        %v754 = vadd.f32 %v748, %v752
        %s755 = sld [smem:[#allocation4 + $0x10]]
        %v756 = vstv %s755
        %v757 = vmul.f32 %v756, %v506
        %v758 = vmul.f32 %v756, %v507
        %v759 = vadd.f32 %v753, %v757
        %v760 = vadd.f32 %v754, %v758
        %s761 = sld [smem:[#allocation4 + $0x17]]
        %v762 = vstv %s761
        %v763 = vmul.f32 %v762, %v514
        %v764 = vmul.f32 %v762, %v515
        %v765 = vadd.f32 %v759, %v763
        %v766 = vadd.f32 %v760, %v764
        %s767 = sld [smem:[#allocation4 + $0x1e]]
        %v768 = vstv %s767
        %v769 = vmul.f32 %v768, %v522
        %v770 = vmul.f32 %v768, %v523
        %v771 = vadd.f32 %v765, %v769
        %v772 = vadd.f32 %v766, %v770
        %s773 = sld [smem:[#allocation4 + $0x25]]
        %v774 = vstv %s773
        %v775 = vmul.f32 %v774, %v530
        %v776 = vmul.f32 %v774, %v531
        %v777 = vadd.f32 %v771, %v775
        %v778 = vadd.f32 %v772, %v776
        %s779 = sld [smem:[#allocation4 + $0x2c]]
        %v780 = vstv %s779
        %v781 = vmul.f32 %v780, %v538
        %v782 = vmul.f32 %v780, %v539
        %v783 = vadd.f32 %v777, %v781
        %v784 = vadd.f32 %v778, %v782
        %s785 = sld [smem:[#allocation4 + $0x33]]
        %v786 = vstv %s785
        %v787 = vmul.f32 %v786, %v546
        %v788 = vmul.f32 %v786, %v547
        %v789 = vadd.f32 %v783, %v787
        %v790 = vadd.f32 %v784, %v788
        %s791 = sld [smem:[#allocation4 + $0x3a]]
        %v792 = vstv %s791
        %v793 = vmul.f32 %v792, %v554
        %v794 = vmul.f32 %v792, %v555
        %v795 = vadd.f32 %v789, %v793
        %v796 = vadd.f32 %v790, %v794
        %s797 = sld [smem:[#allocation4 + $0x41]]
        %v798 = vstv %s797
        %v799 = vmul.f32 %v798, %v562
        %v800 = vmul.f32 %v798, %v563
        %v801 = vadd.f32 %v795, %v799
        %v802 = vadd.f32 %v796, %v800
        %s803 = sld [smem:[#allocation4 + $0x48]]
        %v804 = vstv %s803
        %v805 = vmul.f32 %v804, %v570
        %v806 = vmul.f32 %v804, %v571
        %v807 = vadd.f32 %v801, %v805
        %v808 = vadd.f32 %v802, %v806
        %s809 = sld [smem:[#allocation4 + $0x4f]]
        %v810 = vstv %s809
        %v811 = vmul.f32 %v810, %v578
        %v812 = vmul.f32 %v810, %v579
        %v813 = vadd.f32 %v807, %v811
        %v814 = vadd.f32 %v808, %v812
        %s815 = sld [smem:[#allocation4 + $0x56]]
        %v816 = vstv %s815
        %v817 = vmul.f32 %v816, %v586
        %v818 = vmul.f32 %v816, %v587
        %v819 = vadd.f32 %v813, %v817
        %v820 = vadd.f32 %v814, %v818
        %s821 = sld [smem:[#allocation4 + $0x5d]]
        %v822 = vstv %s821
        %v823 = vmul.f32 %v822, %v594
        %v824 = vmul.f32 %v822, %v595
        %v825 = vadd.f32 %v819, %v823
        %v826 = vadd.f32 %v820, %v824
        %827 = vrot.lane.b32.xlu0 %v825, 16
        %v828 = vpop.permute.xlu0 %827
        %v829 = vsel %vm602, %v828, %v825
        %830 = vrot.lane.b32.xlu0 %v826, 16
        %v831 = vpop.permute.xlu0 %830
        %v832 = vsel %vm602, %v831, %v826
        %833 = vrot.lane.b32.xlu0 %v829, 16
        %v834 = vpop.permute.xlu0 %833
        %835 = vrot.lane.b32.xlu0 %v832, 16
        %v836 = vpop.permute.xlu0 %835
        %v837 = vsel %vm602, %v834, %v825
        %v838 = vsel %vm602, %v836, %v826
        %v839 = vadd.s32 %v489, 4294967295
        %vm840 = vcmp.ge.s32.totalorder %v839, 0
        %vm841 = vcmp.lt.s32.totalorder %v839, 16
        %vm842 = vmand %vm840, %vm841
        %845 = vrot.lane.b32.xlu0 %v837, 113
        %v846 = vpop.permute.xlu0 %845
        %847 = vrot.lane.b32.xlu0 %v838, 113
        %v848 = vpop.permute.xlu0 %847
        %v851 = vsel %vm842, %v846, 0.0
        %v852 = vsel %vm842, %v848, 0.0
        %v853 = vadd.f32 %v741, %v851
        %v854 = vadd.f32 %v742, %v852
        %s855 = sld [smem:[#allocation4 + $0x3]]
        %v856 = vstv %s855
        %v857 = vmul.f32 %v856, %v490
        %v858 = vmul.f32 %v856, %v491
        %v859 = vadd.f32 %v857, 0.0
        %v860 = vadd.f32 %v858, 0.0
        %s861 = sld [smem:[#allocation4 + $0xa]]
        %v862 = vstv %s861
        %v863 = vmul.f32 %v862, %v498
        %v864 = vmul.f32 %v862, %v499
        %v865 = vadd.f32 %v859, %v863
        %v866 = vadd.f32 %v860, %v864
        %s867 = sld [smem:[#allocation4 + $0x11]]
        %v868 = vstv %s867
        %v869 = vmul.f32 %v868, %v506
        %v870 = vmul.f32 %v868, %v507
        %v871 = vadd.f32 %v865, %v869
        %v872 = vadd.f32 %v866, %v870
        %s873 = sld [smem:[#allocation4 + $0x18]]
        %v874 = vstv %s873
        %v875 = vmul.f32 %v874, %v514
        %v876 = vmul.f32 %v874, %v515
        %v877 = vadd.f32 %v871, %v875
        %v878 = vadd.f32 %v872, %v876
        %s879 = sld [smem:[#allocation4 + $0x1f]]
        %v880 = vstv %s879
        %v881 = vmul.f32 %v880, %v522
        %v882 = vmul.f32 %v880, %v523
        %v883 = vadd.f32 %v877, %v881
        %v884 = vadd.f32 %v878, %v882
        %s885 = sld [smem:[#allocation4 + $0x26]]
        %v886 = vstv %s885
        %v887 = vmul.f32 %v886, %v530
        %v888 = vmul.f32 %v886, %v531
        %v889 = vadd.f32 %v883, %v887
        %v890 = vadd.f32 %v884, %v888
        %s891 = sld [smem:[#allocation4 + $0x2d]]
        %v892 = vstv %s891
        %v893 = vmul.f32 %v892, %v538
        %v894 = vmul.f32 %v892, %v539
        %v895 = vadd.f32 %v889, %v893
        %v896 = vadd.f32 %v890, %v894
        %s897 = sld [smem:[#allocation4 + $0x34]]
        %v898 = vstv %s897
        %v899 = vmul.f32 %v898, %v546
        %v900 = vmul.f32 %v898, %v547
        %v901 = vadd.f32 %v895, %v899
        %v902 = vadd.f32 %v896, %v900
        %s903 = sld [smem:[#allocation4 + $0x3b]]
        %v904 = vstv %s903
        %v905 = vmul.f32 %v904, %v554
        %v906 = vmul.f32 %v904, %v555
        %v907 = vadd.f32 %v901, %v905
        %v908 = vadd.f32 %v902, %v906
        %s909 = sld [smem:[#allocation4 + $0x42]]
        %v910 = vstv %s909
        %v911 = vmul.f32 %v910, %v562
        %v912 = vmul.f32 %v910, %v563
        %v913 = vadd.f32 %v907, %v911
        %v914 = vadd.f32 %v908, %v912
        %s915 = sld [smem:[#allocation4 + $0x49]]
        %v916 = vstv %s915
        %v917 = vmul.f32 %v916, %v570
        %v918 = vmul.f32 %v916, %v571
        %v919 = vadd.f32 %v913, %v917
        %v920 = vadd.f32 %v914, %v918
        %s921 = sld [smem:[#allocation4 + $0x50]]
        %v922 = vstv %s921
        %v923 = vmul.f32 %v922, %v578
        %v924 = vmul.f32 %v922, %v579
        %v925 = vadd.f32 %v919, %v923
        %v926 = vadd.f32 %v920, %v924
        %s927 = sld [smem:[#allocation4 + $0x57]]
        %v928 = vstv %s927
        %v929 = vmul.f32 %v928, %v586
        %v930 = vmul.f32 %v928, %v587
        %v931 = vadd.f32 %v925, %v929
        %v932 = vadd.f32 %v926, %v930
        %s933 = sld [smem:[#allocation4 + $0x5e]]
        %v934 = vstv %s933
        %v935 = vmul.f32 %v934, %v594
        %v936 = vmul.f32 %v934, %v595
        %v937 = vadd.f32 %v931, %v935
        %v938 = vadd.f32 %v932, %v936
        %v939 = vadd.f32 %v853, %v937
        %v940 = vadd.f32 %v854, %v938
        %s941 = sld [smem:[#allocation4 + $0x4]]
        %v942 = vstv %s941
        %v943 = vmul.f32 %v942, %v490
        %v944 = vmul.f32 %v942, %v491
        %v945 = vadd.f32 %v943, 0.0
        %v946 = vadd.f32 %v944, 0.0
        %s947 = sld [smem:[#allocation4 + $0xb]]
        %v948 = vstv %s947
        %v949 = vmul.f32 %v948, %v498
        %v950 = vmul.f32 %v948, %v499
        %v951 = vadd.f32 %v945, %v949
        %v952 = vadd.f32 %v946, %v950
        %s953 = sld [smem:[#allocation4 + $0x12]]
        %v954 = vstv %s953
        %v955 = vmul.f32 %v954, %v506
        %v956 = vmul.f32 %v954, %v507
        %v957 = vadd.f32 %v951, %v955
        %v958 = vadd.f32 %v952, %v956
        %s959 = sld [smem:[#allocation4 + $0x19]]
        %v960 = vstv %s959
        %v961 = vmul.f32 %v960, %v514
        %v962 = vmul.f32 %v960, %v515
        %v963 = vadd.f32 %v957, %v961
        %v964 = vadd.f32 %v958, %v962
        %s965 = sld [smem:[#allocation4 + $0x20]]
        %v966 = vstv %s965
        %v967 = vmul.f32 %v966, %v522
        %v968 = vmul.f32 %v966, %v523
        %v969 = vadd.f32 %v963, %v967
        %v970 = vadd.f32 %v964, %v968
        %s971 = sld [smem:[#allocation4 + $0x27]]
        %v972 = vstv %s971
        %v973 = vmul.f32 %v972, %v530
        %v974 = vmul.f32 %v972, %v531
        %v975 = vadd.f32 %v969, %v973
        %v976 = vadd.f32 %v970, %v974
        %s977 = sld [smem:[#allocation4 + $0x2e]]
        %v978 = vstv %s977
        %v979 = vmul.f32 %v978, %v538
        %v980 = vmul.f32 %v978, %v539
        %v981 = vadd.f32 %v975, %v979
        %v982 = vadd.f32 %v976, %v980
        %s983 = sld [smem:[#allocation4 + $0x35]]
        %v984 = vstv %s983
        %v985 = vmul.f32 %v984, %v546
        %v986 = vmul.f32 %v984, %v547
        %v987 = vadd.f32 %v981, %v985
        %v988 = vadd.f32 %v982, %v986
        %s989 = sld [smem:[#allocation4 + $0x3c]]
        %v990 = vstv %s989
        %v991 = vmul.f32 %v990, %v554
        %v992 = vmul.f32 %v990, %v555
        %v993 = vadd.f32 %v987, %v991
        %v994 = vadd.f32 %v988, %v992
        %s995 = sld [smem:[#allocation4 + $0x43]]
        %v996 = vstv %s995
        %v997 = vmul.f32 %v996, %v562
        %v998 = vmul.f32 %v996, %v563
        %v999 = vadd.f32 %v993, %v997
        %v1000 = vadd.f32 %v994, %v998
        %s1001 = sld [smem:[#allocation4 + $0x4a]]
        %v1002 = vstv %s1001
        %v1003 = vmul.f32 %v1002, %v570
        %v1004 = vmul.f32 %v1002, %v571
        %v1005 = vadd.f32 %v999, %v1003
        %v1006 = vadd.f32 %v1000, %v1004
        %s1007 = sld [smem:[#allocation4 + $0x51]]
        %v1008 = vstv %s1007
        %v1009 = vmul.f32 %v1008, %v578
        %v1010 = vmul.f32 %v1008, %v579
        %v1011 = vadd.f32 %v1005, %v1009
        %v1012 = vadd.f32 %v1006, %v1010
        %s1013 = sld [smem:[#allocation4 + $0x58]]
        %v1014 = vstv %s1013
        %v1015 = vmul.f32 %v1014, %v586
        %v1016 = vmul.f32 %v1014, %v587
        %v1017 = vadd.f32 %v1011, %v1015
        %v1018 = vadd.f32 %v1012, %v1016
        %s1019 = sld [smem:[#allocation4 + $0x5f]]
        %v1020 = vstv %s1019
        %v1021 = vmul.f32 %v1020, %v594
        %v1022 = vmul.f32 %v1020, %v595
        %v1023 = vadd.f32 %v1017, %v1021
        %v1024 = vadd.f32 %v1018, %v1022
        %1025 = vrot.lane.b32.xlu0 %v1023, 16
        %v1026 = vpop.permute.xlu0 %1025
        %v1027 = vsel %vm602, %v1026, %v1023
        %1028 = vrot.lane.b32.xlu0 %v1024, 16
        %v1029 = vpop.permute.xlu0 %1028
        %v1030 = vsel %vm602, %v1029, %v1024
        %1031 = vrot.lane.b32.xlu0 %v1027, 16
        %v1032 = vpop.permute.xlu0 %1031
        %1033 = vrot.lane.b32.xlu0 %v1030, 16
        %v1034 = vpop.permute.xlu0 %1033
        %v1035 = vsel %vm602, %v1032, %v1023
        %v1036 = vsel %vm602, %v1034, %v1024
        %v1037 = vadd.s32 %v489, 1
        %vm1038 = vcmp.ge.s32.totalorder %v1037, 0
        %vm1039 = vcmp.lt.s32.totalorder %v1037, 16
        %vm1040 = vmand %vm1038, %vm1039
        %1043 = vrot.lane.b32.xlu0 %v1035, 127
        %v1044 = vpop.permute.xlu0 %1043
        %1045 = vrot.lane.b32.xlu0 %v1036, 127
        %v1046 = vpop.permute.xlu0 %1045
        %v1049 = vsel %vm1040, %v1044, 0.0
        %v1050 = vsel %vm1040, %v1046, 0.0
        %v1051 = vadd.f32 %v939, %v1049
        %v1052 = vadd.f32 %v940, %v1050
        %s1053 = sld [smem:[#allocation4 + $0x5]]
        %v1054 = vstv %s1053
        %v1055 = vmul.f32 %v1054, %v490
        %v1056 = vmul.f32 %v1054, %v491
        %v1057 = vadd.f32 %v1055, 0.0
        %v1058 = vadd.f32 %v1056, 0.0
        %s1059 = sld [smem:[#allocation4 + $0xc]]
        %v1060 = vstv %s1059
        %v1061 = vmul.f32 %v1060, %v498
        %v1062 = vmul.f32 %v1060, %v499
        %v1063 = vadd.f32 %v1057, %v1061
        %v1064 = vadd.f32 %v1058, %v1062
        %s1065 = sld [smem:[#allocation4 + $0x13]]
        %v1066 = vstv %s1065
        %v1067 = vmul.f32 %v1066, %v506
        %v1068 = vmul.f32 %v1066, %v507
        %v1069 = vadd.f32 %v1063, %v1067
        %v1070 = vadd.f32 %v1064, %v1068
        %s1071 = sld [smem:[#allocation4 + $0x1a]]
        %v1072 = vstv %s1071
        %v1073 = vmul.f32 %v1072, %v514
        %v1074 = vmul.f32 %v1072, %v515
        %v1075 = vadd.f32 %v1069, %v1073
        %v1076 = vadd.f32 %v1070, %v1074
        %s1077 = sld [smem:[#allocation4 + $0x21]]
        %v1078 = vstv %s1077
        %v1079 = vmul.f32 %v1078, %v522
        %v1080 = vmul.f32 %v1078, %v523
        %v1081 = vadd.f32 %v1075, %v1079
        %v1082 = vadd.f32 %v1076, %v1080
        %s1083 = sld [smem:[#allocation4 + $0x28]]
        %v1084 = vstv %s1083
        %v1085 = vmul.f32 %v1084, %v530
        %v1086 = vmul.f32 %v1084, %v531
        %v1087 = vadd.f32 %v1081, %v1085
        %v1088 = vadd.f32 %v1082, %v1086
        %s1089 = sld [smem:[#allocation4 + $0x2f]]
        %v1090 = vstv %s1089
        %v1091 = vmul.f32 %v1090, %v538
        %v1092 = vmul.f32 %v1090, %v539
        %v1093 = vadd.f32 %v1087, %v1091
        %v1094 = vadd.f32 %v1088, %v1092
        %s1095 = sld [smem:[#allocation4 + $0x36]]
        %v1096 = vstv %s1095
        %v1097 = vmul.f32 %v1096, %v546
        %v1098 = vmul.f32 %v1096, %v547
        %v1099 = vadd.f32 %v1093, %v1097
        %v1100 = vadd.f32 %v1094, %v1098
        %s1101 = sld [smem:[#allocation4 + $0x3d]]
        %v1102 = vstv %s1101
        %v1103 = vmul.f32 %v1102, %v554
        %v1104 = vmul.f32 %v1102, %v555
        %v1105 = vadd.f32 %v1099, %v1103
        %v1106 = vadd.f32 %v1100, %v1104
        %s1107 = sld [smem:[#allocation4 + $0x44]]
        %v1108 = vstv %s1107
        %v1109 = vmul.f32 %v1108, %v562
        %v1110 = vmul.f32 %v1108, %v563
        %v1111 = vadd.f32 %v1105, %v1109
        %v1112 = vadd.f32 %v1106, %v1110
        %s1113 = sld [smem:[#allocation4 + $0x4b]]
        %v1114 = vstv %s1113
        %v1115 = vmul.f32 %v1114, %v570
        %v1116 = vmul.f32 %v1114, %v571
        %v1117 = vadd.f32 %v1111, %v1115
        %v1118 = vadd.f32 %v1112, %v1116
        %s1119 = sld [smem:[#allocation4 + $0x52]]
        %v1120 = vstv %s1119
        %v1121 = vmul.f32 %v1120, %v578
        %v1122 = vmul.f32 %v1120, %v579
        %v1123 = vadd.f32 %v1117, %v1121
        %v1124 = vadd.f32 %v1118, %v1122
        %s1125 = sld [smem:[#allocation4 + $0x59]]
        %v1126 = vstv %s1125
        %v1127 = vmul.f32 %v1126, %v586
        %v1128 = vmul.f32 %v1126, %v587
        %v1129 = vadd.f32 %v1123, %v1127
        %v1130 = vadd.f32 %v1124, %v1128
        %s1131 = sld [smem:[#allocation4 + $0x60]]
        %v1132 = vstv %s1131
        %v1133 = vmul.f32 %v1132, %v594
        %v1134 = vmul.f32 %v1132, %v595
        %v1135 = vadd.f32 %v1129, %v1133
        %v1136 = vadd.f32 %v1130, %v1134
        %1137 = vrot.lane.b32.xlu0 %v1135, 16
        %v1138 = vpop.permute.xlu0 %1137
        %v1139 = vsel %vm602, %v1138, %v1135
        %1140 = vrot.lane.b32.xlu0 %v1136, 16
        %v1141 = vpop.permute.xlu0 %1140
        %v1142 = vsel %vm602, %v1141, %v1136
        %1143 = vrot.lane.b32.xlu0 %v1139, 16
        %v1144 = vpop.permute.xlu0 %1143
        %1145 = vrot.lane.b32.xlu0 %v1142, 16
        %v1146 = vpop.permute.xlu0 %1145
        %v1147 = vsel %vm602, %v1144, %v1135
        %v1148 = vsel %vm602, %v1146, %v1136
        %v1149 = vadd.s32 %v489, 2
        %vm1150 = vcmp.ge.s32.totalorder %v1149, 0
        %vm1151 = vcmp.lt.s32.totalorder %v1149, 16
        %vm1152 = vmand %vm1150, %vm1151
        %1155 = vrot.lane.b32.xlu0 %v1147, 126
        %v1156 = vpop.permute.xlu0 %1155
        %1157 = vrot.lane.b32.xlu0 %v1148, 126
        %v1158 = vpop.permute.xlu0 %1157
        %v1161 = vsel %vm1152, %v1156, 0.0
        %v1162 = vsel %vm1152, %v1158, 0.0
        %v1163 = vadd.f32 %v1051, %v1161
        %v1164 = vadd.f32 %v1052, %v1162
        %s1165 = sld [smem:[#allocation4 + $0x6]]
        %v1166 = vstv %s1165
        %v1167 = vmul.f32 %v1166, %v490
        %v1168 = vmul.f32 %v1166, %v491
        %v1169 = vadd.f32 %v1167, 0.0
        %v1170 = vadd.f32 %v1168, 0.0
        %s1171 = sld [smem:[#allocation4 + $0xd]]
        %v1172 = vstv %s1171
        %v1173 = vmul.f32 %v1172, %v498
        %v1174 = vmul.f32 %v1172, %v499
        %v1175 = vadd.f32 %v1169, %v1173
        %v1176 = vadd.f32 %v1170, %v1174
        %s1177 = sld [smem:[#allocation4 + $0x14]]
        %v1178 = vstv %s1177
        %v1179 = vmul.f32 %v1178, %v506
        %v1180 = vmul.f32 %v1178, %v507
        %v1181 = vadd.f32 %v1175, %v1179
        %v1182 = vadd.f32 %v1176, %v1180
        %s1183 = sld [smem:[#allocation4 + $0x1b]]
        %v1184 = vstv %s1183
        %v1185 = vmul.f32 %v1184, %v514
        %v1186 = vmul.f32 %v1184, %v515
        %v1187 = vadd.f32 %v1181, %v1185
        %v1188 = vadd.f32 %v1182, %v1186
        %s1189 = sld [smem:[#allocation4 + $0x22]]
        %v1190 = vstv %s1189
        %v1191 = vmul.f32 %v1190, %v522
        %v1192 = vmul.f32 %v1190, %v523
        %v1193 = vadd.f32 %v1187, %v1191
        %v1194 = vadd.f32 %v1188, %v1192
        %s1195 = sld [smem:[#allocation4 + $0x29]]
        %v1196 = vstv %s1195
        %v1197 = vmul.f32 %v1196, %v530
        %v1198 = vmul.f32 %v1196, %v531
        %v1199 = vadd.f32 %v1193, %v1197
        %v1200 = vadd.f32 %v1194, %v1198
        %s1201 = sld [smem:[#allocation4 + $0x30]]
        %v1202 = vstv %s1201
        %v1203 = vmul.f32 %v1202, %v538
        %v1204 = vmul.f32 %v1202, %v539
        %v1205 = vadd.f32 %v1199, %v1203
        %v1206 = vadd.f32 %v1200, %v1204
        %s1207 = sld [smem:[#allocation4 + $0x37]]
        %v1208 = vstv %s1207
        %v1209 = vmul.f32 %v1208, %v546
        %v1210 = vmul.f32 %v1208, %v547
        %v1211 = vadd.f32 %v1205, %v1209
        %v1212 = vadd.f32 %v1206, %v1210
        %s1213 = sld [smem:[#allocation4 + $0x3e]]
        %v1214 = vstv %s1213
        %v1215 = vmul.f32 %v1214, %v554
        %v1216 = vmul.f32 %v1214, %v555
        %v1217 = vadd.f32 %v1211, %v1215
        %v1218 = vadd.f32 %v1212, %v1216
        %s1219 = sld [smem:[#allocation4 + $0x45]]
        %v1220 = vstv %s1219
        %v1221 = vmul.f32 %v1220, %v562
        %v1222 = vmul.f32 %v1220, %v563
        %v1223 = vadd.f32 %v1217, %v1221
        %v1224 = vadd.f32 %v1218, %v1222
        %s1225 = sld [smem:[#allocation4 + $0x4c]]
        %v1226 = vstv %s1225
        %v1227 = vmul.f32 %v1226, %v570
        %v1228 = vmul.f32 %v1226, %v571
        %v1229 = vadd.f32 %v1223, %v1227
        %v1230 = vadd.f32 %v1224, %v1228
        %s1231 = sld [smem:[#allocation4 + $0x53]]
        %v1232 = vstv %s1231
        %v1233 = vmul.f32 %v1232, %v578
        %v1234 = vmul.f32 %v1232, %v579
        %v1235 = vadd.f32 %v1229, %v1233
        %v1236 = vadd.f32 %v1230, %v1234
        %s1237 = sld [smem:[#allocation4 + $0x5a]]
        %v1238 = vstv %s1237
        %v1239 = vmul.f32 %v1238, %v586
        %v1240 = vmul.f32 %v1238, %v587
        %v1241 = vadd.f32 %v1235, %v1239
        %v1242 = vadd.f32 %v1236, %v1240
        %s1243 = sld [smem:[#allocation4 + $0x61]]
        %v1244 = vstv %s1243
        %v1245 = vmul.f32 %v1244, %v594
        %v1246 = vmul.f32 %v1244, %v595
        %v1247 = vadd.f32 %v1241, %v1245
        %v1248 = vadd.f32 %v1242, %v1246
        %1249 = vrot.lane.b32.xlu0 %v1247, 16
        %v1250 = vpop.permute.xlu0 %1249
        %v1251 = vsel %vm602, %v1250, %v1247
        %1252 = vrot.lane.b32.xlu0 %v1248, 16
        %v1253 = vpop.permute.xlu0 %1252
        %v1254 = vsel %vm602, %v1253, %v1248
        %1255 = vrot.lane.b32.xlu0 %v1251, 16
        %v1256 = vpop.permute.xlu0 %1255
        %1257 = vrot.lane.b32.xlu0 %v1254, 16
        %v1258 = vpop.permute.xlu0 %1257
        %v1259 = vsel %vm602, %v1256, %v1247
        %v1260 = vsel %vm602, %v1258, %v1248
        %v1261 = vadd.s32 %v489, 3
        %vm1262 = vcmp.ge.s32.totalorder %v1261, 0
        %vm1263 = vcmp.lt.s32.totalorder %v1261, 16
        %vm1264 = vmand %vm1262, %vm1263
        %1267 = vrot.lane.b32.xlu0 %v1259, 125
        %v1268 = vpop.permute.xlu0 %1267
        %1269 = vrot.lane.b32.xlu0 %v1260, 125
        %v1270 = vpop.permute.xlu0 %1269
        %v1273 = vsel %vm1264, %v1268, 0.0
        %v1274 = vsel %vm1264, %v1270, 0.0
        %v1275 = vadd.f32 %v1163, %v1273
        %v1276 = vadd.f32 %v1164, %v1274
        %v1277 = vxor.u32 %v1275, 2147483648
        %v1278 = vxor.u32 %v1276, 2147483648
        %v1279 = vmul.f32 %v1277, 1.442695
        %v1280 = vpow.pop %v1279
        %v1281 = vmul.f32 %v1278, 1.442695
        %v1282 = vpow.pop %v1281
        %v1283 = vadd.f32 %v1280, 1.0
        %v1284 = vadd.f32 %v1282, 1.0
        %v1285 = vrcp.pop %v1283
        %v1286 = vmul.f32 1.0, %v1285
        %v1287 = vrcp.pop %v1284
        %v1288 = vmul.f32 1.0, %v1287
        %1289 = vst.msk [vmem:[#allocation3 + $0x2] sm:$0x1] %vm199, %v1286
        %v1291 = vrot.slane %v1286, 5
        %v1292 = vrot.slane %v1291, 4
        %1293 = vrot.lane.b32.xlu0 %v1292, 16
        %v1294 = vpop.permute.xlu0 %1293
        %vm1296 = vcmask 254080
        %1297 = vst.msk [vmem:[#allocation3 + $0x2] sm:$0x1] %vm1296, %v1294
        %v1298 = vrot.slane %v1286, 6
        %v1299 = vrot.slane %v1298, 4
        %1300 = vrot.lane.b32.xlu0 %v1299, 32
        %v1301 = vpop.permute.xlu0 %1300
        %vm1303 = vcmask 385280
        %1304 = vst.msk [vmem:[#allocation3 + $0x2] sm:$0x1] %vm1303, %v1301
        %v1305 = vrot.slane %v1286, 7
        %v1306 = vrot.slane %v1305, 4
        %1307 = vrot.lane.b32.xlu0 %v1306, 48
        %v1308 = vpop.permute.xlu0 %1307
        %vm1310 = vcmask 516480
        %1311 = vst.msk [vmem:[#allocation3 + $0x2] sm:$0x1] %vm1310, %v1308
        %v1312 = vcombine.high %v1286, %v1286
        %1313 = vrot.lane.b32.xlu0 %v1312, 64
        %v1314 = vpop.permute.xlu0 %1313
        %vm1316 = vcmask 647680
        %1317 = vst.msk [vmem:[#allocation3 + $0x2] sm:$0x1] %vm1316, %v1314
        %v1318 = vrot.slane %v1312, 5
        %v1319 = vrot.slane %v1318, 4
        %1320 = vrot.lane.b32.xlu0 %v1319, 80
        %v1321 = vpop.permute.xlu0 %1320
        %vm1323 = vcmask 778880
        %1324 = vst.msk [vmem:[#allocation3 + $0x2] sm:$0x1] %vm1323, %v1321
        %v1325 = vrot.slane %v1312, 6
        %v1326 = vrot.slane %v1325, 4
        %1327 = vrot.lane.b32.xlu0 %v1326, 96
        %v1328 = vpop.permute.xlu0 %1327
        %vm1330 = vcmask 910080
        %1331 = vst.msk [vmem:[#allocation3 + $0x2] sm:$0x1] %vm1330, %v1328
        %v1332 = vrot.slane %v1312, 7
        %v1333 = vrot.slane %v1332, 4
        %1334 = vrot.lane.b32.xlu0 %v1333, 112
        %v1335 = vpop.permute.xlu0 %1334
        %vm1337 = vcmask 1041280
        %1338 = vst.msk [vmem:[#allocation3 + $0x2] sm:$0x1] %vm1337, %v1335
        %1339 = vst.msk [vmem:[#allocation3 + $0x6] sm:$0x1] %vm199, %v1288
        %v1341 = vrot.slane %v1288, 5
        %v1342 = vrot.slane %v1341, 4
        %1343 = vrot.lane.b32.xlu0 %v1342, 16
        %v1344 = vpop.permute.xlu0 %1343
        %1346 = vst.msk [vmem:[#allocation3 + $0x6] sm:$0x1] %vm1296, %v1344
        %v1347 = vrot.slane %v1288, 6
        %v1348 = vrot.slane %v1347, 4
        %1349 = vrot.lane.b32.xlu0 %v1348, 32
        %v1350 = vpop.permute.xlu0 %1349
        %1352 = vst.msk [vmem:[#allocation3 + $0x6] sm:$0x1] %vm1303, %v1350
        %v1353 = vrot.slane %v1288, 7
        %v1354 = vrot.slane %v1353, 4
        %1355 = vrot.lane.b32.xlu0 %v1354, 48
        %v1356 = vpop.permute.xlu0 %1355
        %1358 = vst.msk [vmem:[#allocation3 + $0x6] sm:$0x1] %vm1310, %v1356
        %v1359 = vcombine.high %v1288, %v1288
        %1360 = vrot.lane.b32.xlu0 %v1359, 64
        %v1361 = vpop.permute.xlu0 %1360
        %1363 = vst.msk [vmem:[#allocation3 + $0x6] sm:$0x1] %vm1316, %v1361
        %v1364 = vrot.slane %v1359, 5
        %v1365 = vrot.slane %v1364, 4
        %1366 = vrot.lane.b32.xlu0 %v1365, 80
        %v1367 = vpop.permute.xlu0 %1366
        %1369 = vst.msk [vmem:[#allocation3 + $0x6] sm:$0x1] %vm1323, %v1367
        %v1370 = vrot.slane %v1359, 6
        %v1371 = vrot.slane %v1370, 4
        %1372 = vrot.lane.b32.xlu0 %v1371, 96
        %v1373 = vpop.permute.xlu0 %1372
        %1375 = vst.msk [vmem:[#allocation3 + $0x6] sm:$0x1] %vm1330, %v1373
        %v1376 = vrot.slane %v1359, 7
        %v1377 = vrot.slane %v1376, 4
        %1378 = vrot.lane.b32.xlu0 %v1377, 112
        %v1379 = vpop.permute.xlu0 %1378
        %1381 = vst.msk [vmem:[#allocation3 + $0x6] sm:$0x1] %vm1337, %v1379
        %s1382 = scalar_lea.vmem [#allocation3], 2
        %v1383 = vld [vmem:[%s1382] ss:$4 sm:$0x3]
        %v1384 = vld [vmem:[%s150] ss:$4 sm:$0x3]
        %v1385 = vmul.f32 %v1384, %v1383
        %1386 = vst.msk [vmem:[%s171] ss:$4 sm:$0x3] %vm189, %v1385
        %v1387 = vld [vmem:[%s173] ss:$4 sm:$0x3]
        %v1388 = vmul.f32 %v1387, %v1383
        %s1389 = scalar_lea.vmem %s171, 1 [#allocation9]
        %1390 = vst.msk [vmem:[%s1389] ss:$4 sm:$0x3] %vm189, %v1388
        %v1391 = vld [vmem:[%s177] ss:$4 sm:$0x3]
        %v1392 = vmul.f32 %v1391, %v1383
        %s1393 = scalar_lea.vmem %s171, 2 [#allocation9]
        %1394 = vst.msk [vmem:[%s1393] ss:$4 sm:$0x3] %vm189, %v1392
        %v1395 = vld [vmem:[%s181] ss:$4 sm:$0x3]
        %v1396 = vmul.f32 %v1395, %v1383
        %s1397 = scalar_lea.vmem %s171, 3 [#allocation9]
        %1398 = vst.msk [vmem:[%s1397] ss:$4 sm:$0x3] %vm189, %v1396
        %s1399 = sand.u32 %s75, 1
        %s1400 = scalar_lea.sflag [#allocation6], %s1399
        %s1401 = sand.u32 %s75, 1
        %s1402 = smul.addr %s1401, 8
        %s1403 = scalar_lea.vmem [#allocation9], %s1402
        // Predicated region
        $region37: #{tpu_custom_call.1} parent=27 // pred_check
          %p1404 = pneg %p85
        $region38: #{tpu_custom_call.1} parent=27 // pred_check_branch
          %1406 = sbr.rel (%p1404) target = $region40
        $region39: #{tpu_custom_call.1} parent=27 // pred_region
          %s1408 = ssub.s32 128, 128
          %1409 = vsyncadd %s1400, %s1408
          %s1410 = smul.addr %s20, 2
          %s1411 = smul.addr %s1410, 64
          %s1412 = scalar_lea.hbm %s2, %s1411
          %s1414 = sshll.u32 %s1403, 4
          %s1415 = int_to_ptr.vmem [resolvable:$true] %s1414
          %1417 = dma.vmem_to_hbm [thread:$0]  %s1415, 128, %s1412, %s1400
        $region40: #{tpu_custom_call.1} parent=27 // pred_fallthru
          _
      $region28: #{tpu_custom_call.1} parent=5 // pred_fallthru
        _
      %p1418 = scmp.le.s32.totalorder 2, %s15
      // Predicated region
      $region41: #{tpu_custom_call.1} parent=5 // pred_check
        %p1419 = pneg %p1418
      $region42: #{tpu_custom_call.1} parent=5 // pred_check_branch
        %1421 = sbr.rel (%p1419) target = $region44
      $region43: #{tpu_custom_call.1} parent=5 // pred_region
        %s1422 = ssub.s32 %s15, 2
        // Predicated region
        $region45: #{tpu_custom_call.1} parent=43 // pred_check
          %p1423 = pneg %p91
        $region46: #{tpu_custom_call.1} parent=43 // pred_check_branch
          %1425 = sbr.rel (%p1423) target = $region48
        $region47: #{tpu_custom_call.1} parent=43 // pred_region
          %s1426 = sand.u32 %s76, 1
          %s1427 = scalar_lea.sflag [#allocation6], %s1426
          %s1428 = sand.u32 %s76, 1
          %s1429 = smul.addr %s1428, 8
          %s1430 = scalar_lea.vmem [#allocation9], %s1429
          %1431 = dma.done %s1427, 128
        $region48: #{tpu_custom_call.1} parent=43 // pred_fallthru
          _
      $region44: #{tpu_custom_call.1} parent=5 // pred_fallthru
        _
    $region6: #{tpu_custom_call.1} parent=1 // loop_footer
      %s19 = sadd.s32 1, %s15
    $region7: #{tpu_custom_call.1} parent=1 // loop_footer_branch
      %14 = sbr.rel target = $region3
    $region8: #{tpu_custom_call.1} parent=1 // loop_exit
      _
    %1432 = vsyncpa [#allocation5], 1
    %s1433 = scalar_lea.sflag [#allocation5], 1
    %1434 = vsyncpa %s1433, 1
    %1435 = vsyncpa [#allocation6], 1
    %s1436 = scalar_lea.sflag [#allocation6], 1
    %1437 = vsyncpa %s1436, 1
    %1438 = vsyncpa [#allocation7], 1
    %s1439 = scalar_lea.sflag [#allocation7], 1
    %1440 = vsyncpa %s1439, 1

</llo_original>
